<compile_context>
chip_gen: v7x
topology: tpu7x:2x2x1
jax: 0.10.0
libtpu: 0.0.40
codegen_flags: <defaults>
</compile_context>

<pallas_src>
import functools

import jax
import jax.numpy as jnp
from jax.experimental import pallas as pl
from jax.experimental.pallas import tpu as pltpu

# ----------------------- small synthetic configuration -----------------------
BATCH = 2
C_RES = 32          # original: 256
C_MID = 64          # original: 512
H = W = 8           # original: 24 (so fc1 in = 12*12*512)
FC_IN = (H // 2) * (W // 2) * C_MID
FC_HIDDEN = 128     # original: 4096
N_CLASSES = 3
FC2_PAD = 128       # lane-dense fc2 output width (sliced to N_CLASSES outside)
NLANDMARKS = 16     # used only by the SHGN/PFLD stubs

# ------------------------------- Pallas kernels -------------------------------


def _pre_kernel(res_ref, pg_ref, pp_ref, ps_ref,
                ws_ref, ss_ref, bs_ref, wp_ref, sp_ref, bp_ref,
                shgn_ref, pfld_ref, cls_ref):
    """Fused: shgn_in/pfld_in sums + both 1x1 conv+BN+ReLU + (joint + res)."""
    res = res_ref[...]
    pg = pg_ref[...]
    shgn_in = res + pg + pp_ref[...]
    pfld_in = res + pg + ps_ref[...]
    shgn_ref[...] = shgn_in
    pfld_ref[...] = pfld_in
    js = jnp.dot(shgn_in.astype(jnp.bfloat16), ws_ref[...],
                 preferred_element_type=jnp.float32)
    js = jnp.maximum(js * ss_ref[...] + bs_ref[...], 0.0)
    jp = jnp.dot(pfld_in.astype(jnp.bfloat16), wp_ref[...],
                 preferred_element_type=jnp.float32)
    jp = jnp.maximum(jp * sp_ref[...] + bp_ref[...], 0.0)
    cls_ref[...] = js + jp + res


def fused_pre(res, prev_gest, prev_pfld, prev_shgn, shgn_p, pfld_p):
    """Returns (shgn_feature, pfld_feature, classifier_input), all NHWC."""
    n, h, w, c = res.shape
    m = n * h * w
    ws, ss, bs = shgn_p
    wp, sp, bp = pfld_p

    def flat(a):
        return a.reshape(m, c)

    def spec(r, cc):
        return pl.BlockSpec((r, cc), lambda i: (0, 0))

    outs = pl.pallas_call(
        _pre_kernel,
        out_shape=(jax.ShapeDtypeStruct((m, c), jnp.float32),
                   jax.ShapeDtypeStruct((m, c), jnp.float32),
                   jax.ShapeDtypeStruct((m, c), jnp.float32)),
        grid=(1,),
        in_specs=[spec(m, c)] * 4
                 + [spec(c, c), spec(1, c), spec(1, c)] * 2,
        out_specs=(spec(m, c), spec(m, c), spec(m, c)),
    )(flat(res), flat(prev_gest), flat(prev_pfld), flat(prev_shgn),
      ws, ss, bs, wp, sp, bp)

    shgn_in, pfld_in, cls_in = outs
    return (shgn_in.reshape(n, h, w, c),
            pfld_in.reshape(n, h, w, c),
            cls_in.reshape(n, h, w, c))


def _conv3x3_kernel(h, w, cin, cout, pool, x_ref, w_ref, s_ref, b_ref, o_ref):
    x = x_ref[0]                                     # (h+2, w+2, cin) padded, f32
    # im2col: pack the 3 dy taps first (cheap leading-dim slices), then the 3
    # dx taps, giving one (h*w, 9*cin) patch and a single MXU matmul.
    rows = jnp.concatenate([x[dy:dy + h] for dy in range(3)], axis=-1)         # (h, w+2, 3*cin)
    patch = jnp.concatenate([rows[:, dx:dx + w] for dx in range(3)], axis=-1)  # (h, w, 9*cin)
    patch = patch.reshape(h * w, 9 * cin).astype(jnp.bfloat16)
    y = jnp.dot(patch, w_ref[...], preferred_element_type=jnp.float32)         # (h*w, cout)
    y = jnp.maximum(y * s_ref[...] + b_ref[...], 0.0)                          # BN + ReLU (f32)
    y = y.reshape(h, w, cout)
    if pool:                                         # MaxPool2d(kernel_size=2)
        y = jnp.max(y.reshape(h, w // 2, 2, cout), axis=2)        # W pairs
        z = y.reshape(h // 2, 2, w // 2, cout)                    # leading split only
        y = jnp.maximum(z[:, 0], z[:, 1])                         # H pairs (no relayout)
    o_ref[0] = y.astype(o_ref.dtype)


def conv3x3_bn_relu(x, w_flat, scale, bias, *, pool=False):
    """Conv2d(3x3, stride 1, pad 1) + folded BN + ReLU (+ optional MaxPool 2x2).

    `w_flat` is the conv weight flattened to (9*Cin, Cout) in (dx, dy, cin)
    order (matching the in-kernel im2col packing); `scale`/`bias` are (1, Cout).
    """
    n, h, ww, cin = x.shape
    cout = w_flat.shape[-1]
    xp = jnp.pad(x, ((0, 0), (1, 1), (1, 1), (0, 0)))
    ho, wo = (h // 2, ww // 2) if pool else (h, ww)
    return pl.pallas_call(
        functools.partial(_conv3x3_kernel, h, ww, cin, cout, pool),
        out_shape=jax.ShapeDtypeStruct((n, ho, wo, cout), jnp.float32),
        grid=(n,),
        in_specs=[
            pl.BlockSpec((1, h + 2, ww + 2, cin), lambda b: (b, 0, 0, 0)),
            pl.BlockSpec((9 * cin, cout), lambda b: (0, 0)),
            pl.BlockSpec((1, cout), lambda b: (0, 0)),
            pl.BlockSpec((1, cout), lambda b: (0, 0)),
        ],
        out_specs=pl.BlockSpec((1, ho, wo, cout), lambda b: (b, 0, 0, 0)),
        compiler_params=pltpu.CompilerParams(dimension_semantics=("parallel",)),
    )(xp, w_flat, scale, bias)


def _fc_kernel(x_ref, w1_ref, s1_ref, b1_ref, w2_ref, b2_ref, o_ref):
    """Fused fc1(+BN+ReLU) -> fc2 with a lane-dense (padded) output."""
    h1 = jnp.dot(x_ref[...].astype(jnp.bfloat16), w1_ref[...],
                 preferred_element_type=jnp.float32)
    h1 = jnp.maximum(h1 * s1_ref[...] + b1_ref[...], 0.0)
    y = jnp.dot(h1.astype(jnp.bfloat16), w2_ref[...],
                preferred_element_type=jnp.float32)
    o_ref[...] = y + b2_ref[...]


def fused_fc(x, fc1_p, fc2_p):
    m, k = x.shape
    w1, s1, b1 = fc1_p
    w2, b2 = fc2_p
    kh = w1.shape[1]
    npad = w2.shape[1]
    # TODO(synk): at the original size (73728x4096) this whole-operand BlockSpec
    # must be replaced by K/N tiling with a VMEM accumulator (VMEM limits).
    out = pl.pallas_call(
        _fc_kernel,
        out_shape=jax.ShapeDtypeStruct((m, npad), jnp.float32),
        grid=(1,),
        in_specs=[
            pl.BlockSpec((m, k), lambda i: (0, 0)),
            pl.BlockSpec((k, kh), lambda i: (0, 0)),
            pl.BlockSpec((1, kh), lambda i: (0, 0)),
            pl.BlockSpec((1, kh), lambda i: (0, 0)),
            pl.BlockSpec((kh, npad), lambda i: (0, 0)),
            pl.BlockSpec((1, npad), lambda i: (0, 0)),
        ],
        out_specs=pl.BlockSpec((m, npad), lambda i: (0, 0)),
    )(x, w1, s1, b1, w2, b2)
    return out[:, :N_CLASSES]


def _bilinear_matrix(n_in, n_out):
    """(n_out, n_in) interpolation matrix; align_corners=True (UpsamplingBilinear2d)."""
    src = jnp.arange(n_out, dtype=jnp.float32) * (n_in - 1) / (n_out - 1)
    lo = jnp.clip(jnp.floor(src).astype(jnp.int32), 0, n_in - 2)
    frac = src - lo.astype(jnp.float32)
    r = jnp.arange(n_out)
    m = jnp.zeros((n_out, n_in), jnp.float32)
    m = m.at[r, lo].add(1.0 - frac)
    m = m.at[r, lo + 1].add(frac)
    return m


def _upsample_kernel(h, w, c, ho, wo, x_ref, m_ref, o_ref):
    x = x_ref[0].reshape(h * w, c)
    y = jnp.dot(m_ref[...], x, preferred_element_type=jnp.float32)
    o_ref[0] = y.reshape(ho, wo, c).astype(o_ref.dtype)


def upsample_bilinear_2x(x):
    """UpsamplingBilinear2d(scale_factor=2) as one (Ho*Wo, H*W) matmul per image."""
    # TODO(synk): at the original 24->48 scale switch to separable row/col
    # interpolation matmuls (the kron matrix is ~99% zeros there).
    n, h, ww, c = x.shape
    ho, wo = 2 * h, 2 * ww
    m = jnp.kron(_bilinear_matrix(h, ho), _bilinear_matrix(ww, wo))  # (ho*wo, h*ww)
    return pl.pallas_call(
        functools.partial(_upsample_kernel, h, ww, c, ho, wo),
        out_shape=jax.ShapeDtypeStruct((n, ho, wo, c), jnp.float32),
        grid=(n,),
        in_specs=[
            pl.BlockSpec((1, h, ww, c), lambda b: (b, 0, 0, 0)),
            pl.BlockSpec((ho * wo, h * ww), lambda b: (0, 0)),
        ],
        out_specs=pl.BlockSpec((1, ho, wo, c), lambda b: (b, 0, 0, 0)),
        compiler_params=pltpu.CompilerParams(dimension_semantics=("parallel",)),
    )(x, m)


# ------------------------------ parameter setup ------------------------------


def _fold_bn(conv_bias, gamma, beta, mean, var, eps=1e-5):
    s = gamma / jnp.sqrt(var + eps)
    b = beta + (conv_bias - mean) * s
    return s, b


def make_params(key):
    keys = iter(jax.random.split(key, 64))

    def conv_w(cin, cout, k):
        return 0.05 * jax.random.normal(next(keys), (k, k, cin, cout), jnp.float32)

    def lin_w(cin, cout):
        return 0.05 * jax.random.normal(next(keys), (cin, cout), jnp.float32)

    def bn(c):
        gamma = 1.0 + 0.1 * jax.random.normal(next(keys), (c,), jnp.float32)
        beta = 0.1 * jax.random.normal(next(keys), (c,), jnp.float32)
        mean = 0.1 * jax.random.normal(next(keys), (c,), jnp.float32)
        var = 1.0 + 0.1 * jax.random.uniform(next(keys), (c,), jnp.float32)
        return gamma, beta, mean, var

    def conv_bn(cin, cout, k):
        w = conv_w(cin, cout, k)
        b = 0.05 * jax.random.normal(next(keys), (cout,), jnp.float32)
        s, bb = _fold_bn(b, *bn(cout))
        return w, s, bb

    def conv1x1_p(cin, cout):
        w, s, b = conv_bn(cin, cout, 1)
        return (w.reshape(cin, cout).astype(jnp.bfloat16),
                s.reshape(1, cout), b.reshape(1, cout))

    def conv3x3_p(cin, cout):
        w, s, b = conv_bn(cin, cout, 3)
        # Flatten in (dx, dy, cin) order to match the in-kernel im2col packing.
        wf = w.transpose(1, 0, 2, 3).reshape(9 * cin, cout).astype(jnp.bfloat16)
        return wf, s.reshape(1, cout), b.reshape(1, cout)

    def lin_bn_p(cin, cout):
        w = lin_w(cin, cout)
        b = 0.05 * jax.random.normal(next(keys), (cout,), jnp.float32)
        s, bb = _fold_bn(b, *bn(cout))
        return w.astype(jnp.bfloat16), s.reshape(1, cout), bb.reshape(1, cout)

    def lin_pad_p(cin, cout, pad_to):
        w = lin_w(cin, cout)
        b = 0.05 * jax.random.normal(next(keys), (cout,), jnp.float32)
        wp = jnp.zeros((cin, pad_to), jnp.float32).at[:, :cout].set(w)
        bp = jnp.zeros((1, pad_to), jnp.float32).at[0, :cout].set(b)
        return wp.astype(jnp.bfloat16), bp

    return {
        # CollabNetwork.conv_shgn / conv_pfld : Conv2d(256,256,1) + BN + ReLU
        "conv_shgn": conv1x1_p(C_RES, C_RES),
        "conv_pfld": conv1x1_p(C_RES, C_RES),
        # Classifier.down
        "down1": conv3x3_p(C_RES, C_MID),
        "down2": conv3x3_p(C_MID, C_MID),
        # Classifier.fc1 / fc2  (fc1 weight defined on the NHWC flatten order)
        "fc1": lin_bn_p(FC_IN, FC_HIDDEN),
        "fc2": lin_pad_p(FC_HIDDEN, N_CLASSES, FC2_PAD),
        # Classifier.up
        "up1": conv3x3_p(C_MID, C_RES),
        "up2": conv3x3_p(C_RES, C_RES),
    }


# ------------------------------ forward pass ---------------------------------


def collab_forward(params, res, prev_gest, prev_pfld, prev_shgn):
    n = res.shape[0]

    # TODO(synk): SHGN and PFLD submodules are not defined in the reference
    # source; their features are passed through and heatmaps/landmarks are
    # placeholder zeros of the conventional shapes.
    shgn_feature, pfld_feature, cls_in = fused_pre(
        res, prev_gest, prev_pfld, prev_shgn,
        params["conv_shgn"], params["conv_pfld"])
    heatmaps = jnp.zeros((n, NLANDMARKS, res.shape[1], res.shape[2]), jnp.float32)
    landmarks = jnp.zeros((n, NLANDMARKS * 2), jnp.float32)

    # Classifier.down : conv3x3+BN+ReLU, conv3x3+BN+ReLU + MaxPool2d(2)
    d1 = conv3x3_bn_relu(cls_in, *params["down1"])
    d2 = conv3x3_bn_relu(d1, *params["down2"], pool=True)

    # Classifier.fc1 / fc2 (fused)
    gesture = fused_fc(d2.reshape(n, -1), params["fc1"], params["fc2"])

    # Classifier.up : bilinear x2, conv3x3+BN+ReLU, conv3x3+BN+ReLU
    u = upsample_bilinear_2x(d2)
    u1 = conv3x3_bn_relu(u, *params["up1"])
    gest_feature = conv3x3_bn_relu(u1, *params["up2"])

    return gesture, landmarks, heatmaps, gest_feature, pfld_feature, shgn_feature


# ----------------------------------- main -------------------------------------

if __name__ == "__main__":
    key = jax.random.PRNGKey(0)
    k_par, k_res, k_g, k_p, k_s = jax.random.split(key, 5)

    params = make_params(k_par)

    shape = (BATCH, H, W, C_RES)                 # NHWC (torch NCHW: (2, 32, 8, 8))
    res = jax.random.normal(k_res, shape, jnp.float32)
    prev_gest = jax.random.normal(k_g, shape, jnp.float32)
    prev_pfld = jax.random.normal(k_p, shape, jnp.float32)
    prev_shgn = jax.random.normal(k_s, shape, jnp.float32)

    fwd = jax.jit(collab_forward)
    outs = fwd(params, res, prev_gest, prev_pfld, prev_shgn)
    jax.block_until_ready(outs)

    gesture, landmarks, heatmaps, gest_feature, pfld_feature, shgn_feature = outs
    assert gesture.shape == (BATCH, N_CLASSES)
    assert landmarks.shape == (BATCH, NLANDMARKS * 2)
    assert heatmaps.shape == (BATCH, NLANDMARKS, H, W)
    assert gest_feature.shape == (BATCH, H, W, C_RES)
    assert pfld_feature.shape == shape and shgn_feature.shape == shape
    print("KERNEL_OK")
</pallas_src>

<mosaic_0001>
module attributes {stable_mosaic.version = 11 : i64} {
  func.func @_conv3x3_kernel(%arg0: i32, %arg1: memref<1x10x10x32xf32, #tpu.memory_space<vmem>>, %arg2: memref<288x64xbf16, #tpu.memory_space<vmem>>, %arg3: memref<1x64xf32, #tpu.memory_space<vmem>>, %arg4: memref<1x64xf32, #tpu.memory_space<vmem>>, %arg5: memref<1x8x8x64xf32, #tpu.memory_space<vmem>>) attributes {dimension_semantics = [#tpu.dimension_semantics<parallel>], iteration_bounds = array<i64: 2>, scalar_prefetch = 0 : i64, scratch_operands = 0 : i64, tpu.core_type = #tpu.core_type<tc>, window_params = [{transform_indices = @transform_0, window_bounds = array<i64: 1, 10, 10, 32>}, {pipeline_mode = #tpu.pipeline_mode<synchronous>, transform_indices = @transform_1, window_bounds = array<i64: 288, 64>}, {pipeline_mode = #tpu.pipeline_mode<synchronous>, transform_indices = @transform_2, window_bounds = array<i64: 1, 64>}, {pipeline_mode = #tpu.pipeline_mode<synchronous>, transform_indices = @transform_3, window_bounds = array<i64: 1, 64>}, {transform_indices = @transform_4, window_bounds = array<i64: 1, 8, 8, 64>}]} {
    %c0 = arith.constant 0 : index
    %c0_0 = arith.constant 0 : index
    %c0_1 = arith.constant 0 : index
    %c0_2 = arith.constant 0 : index
    %0 = vector.load %arg1[%c0, %c0_0, %c0_1, %c0_2] : memref<1x10x10x32xf32, #tpu.memory_space<vmem>>, vector<1x10x10x32xf32>
    %1 = vector.shape_cast %0 : vector<1x10x10x32xf32> to vector<10x10x32xf32>
    %2 = vector.extract_strided_slice %1 {offsets = [0, 0, 0], sizes = [8, 10, 32], strides = [1, 1, 1]} : vector<10x10x32xf32> to vector<8x10x32xf32>
    %3 = vector.extract_strided_slice %1 {offsets = [1, 0, 0], sizes = [8, 10, 32], strides = [1, 1, 1]} : vector<10x10x32xf32> to vector<8x10x32xf32>
    %4 = vector.extract_strided_slice %1 {offsets = [2, 0, 0], sizes = [8, 10, 32], strides = [1, 1, 1]} : vector<10x10x32xf32> to vector<8x10x32xf32>
    %5 = tpu.concatenate %2, %3, %4 in 2 : vector<8x10x32xf32>, vector<8x10x32xf32>, vector<8x10x32xf32> -> vector<8x10x96xf32>
    %6 = vector.extract_strided_slice %5 {offsets = [0, 0, 0], sizes = [8, 8, 96], strides = [1, 1, 1]} : vector<8x10x96xf32> to vector<8x8x96xf32>
    %7 = vector.extract_strided_slice %5 {offsets = [0, 1, 0], sizes = [8, 8, 96], strides = [1, 1, 1]} : vector<8x10x96xf32> to vector<8x8x96xf32>
    %8 = vector.extract_strided_slice %5 {offsets = [0, 2, 0], sizes = [8, 8, 96], strides = [1, 1, 1]} : vector<8x10x96xf32> to vector<8x8x96xf32>
    %9 = tpu.concatenate %6, %7, %8 in 2 : vector<8x8x96xf32>, vector<8x8x96xf32>, vector<8x8x96xf32> -> vector<8x8x288xf32>
    %10 = vector.shape_cast %9 : vector<8x8x288xf32> to vector<64x288xf32>
    %11 = arith.truncf %10 : vector<64x288xf32> to vector<64x288xbf16>
    %c0_3 = arith.constant 0 : index
    %c0_4 = arith.constant 0 : index
    %12 = vector.load %arg2[%c0_3, %c0_4] : memref<288x64xbf16, #tpu.memory_space<vmem>>, vector<288x64xbf16>
    %cst = arith.constant dense<0.000000e+00> : vector<64x64xf32>
    %13 = tpu.matmul %11, %12, %cst {dimension_numbers = #tpu.dot_dimension_numbers<[1], [0], [0], [1], [0, 0, 1, 1], [], []>} : vector<64x288xbf16>, vector<288x64xbf16>, vector<64x64xf32> -> vector<64x64xf32>
    %c0_5 = arith.constant 0 : index
    %c0_6 = arith.constant 0 : index
    %14 = vector.load %arg3[%c0_5, %c0_6] : memref<1x64xf32, #tpu.memory_space<vmem>>, vector<1x64xf32>
    %15 = vector.broadcast %14 : vector<1x64xf32> to vector<64x64xf32>
    %16 = arith.mulf %13, %15 : vector<64x64xf32>
    %c0_7 = arith.constant 0 : index
    %c0_8 = arith.constant 0 : index
    %17 = vector.load %arg4[%c0_7, %c0_8] : memref<1x64xf32, #tpu.memory_space<vmem>>, vector<1x64xf32>
    %18 = vector.broadcast %17 : vector<1x64xf32> to vector<64x64xf32>
    %19 = arith.addf %16, %18 : vector<64x64xf32>
    %cst_9 = arith.constant 0.000000e+00 : f32
    %20 = vector.broadcast %cst_9 : f32 to vector<64x64xf32>
    %21 = arith.maximumf %19, %20 : vector<64x64xf32>
    %22 = vector.shape_cast %21 : vector<64x64xf32> to vector<8x8x64xf32>
    %c0_10 = arith.constant 0 : index
    %c0_11 = arith.constant 0 : index
    %c0_12 = arith.constant 0 : index
    %c0_13 = arith.constant 0 : index
    %23 = vector.load %arg5[%c0_10, %c0_11, %c0_12, %c0_13] : memref<1x8x8x64xf32, #tpu.memory_space<vmem>>, vector<1x8x8x64xf32>
    %24 = vector.shape_cast %23 : vector<1x8x8x64xf32> to vector<8x8x64xf32>
    %25 = vector.shape_cast %22 : vector<8x8x64xf32> to vector<1x8x8x64xf32>
    tpu.vector_store %arg5[%c0_10, %c0_11, %c0_12, %c0_13], %25 {strides = array<i32>} : memref<1x8x8x64xf32, #tpu.memory_space<vmem>>, vector<1x8x8x64xf32>,
    return
  }
  func.func @transform_0(%arg0: i32) -> (i32, i32, i32, i32) {
    %c0_i32 = arith.constant 0 : i32
    %c0_i32_0 = arith.constant 0 : i32
    %c0_i32_1 = arith.constant 0 : i32
    %c0_i32_2 = arith.constant 0 : i32
    return %arg0, %c0_i32, %c0_i32_0, %c0_i32_1 : i32, i32, i32, i32
  }
  func.func @transform_1(%arg0: i32) -> (i32, i32) {
    %c0_i32 = arith.constant 0 : i32
    %c0_i32_0 = arith.constant 0 : i32
    %c0_i32_1 = arith.constant 0 : i32
    return %c0_i32, %c0_i32_0 : i32, i32
  }
  func.func @transform_2(%arg0: i32) -> (i32, i32) {
    %c0_i32 = arith.constant 0 : i32
    %c0_i32_0 = arith.constant 0 : i32
    %c0_i32_1 = arith.constant 0 : i32
    return %c0_i32, %c0_i32_0 : i32, i32
  }
  func.func @transform_3(%arg0: i32) -> (i32, i32) {
    %c0_i32 = arith.constant 0 : i32
    %c0_i32_0 = arith.constant 0 : i32
    %c0_i32_1 = arith.constant 0 : i32
    return %c0_i32, %c0_i32_0 : i32, i32
  }
  func.func @transform_4(%arg0: i32) -> (i32, i32, i32, i32) {
    %c0_i32 = arith.constant 0 : i32
    %c0_i32_0 = arith.constant 0 : i32
    %c0_i32_1 = arith.constant 0 : i32
    %c0_i32_2 = arith.constant 0 : i32
    return %arg0, %c0_i32, %c0_i32_0, %c0_i32_1 : i32, i32, i32, i32
  }
}

module attributes {stable_mosaic.version = 11 : i64} {
  func.func @_pre_kernel(%arg0: i32, %arg1: memref<128x32xf32, #tpu.memory_space<vmem>>, %arg2: memref<128x32xf32, #tpu.memory_space<vmem>>, %arg3: memref<128x32xf32, #tpu.memory_space<vmem>>, %arg4: memref<128x32xf32, #tpu.memory_space<vmem>>, %arg5: memref<32x32xbf16, #tpu.memory_space<vmem>>, %arg6: memref<1x32xf32, #tpu.memory_space<vmem>>, %arg7: memref<1x32xf32, #tpu.memory_space<vmem>>, %arg8: memref<32x32xbf16, #tpu.memory_space<vmem>>, %arg9: memref<1x32xf32, #tpu.memory_space<vmem>>, %arg10: memref<1x32xf32, #tpu.memory_space<vmem>>, %arg11: memref<128x32xf32, #tpu.memory_space<vmem>>, %arg12: memref<128x32xf32, #tpu.memory_space<vmem>>, %arg13: memref<128x32xf32, #tpu.memory_space<vmem>>) attributes {dimension_semantics = [#tpu.dimension_semantics<arbitrary>], iteration_bounds = array<i64: 1>, scalar_prefetch = 0 : i64, scratch_operands = 0 : i64, tpu.core_type = #tpu.core_type<tc>, window_params = [{pipeline_mode = #tpu.pipeline_mode<synchronous>, transform_indices = @transform_0, window_bounds = array<i64: 128, 32>}, {pipeline_mode = #tpu.pipeline_mode<synchronous>, transform_indices = @transform_1, window_bounds = array<i64: 128, 32>}, {pipeline_mode = #tpu.pipeline_mode<synchronous>, transform_indices = @transform_2, window_bounds = array<i64: 128, 32>}, {pipeline_mode = #tpu.pipeline_mode<synchronous>, transform_indices = @transform_3, window_bounds = array<i64: 128, 32>}, {pipeline_mode = #tpu.pipeline_mode<synchronous>, transform_indices = @transform_4, window_bounds = array<i64: 32, 32>}, {pipeline_mode = #tpu.pipeline_mode<synchronous>, transform_indices = @transform_5, window_bounds = array<i64: 1, 32>}, {pipeline_mode = #tpu.pipeline_mode<synchronous>, transform_indices = @transform_6, window_bounds = array<i64: 1, 32>}, {pipeline_mode = #tpu.pipeline_mode<synchronous>, transform_indices = @transform_7, window_bounds = array<i64: 32, 32>}, {pipeline_mode = #tpu.pipeline_mode<synchronous>, transform_indices = @transform_8, window_bounds = array<i64: 1, 32>}, {pipeline_mode = #tpu.pipeline_mode<synchronous>, transform_indices = @transform_9, window_bounds = array<i64: 1, 32>}, {pipeline_mode = #tpu.pipeline_mode<synchronous>, transform_indices = @transform_10, window_bounds = array<i64: 128, 32>}, {pipeline_mode = #tpu.pipeline_mode<synchronous>, transform_indices = @transform_11, window_bounds = array<i64: 128, 32>}, {pipeline_mode = #tpu.pipeline_mode<synchronous>, transform_indices = @transform_12, window_bounds = array<i64: 128, 32>}]} {
    %c0 = arith.constant 0 : index
    %c0_0 = arith.constant 0 : index
    %0 = vector.load %arg1[%c0, %c0_0] : memref<128x32xf32, #tpu.memory_space<vmem>>, vector<128x32xf32>
    %c0_1 = arith.constant 0 : index
    %c0_2 = arith.constant 0 : index
    %1 = vector.load %arg2[%c0_1, %c0_2] : memref<128x32xf32, #tpu.memory_space<vmem>>, vector<128x32xf32>
    %2 = arith.addf %0, %1 : vector<128x32xf32>
    %c0_3 = arith.constant 0 : index
    %c0_4 = arith.constant 0 : index
    %3 = vector.load %arg3[%c0_3, %c0_4] : memref<128x32xf32, #tpu.memory_space<vmem>>, vector<128x32xf32>
    %4 = arith.addf %2, %3 : vector<128x32xf32>
    %5 = arith.addf %0, %1 : vector<128x32xf32>
    %c0_5 = arith.constant 0 : index
    %c0_6 = arith.constant 0 : index
    %6 = vector.load %arg4[%c0_5, %c0_6] : memref<128x32xf32, #tpu.memory_space<vmem>>, vector<128x32xf32>
    %7 = arith.addf %5, %6 : vector<128x32xf32>
    %c0_7 = arith.constant 0 : index
    %c0_8 = arith.constant 0 : index
    %8 = vector.load %arg11[%c0_7, %c0_8] : memref<128x32xf32, #tpu.memory_space<vmem>>, vector<128x32xf32>
    tpu.vector_store %arg11[%c0_7, %c0_8], %4 {strides = array<i32>} : memref<128x32xf32, #tpu.memory_space<vmem>>, vector<128x32xf32>,
    %c0_9 = arith.constant 0 : index
    %c0_10 = arith.constant 0 : index
    %9 = vector.load %arg12[%c0_9, %c0_10] : memref<128x32xf32, #tpu.memory_space<vmem>>, vector<128x32xf32>
    tpu.vector_store %arg12[%c0_9, %c0_10], %7 {strides = array<i32>} : memref<128x32xf32, #tpu.memory_space<vmem>>, vector<128x32xf32>,
    %10 = arith.truncf %4 : vector<128x32xf32> to vector<128x32xbf16>
    %c0_11 = arith.constant 0 : index
    %c0_12 = arith.constant 0 : index
    %11 = vector.load %arg5[%c0_11, %c0_12] : memref<32x32xbf16, #tpu.memory_space<vmem>>, vector<32x32xbf16>
    %cst = arith.constant dense<0.000000e+00> : vector<128x32xf32>
    %12 = tpu.matmul %10, %11, %cst {dimension_numbers = #tpu.dot_dimension_numbers<[1], [0], [0], [1], [0, 0, 1, 1], [], []>} : vector<128x32xbf16>, vector<32x32xbf16>, vector<128x32xf32> -> vector<128x32xf32>
    %c0_13 = arith.constant 0 : index
    %c0_14 = arith.constant 0 : index
    %13 = vector.load %arg6[%c0_13, %c0_14] : memref<1x32xf32, #tpu.memory_space<vmem>>, vector<1x32xf32>
    %14 = vector.broadcast %13 : vector<1x32xf32> to vector<128x32xf32>
    %15 = arith.mulf %12, %14 : vector<128x32xf32>
    %c0_15 = arith.constant 0 : index
    %c0_16 = arith.constant 0 : index
    %16 = vector.load %arg7[%c0_15, %c0_16] : memref<1x32xf32, #tpu.memory_space<vmem>>, vector<1x32xf32>
    %17 = vector.broadcast %16 : vector<1x32xf32> to vector<128x32xf32>
    %18 = arith.addf %15, %17 : vector<128x32xf32>
    %cst_17 = arith.constant 0.000000e+00 : f32
    %19 = vector.broadcast %cst_17 : f32 to vector<128x32xf32>
    %20 = arith.maximumf %18, %19 : vector<128x32xf32>
    %21 = arith.truncf %7 : vector<128x32xf32> to vector<128x32xbf16>
    %c0_18 = arith.constant 0 : index
    %c0_19 = arith.constant 0 : index
    %22 = vector.load %arg8[%c0_18, %c0_19] : memref<32x32xbf16, #tpu.memory_space<vmem>>, vector<32x32xbf16>
    %cst_20 = arith.constant dense<0.000000e+00> : vector<128x32xf32>
    %23 = tpu.matmul %21, %22, %cst_20 {dimension_numbers = #tpu.dot_dimension_numbers<[1], [0], [0], [1], [0, 0, 1, 1], [], []>} : vector<128x32xbf16>, vector<32x32xbf16>, vector<128x32xf32> -> vector<128x32xf32>
    %c0_21 = arith.constant 0 : index
    %c0_22 = arith.constant 0 : index
    %24 = vector.load %arg9[%c0_21, %c0_22] : memref<1x32xf32, #tpu.memory_space<vmem>>, vector<1x32xf32>
    %25 = vector.broadcast %24 : vector<1x32xf32> to vector<128x32xf32>
    %26 = arith.mulf %23, %25 : vector<128x32xf32>
    %c0_23 = arith.constant 0 : index
    %c0_24 = arith.constant 0 : index
    %27 = vector.load %arg10[%c0_23, %c0_24] : memref<1x32xf32, #tpu.memory_space<vmem>>, vector<1x32xf32>
    %28 = vector.broadcast %27 : vector<1x32xf32> to vector<128x32xf32>
    %29 = arith.addf %26, %28 : vector<128x32xf32>
    %cst_25 = arith.constant 0.000000e+00 : f32
    %30 = vector.broadcast %cst_25 : f32 to vector<128x32xf32>
    %31 = arith.maximumf %29, %30 : vector<128x32xf32>
    %32 = arith.addf %20, %31 : vector<128x32xf32>
    %33 = arith.addf %32, %0 : vector<128x32xf32>
    %c0_26 = arith.constant 0 : index
    %c0_27 = arith.constant 0 : index
    %34 = vector.load %arg13[%c0_26, %c0_27] : memref<128x32xf32, #tpu.memory_space<vmem>>, vector<128x32xf32>
    tpu.vector_store %arg13[%c0_26, %c0_27], %33 {strides = array<i32>} : memref<128x32xf32, #tpu.memory_space<vmem>>, vector<128x32xf32>,
    return
  }
  func.func @transform_0(%arg0: i32) -> (i32, i32) {
    %c0_i32 = arith.constant 0 : i32
    %c0_i32_0 = arith.constant 0 : i32
    %c0_i32_1 = arith.constant 0 : i32
    return %c0_i32, %c0_i32_0 : i32, i32
  }
  func.func @transform_1(%arg0: i32) -> (i32, i32) {
    %c0_i32 = arith.constant 0 : i32
    %c0_i32_0 = arith.constant 0 : i32
    %c0_i32_1 = arith.constant 0 : i32
    return %c0_i32, %c0_i32_0 : i32, i32
  }
  func.func @transform_2(%arg0: i32) -> (i32, i32) {
    %c0_i32 = arith.constant 0 : i32
    %c0_i32_0 = arith.constant 0 : i32
    %c0_i32_1 = arith.constant 0 : i32
    return %c0_i32, %c0_i32_0 : i32, i32
  }
  func.func @transform_3(%arg0: i32) -> (i32, i32) {
    %c0_i32 = arith.constant 0 : i32
    %c0_i32_0 = arith.constant 0 : i32
    %c0_i32_1 = arith.constant 0 : i32
    return %c0_i32, %c0_i32_0 : i32, i32
  }
  func.func @transform_4(%arg0: i32) -> (i32, i32) {
    %c0_i32 = arith.constant 0 : i32
    %c0_i32_0 = arith.constant 0 : i32
    %c0_i32_1 = arith.constant 0 : i32
    return %c0_i32, %c0_i32_0 : i32, i32
  }
  func.func @transform_5(%arg0: i32) -> (i32, i32) {
    %c0_i32 = arith.constant 0 : i32
    %c0_i32_0 = arith.constant 0 : i32
    %c0_i32_1 = arith.constant 0 : i32
    return %c0_i32, %c0_i32_0 : i32, i32
  }
  func.func @transform_6(%arg0: i32) -> (i32, i32) {
    %c0_i32 = arith.constant 0 : i32
    %c0_i32_0 = arith.constant 0 : i32
    %c0_i32_1 = arith.constant 0 : i32
    return %c0_i32, %c0_i32_0 : i32, i32
  }
  func.func @transform_7(%arg0: i32) -> (i32, i32) {
    %c0_i32 = arith.constant 0 : i32
    %c0_i32_0 = arith.constant 0 : i32
    %c0_i32_1 = arith.constant 0 : i32
    return %c0_i32, %c0_i32_0 : i32, i32
  }
  func.func @transform_8(%arg0: i32) -> (i32, i32) {
    %c0_i32 = arith.constant 0 : i32
    %c0_i32_0 = arith.constant 0 : i32
    %c0_i32_1 = arith.constant 0 : i32
    return %c0_i32, %c0_i32_0 : i32, i32
  }
  func.func @transform_9(%arg0: i32) -> (i32, i32) {
    %c0_i32 = arith.constant 0 : i32
    %c0_i32_0 = arith.constant 0 : i32
    %c0_i32_1 = arith.constant 0 : i32
    return %c0_i32, %c0_i32_0 : i32, i32
  }
  func.func @transform_10(%arg0: i32) -> (i32, i32) {
    %c0_i32 = arith.constant 0 : i32
    %c0_i32_0 = arith.constant 0 : i32
    %c0_i32_1 = arith.constant 0 : i32
    return %c0_i32, %c0_i32_0 : i32, i32
  }
  func.func @transform_11(%arg0: i32) -> (i32, i32) {
    %c0_i32 = arith.constant 0 : i32
    %c0_i32_0 = arith.constant 0 : i32
    %c0_i32_1 = arith.constant 0 : i32
    return %c0_i32, %c0_i32_0 : i32, i32
  }
  func.func @transform_12(%arg0: i32) -> (i32, i32) {
    %c0_i32 = arith.constant 0 : i32
    %c0_i32_0 = arith.constant 0 : i32
    %c0_i32_1 = arith.constant 0 : i32
    return %c0_i32, %c0_i32_0 : i32, i32
  }
}

module attributes {stable_mosaic.version = 11 : i64} {
  func.func @_conv3x3_kernel(%arg0: i32, %arg1: memref<1x10x10x64xf32, #tpu.memory_space<vmem>>, %arg2: memref<576x64xbf16, #tpu.memory_space<vmem>>, %arg3: memref<1x64xf32, #tpu.memory_space<vmem>>, %arg4: memref<1x64xf32, #tpu.memory_space<vmem>>, %arg5: memref<1x4x4x64xf32, #tpu.memory_space<vmem>>) attributes {dimension_semantics = [#tpu.dimension_semantics<parallel>], iteration_bounds = array<i64: 2>, scalar_prefetch = 0 : i64, scratch_operands = 0 : i64, tpu.core_type = #tpu.core_type<tc>, window_params = [{transform_indices = @transform_0, window_bounds = array<i64: 1, 10, 10, 64>}, {pipeline_mode = #tpu.pipeline_mode<synchronous>, transform_indices = @transform_1, window_bounds = array<i64: 576, 64>}, {pipeline_mode = #tpu.pipeline_mode<synchronous>, transform_indices = @transform_2, window_bounds = array<i64: 1, 64>}, {pipeline_mode = #tpu.pipeline_mode<synchronous>, transform_indices = @transform_3, window_bounds = array<i64: 1, 64>}, {transform_indices = @transform_4, window_bounds = array<i64: 1, 4, 4, 64>}]} {
    %c0 = arith.constant 0 : index
    %c0_0 = arith.constant 0 : index
    %c0_1 = arith.constant 0 : index
    %c0_2 = arith.constant 0 : index
    %0 = vector.load %arg1[%c0, %c0_0, %c0_1, %c0_2] : memref<1x10x10x64xf32, #tpu.memory_space<vmem>>, vector<1x10x10x64xf32>
    %1 = vector.shape_cast %0 : vector<1x10x10x64xf32> to vector<10x10x64xf32>
    %2 = vector.extract_strided_slice %1 {offsets = [0, 0, 0], sizes = [8, 10, 64], strides = [1, 1, 1]} : vector<10x10x64xf32> to vector<8x10x64xf32>
    %3 = vector.extract_strided_slice %1 {offsets = [1, 0, 0], sizes = [8, 10, 64], strides = [1, 1, 1]} : vector<10x10x64xf32> to vector<8x10x64xf32>
    %4 = vector.extract_strided_slice %1 {offsets = [2, 0, 0], sizes = [8, 10, 64], strides = [1, 1, 1]} : vector<10x10x64xf32> to vector<8x10x64xf32>
    %5 = tpu.concatenate %2, %3, %4 in 2 : vector<8x10x64xf32>, vector<8x10x64xf32>, vector<8x10x64xf32> -> vector<8x10x192xf32>
    %6 = vector.extract_strided_slice %5 {offsets = [0, 0, 0], sizes = [8, 8, 192], strides = [1, 1, 1]} : vector<8x10x192xf32> to vector<8x8x192xf32>
    %7 = vector.extract_strided_slice %5 {offsets = [0, 1, 0], sizes = [8, 8, 192], strides = [1, 1, 1]} : vector<8x10x192xf32> to vector<8x8x192xf32>
    %8 = vector.extract_strided_slice %5 {offsets = [0, 2, 0], sizes = [8, 8, 192], strides = [1, 1, 1]} : vector<8x10x192xf32> to vector<8x8x192xf32>
    %9 = tpu.concatenate %6, %7, %8 in 2 : vector<8x8x192xf32>, vector<8x8x192xf32>, vector<8x8x192xf32> -> vector<8x8x576xf32>
    %10 = vector.shape_cast %9 : vector<8x8x576xf32> to vector<64x576xf32>
    %11 = arith.truncf %10 : vector<64x576xf32> to vector<64x576xbf16>
    %c0_3 = arith.constant 0 : index
    %c0_4 = arith.constant 0 : index
    %12 = vector.load %arg2[%c0_3, %c0_4] : memref<576x64xbf16, #tpu.memory_space<vmem>>, vector<576x64xbf16>
    %cst = arith.constant dense<0.000000e+00> : vector<64x64xf32>
    %13 = tpu.matmul %11, %12, %cst {dimension_numbers = #tpu.dot_dimension_numbers<[1], [0], [0], [1], [0, 0, 1, 1], [], []>} : vector<64x576xbf16>, vector<576x64xbf16>, vector<64x64xf32> -> vector<64x64xf32>
    %c0_5 = arith.constant 0 : index
    %c0_6 = arith.constant 0 : index
    %14 = vector.load %arg3[%c0_5, %c0_6] : memref<1x64xf32, #tpu.memory_space<vmem>>, vector<1x64xf32>
    %15 = vector.broadcast %14 : vector<1x64xf32> to vector<64x64xf32>
    %16 = arith.mulf %13, %15 : vector<64x64xf32>
    %c0_7 = arith.constant 0 : index
    %c0_8 = arith.constant 0 : index
    %17 = vector.load %arg4[%c0_7, %c0_8] : memref<1x64xf32, #tpu.memory_space<vmem>>, vector<1x64xf32>
    %18 = vector.broadcast %17 : vector<1x64xf32> to vector<64x64xf32>
    %19 = arith.addf %16, %18 : vector<64x64xf32>
    %cst_9 = arith.constant 0.000000e+00 : f32
    %20 = vector.broadcast %cst_9 : f32 to vector<64x64xf32>
    %21 = arith.maximumf %19, %20 : vector<64x64xf32>
    %22 = vector.shape_cast %21 : vector<64x64xf32> to vector<8x8x64xf32>
    %23 = vector.shape_cast %22 : vector<8x8x64xf32> to vector<8x4x2x64xf32>
    %cst_10 = arith.constant dense<0xFF800000> : vector<8x4x64xf32>
    %24 = vector.multi_reduction <maximumf>, %23, %cst_10 [2] : vector<8x4x2x64xf32> to vector<8x4x64xf32>
    %25 = vector.shape_cast %24 : vector<8x4x64xf32> to vector<4x2x4x64xf32>
    %26 = vector.extract_strided_slice %25 {offsets = [0, 0, 0, 0], sizes = [4, 1, 4, 64], strides = [1, 1, 1, 1]} : vector<4x2x4x64xf32> to vector<4x1x4x64xf32>
    %27 = vector.shape_cast %26 : vector<4x1x4x64xf32> to vector<4x4x64xf32>
    %28 = vector.extract_strided_slice %25 {offsets = [0, 1, 0, 0], sizes = [4, 1, 4, 64], strides = [1, 1, 1, 1]} : vector<4x2x4x64xf32> to vector<4x1x4x64xf32>
    %29 = vector.shape_cast %28 : vector<4x1x4x64xf32> to vector<4x4x64xf32>
    %30 = arith.maximumf %27, %29 : vector<4x4x64xf32>
    %c0_11 = arith.constant 0 : index
    %c0_12 = arith.constant 0 : index
    %c0_13 = arith.constant 0 : index
    %c0_14 = arith.constant 0 : index
    %31 = vector.load %arg5[%c0_11, %c0_12, %c0_13, %c0_14] : memref<1x4x4x64xf32, #tpu.memory_space<vmem>>, vector<1x4x4x64xf32>
    %32 = vector.shape_cast %31 : vector<1x4x4x64xf32> to vector<4x4x64xf32>
    %33 = vector.shape_cast %30 : vector<4x4x64xf32> to vector<1x4x4x64xf32>
    tpu.vector_store %arg5[%c0_11, %c0_12, %c0_13, %c0_14], %33 {strides = array<i32>} : memref<1x4x4x64xf32, #tpu.memory_space<vmem>>, vector<1x4x4x64xf32>,
    return
  }
  func.func @transform_0(%arg0: i32) -> (i32, i32, i32, i32) {
    %c0_i32 = arith.constant 0 : i32
    %c0_i32_0 = arith.constant 0 : i32
    %c0_i32_1 = arith.constant 0 : i32
    %c0_i32_2 = arith.constant 0 : i32
    return %arg0, %c0_i32, %c0_i32_0, %c0_i32_1 : i32, i32, i32, i32
  }
  func.func @transform_1(%arg0: i32) -> (i32, i32) {
    %c0_i32 = arith.constant 0 : i32
    %c0_i32_0 = arith.constant 0 : i32
    %c0_i32_1 = arith.constant 0 : i32
    return %c0_i32, %c0_i32_0 : i32, i32
  }
  func.func @transform_2(%arg0: i32) -> (i32, i32) {
    %c0_i32 = arith.constant 0 : i32
    %c0_i32_0 = arith.constant 0 : i32
    %c0_i32_1 = arith.constant 0 : i32
    return %c0_i32, %c0_i32_0 : i32, i32
  }
  func.func @transform_3(%arg0: i32) -> (i32, i32) {
    %c0_i32 = arith.constant 0 : i32
    %c0_i32_0 = arith.constant 0 : i32
    %c0_i32_1 = arith.constant 0 : i32
    return %c0_i32, %c0_i32_0 : i32, i32
  }
  func.func @transform_4(%arg0: i32) -> (i32, i32, i32, i32) {
    %c0_i32 = arith.constant 0 : i32
    %c0_i32_0 = arith.constant 0 : i32
    %c0_i32_1 = arith.constant 0 : i32
    %c0_i32_2 = arith.constant 0 : i32
    return %arg0, %c0_i32, %c0_i32_0, %c0_i32_1 : i32, i32, i32, i32
  }
}

module attributes {stable_mosaic.version = 11 : i64} {
  func.func @_upsample_kernel(%arg0: i32, %arg1: memref<1x4x4x64xf32, #tpu.memory_space<vmem>>, %arg2: memref<64x16xf32, #tpu.memory_space<vmem>>, %arg3: memref<1x8x8x64xf32, #tpu.memory_space<vmem>>) attributes {dimension_semantics = [#tpu.dimension_semantics<parallel>], iteration_bounds = array<i64: 2>, scalar_prefetch = 0 : i64, scratch_operands = 0 : i64, tpu.core_type = #tpu.core_type<tc>, window_params = [{transform_indices = @transform_0, window_bounds = array<i64: 1, 4, 4, 64>}, {pipeline_mode = #tpu.pipeline_mode<synchronous>, transform_indices = @transform_1, window_bounds = array<i64: 64, 16>}, {transform_indices = @transform_2, window_bounds = array<i64: 1, 8, 8, 64>}]} {
    %c0 = arith.constant 0 : index
    %c0_0 = arith.constant 0 : index
    %c0_1 = arith.constant 0 : index
    %c0_2 = arith.constant 0 : index
    %0 = vector.load %arg1[%c0, %c0_0, %c0_1, %c0_2] : memref<1x4x4x64xf32, #tpu.memory_space<vmem>>, vector<1x4x4x64xf32>
    %1 = vector.shape_cast %0 : vector<1x4x4x64xf32> to vector<4x4x64xf32>
    %2 = vector.shape_cast %1 : vector<4x4x64xf32> to vector<16x64xf32>
    %c0_3 = arith.constant 0 : index
    %c0_4 = arith.constant 0 : index
    %3 = vector.load %arg2[%c0_3, %c0_4] : memref<64x16xf32, #tpu.memory_space<vmem>>, vector<64x16xf32>
    %cst = arith.constant dense<0.000000e+00> : vector<64x64xf32>
    %4 = tpu.matmul %3, %2, %cst {dimension_numbers = #tpu.dot_dimension_numbers<[1], [0], [0], [1], [0, 0, 1, 1], [], []>} : vector<64x16xf32>, vector<16x64xf32>, vector<64x64xf32> -> vector<64x64xf32>
    %5 = vector.shape_cast %4 : vector<64x64xf32> to vector<8x8x64xf32>
    %c0_5 = arith.constant 0 : index
    %c0_6 = arith.constant 0 : index
    %c0_7 = arith.constant 0 : index
    %c0_8 = arith.constant 0 : index
    %6 = vector.load %arg3[%c0_5, %c0_6, %c0_7, %c0_8] : memref<1x8x8x64xf32, #tpu.memory_space<vmem>>, vector<1x8x8x64xf32>
    %7 = vector.shape_cast %6 : vector<1x8x8x64xf32> to vector<8x8x64xf32>
    %8 = vector.shape_cast %5 : vector<8x8x64xf32> to vector<1x8x8x64xf32>
    tpu.vector_store %arg3[%c0_5, %c0_6, %c0_7, %c0_8], %8 {strides = array<i32>} : memref<1x8x8x64xf32, #tpu.memory_space<vmem>>, vector<1x8x8x64xf32>,
    return
  }
  func.func @transform_0(%arg0: i32) -> (i32, i32, i32, i32) {
    %c0_i32 = arith.constant 0 : i32
    %c0_i32_0 = arith.constant 0 : i32
    %c0_i32_1 = arith.constant 0 : i32
    %c0_i32_2 = arith.constant 0 : i32
    return %arg0, %c0_i32, %c0_i32_0, %c0_i32_1 : i32, i32, i32, i32
  }
  func.func @transform_1(%arg0: i32) -> (i32, i32) {
    %c0_i32 = arith.constant 0 : i32
    %c0_i32_0 = arith.constant 0 : i32
    %c0_i32_1 = arith.constant 0 : i32
    return %c0_i32, %c0_i32_0 : i32, i32
  }
  func.func @transform_2(%arg0: i32) -> (i32, i32, i32, i32) {
    %c0_i32 = arith.constant 0 : i32
    %c0_i32_0 = arith.constant 0 : i32
    %c0_i32_1 = arith.constant 0 : i32
    %c0_i32_2 = arith.constant 0 : i32
    return %arg0, %c0_i32, %c0_i32_0, %c0_i32_1 : i32, i32, i32, i32
  }
}

module attributes {stable_mosaic.version = 11 : i64} {
  func.func @_conv3x3_kernel(%arg0: i32, %arg1: memref<1x10x10x64xf32, #tpu.memory_space<vmem>>, %arg2: memref<576x32xbf16, #tpu.memory_space<vmem>>, %arg3: memref<1x32xf32, #tpu.memory_space<vmem>>, %arg4: memref<1x32xf32, #tpu.memory_space<vmem>>, %arg5: memref<1x8x8x32xf32, #tpu.memory_space<vmem>>) attributes {dimension_semantics = [#tpu.dimension_semantics<parallel>], iteration_bounds = array<i64: 2>, scalar_prefetch = 0 : i64, scratch_operands = 0 : i64, tpu.core_type = #tpu.core_type<tc>, window_params = [{transform_indices = @transform_0, window_bounds = array<i64: 1, 10, 10, 64>}, {pipeline_mode = #tpu.pipeline_mode<synchronous>, transform_indices = @transform_1, window_bounds = array<i64: 576, 32>}, {pipeline_mode = #tpu.pipeline_mode<synchronous>, transform_indices = @transform_2, window_bounds = array<i64: 1, 32>}, {pipeline_mode = #tpu.pipeline_mode<synchronous>, transform_indices = @transform_3, window_bounds = array<i64: 1, 32>}, {transform_indices = @transform_4, window_bounds = array<i64: 1, 8, 8, 32>}]} {
    %c0 = arith.constant 0 : index
    %c0_0 = arith.constant 0 : index
    %c0_1 = arith.constant 0 : index
    %c0_2 = arith.constant 0 : index
    %0 = vector.load %arg1[%c0, %c0_0, %c0_1, %c0_2] : memref<1x10x10x64xf32, #tpu.memory_space<vmem>>, vector<1x10x10x64xf32>
    %1 = vector.shape_cast %0 : vector<1x10x10x64xf32> to vector<10x10x64xf32>
    %2 = vector.extract_strided_slice %1 {offsets = [0, 0, 0], sizes = [8, 10, 64], strides = [1, 1, 1]} : vector<10x10x64xf32> to vector<8x10x64xf32>
    %3 = vector.extract_strided_slice %1 {offsets = [1, 0, 0], sizes = [8, 10, 64], strides = [1, 1, 1]} : vector<10x10x64xf32> to vector<8x10x64xf32>
    %4 = vector.extract_strided_slice %1 {offsets = [2, 0, 0], sizes = [8, 10, 64], strides = [1, 1, 1]} : vector<10x10x64xf32> to vector<8x10x64xf32>
    %5 = tpu.concatenate %2, %3, %4 in 2 : vector<8x10x64xf32>, vector<8x10x64xf32>, vector<8x10x64xf32> -> vector<8x10x192xf32>
    %6 = vector.extract_strided_slice %5 {offsets = [0, 0, 0], sizes = [8, 8, 192], strides = [1, 1, 1]} : vector<8x10x192xf32> to vector<8x8x192xf32>
    %7 = vector.extract_strided_slice %5 {offsets = [0, 1, 0], sizes = [8, 8, 192], strides = [1, 1, 1]} : vector<8x10x192xf32> to vector<8x8x192xf32>
    %8 = vector.extract_strided_slice %5 {offsets = [0, 2, 0], sizes = [8, 8, 192], strides = [1, 1, 1]} : vector<8x10x192xf32> to vector<8x8x192xf32>
    %9 = tpu.concatenate %6, %7, %8 in 2 : vector<8x8x192xf32>, vector<8x8x192xf32>, vector<8x8x192xf32> -> vector<8x8x576xf32>
    %10 = vector.shape_cast %9 : vector<8x8x576xf32> to vector<64x576xf32>
    %11 = arith.truncf %10 : vector<64x576xf32> to vector<64x576xbf16>
    %c0_3 = arith.constant 0 : index
    %c0_4 = arith.constant 0 : index
    %12 = vector.load %arg2[%c0_3, %c0_4] : memref<576x32xbf16, #tpu.memory_space<vmem>>, vector<576x32xbf16>
    %cst = arith.constant dense<0.000000e+00> : vector<64x32xf32>
    %13 = tpu.matmul %11, %12, %cst {dimension_numbers = #tpu.dot_dimension_numbers<[1], [0], [0], [1], [0, 0, 1, 1], [], []>} : vector<64x576xbf16>, vector<576x32xbf16>, vector<64x32xf32> -> vector<64x32xf32>
    %c0_5 = arith.constant 0 : index
    %c0_6 = arith.constant 0 : index
    %14 = vector.load %arg3[%c0_5, %c0_6] : memref<1x32xf32, #tpu.memory_space<vmem>>, vector<1x32xf32>
    %15 = vector.broadcast %14 : vector<1x32xf32> to vector<64x32xf32>
    %16 = arith.mulf %13, %15 : vector<64x32xf32>
    %c0_7 = arith.constant 0 : index
    %c0_8 = arith.constant 0 : index
    %17 = vector.load %arg4[%c0_7, %c0_8] : memref<1x32xf32, #tpu.memory_space<vmem>>, vector<1x32xf32>
    %18 = vector.broadcast %17 : vector<1x32xf32> to vector<64x32xf32>
    %19 = arith.addf %16, %18 : vector<64x32xf32>
    %cst_9 = arith.constant 0.000000e+00 : f32
    %20 = vector.broadcast %cst_9 : f32 to vector<64x32xf32>
    %21 = arith.maximumf %19, %20 : vector<64x32xf32>
    %22 = vector.shape_cast %21 : vector<64x32xf32> to vector<8x8x32xf32>
    %c0_10 = arith.constant 0 : index
    %c0_11 = arith.constant 0 : index
    %c0_12 = arith.constant 0 : index
    %c0_13 = arith.constant 0 : index
    %23 = vector.load %arg5[%c0_10, %c0_11, %c0_12, %c0_13] : memref<1x8x8x32xf32, #tpu.memory_space<vmem>>, vector<1x8x8x32xf32>
    %24 = vector.shape_cast %23 : vector<1x8x8x32xf32> to vector<8x8x32xf32>
    %25 = vector.shape_cast %22 : vector<8x8x32xf32> to vector<1x8x8x32xf32>
    tpu.vector_store %arg5[%c0_10, %c0_11, %c0_12, %c0_13], %25 {strides = array<i32>} : memref<1x8x8x32xf32, #tpu.memory_space<vmem>>, vector<1x8x8x32xf32>,
    return
  }
  func.func @transform_0(%arg0: i32) -> (i32, i32, i32, i32) {
    %c0_i32 = arith.constant 0 : i32
    %c0_i32_0 = arith.constant 0 : i32
    %c0_i32_1 = arith.constant 0 : i32
    %c0_i32_2 = arith.constant 0 : i32
    return %arg0, %c0_i32, %c0_i32_0, %c0_i32_1 : i32, i32, i32, i32
  }
  func.func @transform_1(%arg0: i32) -> (i32, i32) {
    %c0_i32 = arith.constant 0 : i32
    %c0_i32_0 = arith.constant 0 : i32
    %c0_i32_1 = arith.constant 0 : i32
    return %c0_i32, %c0_i32_0 : i32, i32
  }
  func.func @transform_2(%arg0: i32) -> (i32, i32) {
    %c0_i32 = arith.constant 0 : i32
    %c0_i32_0 = arith.constant 0 : i32
    %c0_i32_1 = arith.constant 0 : i32
    return %c0_i32, %c0_i32_0 : i32, i32
  }
  func.func @transform_3(%arg0: i32) -> (i32, i32) {
    %c0_i32 = arith.constant 0 : i32
    %c0_i32_0 = arith.constant 0 : i32
    %c0_i32_1 = arith.constant 0 : i32
    return %c0_i32, %c0_i32_0 : i32, i32
  }
  func.func @transform_4(%arg0: i32) -> (i32, i32, i32, i32) {
    %c0_i32 = arith.constant 0 : i32
    %c0_i32_0 = arith.constant 0 : i32
    %c0_i32_1 = arith.constant 0 : i32
    %c0_i32_2 = arith.constant 0 : i32
    return %arg0, %c0_i32, %c0_i32_0, %c0_i32_1 : i32, i32, i32, i32
  }
}

module attributes {stable_mosaic.version = 11 : i64} {
  func.func @_fc_kernel(%arg0: i32, %arg1: memref<2x1024xf32, #tpu.memory_space<vmem>>, %arg2: memref<1024x128xbf16, #tpu.memory_space<vmem>>, %arg3: memref<1x128xf32, #tpu.memory_space<vmem>>, %arg4: memref<1x128xf32, #tpu.memory_space<vmem>>, %arg5: memref<128x128xbf16, #tpu.memory_space<vmem>>, %arg6: memref<1x128xf32, #tpu.memory_space<vmem>>, %arg7: memref<2x128xf32, #tpu.memory_space<vmem>>) attributes {dimension_semantics = [#tpu.dimension_semantics<arbitrary>], iteration_bounds = array<i64: 1>, scalar_prefetch = 0 : i64, scratch_operands = 0 : i64, tpu.core_type = #tpu.core_type<tc>, window_params = [{pipeline_mode = #tpu.pipeline_mode<synchronous>, transform_indices = @transform_0, window_bounds = array<i64: 2, 1024>}, {pipeline_mode = #tpu.pipeline_mode<synchronous>, transform_indices = @transform_1, window_bounds = array<i64: 1024, 128>}, {pipeline_mode = #tpu.pipeline_mode<synchronous>, transform_indices = @transform_2, window_bounds = array<i64: 1, 128>}, {pipeline_mode = #tpu.pipeline_mode<synchronous>, transform_indices = @transform_3, window_bounds = array<i64: 1, 128>}, {pipeline_mode = #tpu.pipeline_mode<synchronous>, transform_indices = @transform_4, window_bounds = array<i64: 128, 128>}, {pipeline_mode = #tpu.pipeline_mode<synchronous>, transform_indices = @transform_5, window_bounds = array<i64: 1, 128>}, {pipeline_mode = #tpu.pipeline_mode<synchronous>, transform_indices = @transform_6, window_bounds = array<i64: 2, 128>}]} {
    %c0 = arith.constant 0 : index
    %c0_0 = arith.constant 0 : index
    %0 = vector.load %arg1[%c0, %c0_0] : memref<2x1024xf32, #tpu.memory_space<vmem>>, vector<2x1024xf32>
    %1 = arith.truncf %0 : vector<2x1024xf32> to vector<2x1024xbf16>
    %c0_1 = arith.constant 0 : index
    %c0_2 = arith.constant 0 : index
    %2 = vector.load %arg2[%c0_1, %c0_2] : memref<1024x128xbf16, #tpu.memory_space<vmem>>, vector<1024x128xbf16>
    %cst = arith.constant dense<0.000000e+00> : vector<2x128xf32>
    %3 = tpu.matmul %1, %2, %cst {dimension_numbers = #tpu.dot_dimension_numbers<[1], [0], [0], [1], [0, 0, 1, 1], [], []>} : vector<2x1024xbf16>, vector<1024x128xbf16>, vector<2x128xf32> -> vector<2x128xf32>
    %c0_3 = arith.constant 0 : index
    %c0_4 = arith.constant 0 : index
    %4 = vector.load %arg3[%c0_3, %c0_4] : memref<1x128xf32, #tpu.memory_space<vmem>>, vector<1x128xf32>
    %5 = vector.broadcast %4 : vector<1x128xf32> to vector<2x128xf32>
    %6 = arith.mulf %3, %5 : vector<2x128xf32>
    %c0_5 = arith.constant 0 : index
    %c0_6 = arith.constant 0 : index
    %7 = vector.load %arg4[%c0_5, %c0_6] : memref<1x128xf32, #tpu.memory_space<vmem>>, vector<1x128xf32>
    %8 = vector.broadcast %7 : vector<1x128xf32> to vector<2x128xf32>
    %9 = arith.addf %6, %8 : vector<2x128xf32>
    %cst_7 = arith.constant 0.000000e+00 : f32
    %10 = vector.broadcast %cst_7 : f32 to vector<2x128xf32>
    %11 = arith.maximumf %9, %10 : vector<2x128xf32>
    %12 = arith.truncf %11 : vector<2x128xf32> to vector<2x128xbf16>
    %c0_8 = arith.constant 0 : index
    %c0_9 = arith.constant 0 : index
    %13 = vector.load %arg5[%c0_8, %c0_9] : memref<128x128xbf16, #tpu.memory_space<vmem>>, vector<128x128xbf16>
    %cst_10 = arith.constant dense<0.000000e+00> : vector<2x128xf32>
    %14 = tpu.matmul %12, %13, %cst_10 {dimension_numbers = #tpu.dot_dimension_numbers<[1], [0], [0], [1], [0, 0, 1, 1], [], []>} : vector<2x128xbf16>, vector<128x128xbf16>, vector<2x128xf32> -> vector<2x128xf32>
    %c0_11 = arith.constant 0 : index
    %c0_12 = arith.constant 0 : index
    %15 = vector.load %arg6[%c0_11, %c0_12] : memref<1x128xf32, #tpu.memory_space<vmem>>, vector<1x128xf32>
    %16 = vector.broadcast %15 : vector<1x128xf32> to vector<2x128xf32>
    %17 = arith.addf %14, %16 : vector<2x128xf32>
    %c0_13 = arith.constant 0 : index
    %c0_14 = arith.constant 0 : index
    %18 = vector.load %arg7[%c0_13, %c0_14] : memref<2x128xf32, #tpu.memory_space<vmem>>, vector<2x128xf32>
    tpu.vector_store %arg7[%c0_13, %c0_14], %17 {strides = array<i32>} : memref<2x128xf32, #tpu.memory_space<vmem>>, vector<2x128xf32>,
    return
  }
  func.func @transform_0(%arg0: i32) -> (i32, i32) {
    %c0_i32 = arith.constant 0 : i32
    %c0_i32_0 = arith.constant 0 : i32
    %c0_i32_1 = arith.constant 0 : i32
    return %c0_i32, %c0_i32_0 : i32, i32
  }
  func.func @transform_1(%arg0: i32) -> (i32, i32) {
    %c0_i32 = arith.constant 0 : i32
    %c0_i32_0 = arith.constant 0 : i32
    %c0_i32_1 = arith.constant 0 : i32
    return %c0_i32, %c0_i32_0 : i32, i32
  }
  func.func @transform_2(%arg0: i32) -> (i32, i32) {
    %c0_i32 = arith.constant 0 : i32
    %c0_i32_0 = arith.constant 0 : i32
    %c0_i32_1 = arith.constant 0 : i32
    return %c0_i32, %c0_i32_0 : i32, i32
  }
  func.func @transform_3(%arg0: i32) -> (i32, i32) {
    %c0_i32 = arith.constant 0 : i32
    %c0_i32_0 = arith.constant 0 : i32
    %c0_i32_1 = arith.constant 0 : i32
    return %c0_i32, %c0_i32_0 : i32, i32
  }
  func.func @transform_4(%arg0: i32) -> (i32, i32) {
    %c0_i32 = arith.constant 0 : i32
    %c0_i32_0 = arith.constant 0 : i32
    %c0_i32_1 = arith.constant 0 : i32
    return %c0_i32, %c0_i32_0 : i32, i32
  }
  func.func @transform_5(%arg0: i32) -> (i32, i32) {
    %c0_i32 = arith.constant 0 : i32
    %c0_i32_0 = arith.constant 0 : i32
    %c0_i32_1 = arith.constant 0 : i32
    return %c0_i32, %c0_i32_0 : i32, i32
  }
  func.func @transform_6(%arg0: i32) -> (i32, i32) {
    %c0_i32 = arith.constant 0 : i32
    %c0_i32_0 = arith.constant 0 : i32
    %c0_i32_1 = arith.constant 0 : i32
    return %c0_i32, %c0_i32_0 : i32, i32
  }
}

module attributes {stable_mosaic.version = 11 : i64} {
  func.func @_conv3x3_kernel(%arg0: i32, %arg1: memref<1x10x10x32xf32, #tpu.memory_space<vmem>>, %arg2: memref<288x32xbf16, #tpu.memory_space<vmem>>, %arg3: memref<1x32xf32, #tpu.memory_space<vmem>>, %arg4: memref<1x32xf32, #tpu.memory_space<vmem>>, %arg5: memref<1x8x8x32xf32, #tpu.memory_space<vmem>>) attributes {dimension_semantics = [#tpu.dimension_semantics<parallel>], iteration_bounds = array<i64: 2>, scalar_prefetch = 0 : i64, scratch_operands = 0 : i64, tpu.core_type = #tpu.core_type<tc>, window_params = [{transform_indices = @transform_0, window_bounds = array<i64: 1, 10, 10, 32>}, {pipeline_mode = #tpu.pipeline_mode<synchronous>, transform_indices = @transform_1, window_bounds = array<i64: 288, 32>}, {pipeline_mode = #tpu.pipeline_mode<synchronous>, transform_indices = @transform_2, window_bounds = array<i64: 1, 32>}, {pipeline_mode = #tpu.pipeline_mode<synchronous>, transform_indices = @transform_3, window_bounds = array<i64: 1, 32>}, {transform_indices = @transform_4, window_bounds = array<i64: 1, 8, 8, 32>}]} {
    %c0 = arith.constant 0 : index
    %c0_0 = arith.constant 0 : index
    %c0_1 = arith.constant 0 : index
    %c0_2 = arith.constant 0 : index
    %0 = vector.load %arg1[%c0, %c0_0, %c0_1, %c0_2] : memref<1x10x10x32xf32, #tpu.memory_space<vmem>>, vector<1x10x10x32xf32>
    %1 = vector.shape_cast %0 : vector<1x10x10x32xf32> to vector<10x10x32xf32>
    %2 = vector.extract_strided_slice %1 {offsets = [0, 0, 0], sizes = [8, 10, 32], strides = [1, 1, 1]} : vector<10x10x32xf32> to vector<8x10x32xf32>
    %3 = vector.extract_strided_slice %1 {offsets = [1, 0, 0], sizes = [8, 10, 32], strides = [1, 1, 1]} : vector<10x10x32xf32> to vector<8x10x32xf32>
    %4 = vector.extract_strided_slice %1 {offsets = [2, 0, 0], sizes = [8, 10, 32], strides = [1, 1, 1]} : vector<10x10x32xf32> to vector<8x10x32xf32>
    %5 = tpu.concatenate %2, %3, %4 in 2 : vector<8x10x32xf32>, vector<8x10x32xf32>, vector<8x10x32xf32> -> vector<8x10x96xf32>
    %6 = vector.extract_strided_slice %5 {offsets = [0, 0, 0], sizes = [8, 8, 96], strides = [1, 1, 1]} : vector<8x10x96xf32> to vector<8x8x96xf32>
    %7 = vector.extract_strided_slice %5 {offsets = [0, 1, 0], sizes = [8, 8, 96], strides = [1, 1, 1]} : vector<8x10x96xf32> to vector<8x8x96xf32>
    %8 = vector.extract_strided_slice %5 {offsets = [0, 2, 0], sizes = [8, 8, 96], strides = [1, 1, 1]} : vector<8x10x96xf32> to vector<8x8x96xf32>
    %9 = tpu.concatenate %6, %7, %8 in 2 : vector<8x8x96xf32>, vector<8x8x96xf32>, vector<8x8x96xf32> -> vector<8x8x288xf32>
    %10 = vector.shape_cast %9 : vector<8x8x288xf32> to vector<64x288xf32>
    %11 = arith.truncf %10 : vector<64x288xf32> to vector<64x288xbf16>
    %c0_3 = arith.constant 0 : index
    %c0_4 = arith.constant 0 : index
    %12 = vector.load %arg2[%c0_3, %c0_4] : memref<288x32xbf16, #tpu.memory_space<vmem>>, vector<288x32xbf16>
    %cst = arith.constant dense<0.000000e+00> : vector<64x32xf32>
    %13 = tpu.matmul %11, %12, %cst {dimension_numbers = #tpu.dot_dimension_numbers<[1], [0], [0], [1], [0, 0, 1, 1], [], []>} : vector<64x288xbf16>, vector<288x32xbf16>, vector<64x32xf32> -> vector<64x32xf32>
    %c0_5 = arith.constant 0 : index
    %c0_6 = arith.constant 0 : index
    %14 = vector.load %arg3[%c0_5, %c0_6] : memref<1x32xf32, #tpu.memory_space<vmem>>, vector<1x32xf32>
    %15 = vector.broadcast %14 : vector<1x32xf32> to vector<64x32xf32>
    %16 = arith.mulf %13, %15 : vector<64x32xf32>
    %c0_7 = arith.constant 0 : index
    %c0_8 = arith.constant 0 : index
    %17 = vector.load %arg4[%c0_7, %c0_8] : memref<1x32xf32, #tpu.memory_space<vmem>>, vector<1x32xf32>
    %18 = vector.broadcast %17 : vector<1x32xf32> to vector<64x32xf32>
    %19 = arith.addf %16, %18 : vector<64x32xf32>
    %cst_9 = arith.constant 0.000000e+00 : f32
    %20 = vector.broadcast %cst_9 : f32 to vector<64x32xf32>
    %21 = arith.maximumf %19, %20 : vector<64x32xf32>
    %22 = vector.shape_cast %21 : vector<64x32xf32> to vector<8x8x32xf32>
    %c0_10 = arith.constant 0 : index
    %c0_11 = arith.constant 0 : index
    %c0_12 = arith.constant 0 : index
    %c0_13 = arith.constant 0 : index
    %23 = vector.load %arg5[%c0_10, %c0_11, %c0_12, %c0_13] : memref<1x8x8x32xf32, #tpu.memory_space<vmem>>, vector<1x8x8x32xf32>
    %24 = vector.shape_cast %23 : vector<1x8x8x32xf32> to vector<8x8x32xf32>
    %25 = vector.shape_cast %22 : vector<8x8x32xf32> to vector<1x8x8x32xf32>
    tpu.vector_store %arg5[%c0_10, %c0_11, %c0_12, %c0_13], %25 {strides = array<i32>} : memref<1x8x8x32xf32, #tpu.memory_space<vmem>>, vector<1x8x8x32xf32>,
    return
  }
  func.func @transform_0(%arg0: i32) -> (i32, i32, i32, i32) {
    %c0_i32 = arith.constant 0 : i32
    %c0_i32_0 = arith.constant 0 : i32
    %c0_i32_1 = arith.constant 0 : i32
    %c0_i32_2 = arith.constant 0 : i32
    return %arg0, %c0_i32, %c0_i32_0, %c0_i32_1 : i32, i32, i32, i32
  }
  func.func @transform_1(%arg0: i32) -> (i32, i32) {
    %c0_i32 = arith.constant 0 : i32
    %c0_i32_0 = arith.constant 0 : i32
    %c0_i32_1 = arith.constant 0 : i32
    return %c0_i32, %c0_i32_0 : i32, i32
  }
  func.func @transform_2(%arg0: i32) -> (i32, i32) {
    %c0_i32 = arith.constant 0 : i32
    %c0_i32_0 = arith.constant 0 : i32
    %c0_i32_1 = arith.constant 0 : i32
    return %c0_i32, %c0_i32_0 : i32, i32
  }
  func.func @transform_3(%arg0: i32) -> (i32, i32) {
    %c0_i32 = arith.constant 0 : i32
    %c0_i32_0 = arith.constant 0 : i32
    %c0_i32_1 = arith.constant 0 : i32
    return %c0_i32, %c0_i32_0 : i32, i32
  }
  func.func @transform_4(%arg0: i32) -> (i32, i32, i32, i32) {
    %c0_i32 = arith.constant 0 : i32
    %c0_i32_0 = arith.constant 0 : i32
    %c0_i32_1 = arith.constant 0 : i32
    %c0_i32_2 = arith.constant 0 : i32
    return %arg0, %c0_i32, %c0_i32_0, %c0_i32_1 : i32, i32, i32, i32
  }
}

</mosaic_0001>

<llo_original>
// kernel: collab_forward.8
$region0: #{collab_forward.8}
  #allocation0 [shape = 'u32[]', space=smem, size = 0x4, offset = 0x4, fixed_abs, tag = 'smem constant byte address 0x4 - core index']
  #allocation1 [shape = 'u32[144,128]{1,0:T(1,128)}', space=vmem, size = 0x12000, scoped, tag = 'internal scratch']
  %s0 = inlined_call_operand.vmem [shape: f32[2,10,10,32], index: 0, kind: input, shape index: {}]
  %s1 = inlined_call_operand.vmem [shape: bf16[288,64], index: 1, kind: input, shape index: {}]
  %s2 = inlined_call_operand.vmem [shape: f32[1,64], index: 2, kind: input, shape index: {}]
  %s3 = inlined_call_operand.vmem [shape: f32[1,64], index: 3, kind: input, shape index: {}]
  %s4 = inlined_call_operand.vmem [shape: f32[2,8,8,64], index: 4, kind: output, shape index: {}]
  %s5 = sld [smem:[#allocation0]]
  $region49: #{collab_forward.8} parent=0
    _
  %s7 = ssub.s32 1, %s5
  %s8 = scalar_select 0, %s7, %s5
  loop: start=0, step=1, limit=4
  $region2: #{collab_forward.8} parent=0 // loop_pre_header
    _
  $region3: #{collab_forward.8} parent=0 // loop_header
    %s10 = sphi 0, %s14
    %p11 = scmp.ge.s32.totalorder %s10, 4
    %s20 = sphi 0, %s22
    %s23 = sphi 0, %s20
    %s24 = sphi 0, %s23
    %s40 = sphi 0, %s24
    %s44 = sphi 0, %s44
    %s46 = sphi 0, %s44
    %s47 = sphi 0, %s46
    %s61 = sphi 0, %s47
    %s65 = sphi 0, %s65
    %s67 = sphi 0, %s65
    %s68 = sphi 0, %s67
    %s82 = sphi 0, %s68
    %s86 = sphi 0, %s86
    %s88 = sphi 0, %s86
    %s89 = sphi 0, %s88
    %s103 = sphi 0, %s89
    %s109 = sphi 0, %s111
    %s112 = sphi 0, %s109
    %s113 = sphi 0, %s112
    %s129 = sphi 0, %s113
  $region4: #{collab_forward.8} parent=0 // loop_header_branch
    %13 = sbr.rel (%p11) target = $region8
  $region5: #{collab_forward.8} parent=0 // loop_body
    %s15 = ssub.s32 %s10, 1
    %s16 = ssub.s32 %s10, 2
    %s17 = sadd.s32 %s10, 1
    %s18 = ssub.s32 %s10, %s17
    %p19 = scmp.eq.s32.totalorder %s18, 0
    %s21 = sadd.s32 %s20, 1
    %s22 = scalar_select %p19, %s20, %s21
    %p25 = pneg %p19
    %p26 = scmp.eq.s32.totalorder %s10, 1
    %p27 = por %p25, %p26
    %p28 = scmp.ne.s32.totalorder %s20, %s23
    %p29 = scmp.eq.s32.totalorder %s10, 0
    %p30 = por %p28, %p29
    %p31 = scmp.ne.s32.totalorder %s20, %s23
    %p32 = scmp.eq.s32.totalorder %s15, 1
    %p33 = por %p31, %p32
    %p34 = scmp.ne.s32.totalorder %s23, %s24
    %p35 = scmp.eq.s32.totalorder %s15, 0
    %p36 = por %p34, %p35
    %p37 = scmp.ne.s32.totalorder %s23, %s24
    %p38 = scmp.eq.s32.totalorder %s16, 1
    %p39 = por %p37, %p38
    %p41 = scmp.ne.s32.totalorder %s24, %s40
    %p42 = scmp.eq.s32.totalorder %s16, 0
    %p43 = por %p41, %p42
    %s45 = sadd.s32 %s44, 1
    %p48 = scmp.eq.s32.totalorder %s10, 1
    %p49 = scmp.ne.s32.totalorder %s44, %s46
    %p50 = scmp.eq.s32.totalorder %s10, 0
    %p51 = por %p49, %p50
    %p52 = scmp.ne.s32.totalorder %s44, %s46
    %p53 = scmp.eq.s32.totalorder %s15, 1
    %p54 = por %p52, %p53
    %p55 = scmp.ne.s32.totalorder %s46, %s47
    %p56 = scmp.eq.s32.totalorder %s15, 0
    %p57 = por %p55, %p56
    %p58 = scmp.ne.s32.totalorder %s46, %s47
    %p59 = scmp.eq.s32.totalorder %s16, 1
    %p60 = por %p58, %p59
    %p62 = scmp.ne.s32.totalorder %s47, %s61
    %p63 = scmp.eq.s32.totalorder %s16, 0
    %p64 = por %p62, %p63
    %s66 = sadd.s32 %s65, 1
    %p69 = scmp.eq.s32.totalorder %s10, 1
    %p70 = scmp.ne.s32.totalorder %s65, %s67
    %p71 = scmp.eq.s32.totalorder %s10, 0
    %p72 = por %p70, %p71
    %p73 = scmp.ne.s32.totalorder %s65, %s67
    %p74 = scmp.eq.s32.totalorder %s15, 1
    %p75 = por %p73, %p74
    %p76 = scmp.ne.s32.totalorder %s67, %s68
    %p77 = scmp.eq.s32.totalorder %s15, 0
    %p78 = por %p76, %p77
    %p79 = scmp.ne.s32.totalorder %s67, %s68
    %p80 = scmp.eq.s32.totalorder %s16, 1
    %p81 = por %p79, %p80
    %p83 = scmp.ne.s32.totalorder %s68, %s82
    %p84 = scmp.eq.s32.totalorder %s16, 0
    %p85 = por %p83, %p84
    %s87 = sadd.s32 %s86, 1
    %p90 = scmp.eq.s32.totalorder %s10, 1
    %p91 = scmp.ne.s32.totalorder %s86, %s88
    %p92 = scmp.eq.s32.totalorder %s10, 0
    %p93 = por %p91, %p92
    %p94 = scmp.ne.s32.totalorder %s86, %s88
    %p95 = scmp.eq.s32.totalorder %s15, 1
    %p96 = por %p94, %p95
    %p97 = scmp.ne.s32.totalorder %s88, %s89
    %p98 = scmp.eq.s32.totalorder %s15, 0
    %p99 = por %p97, %p98
    %p100 = scmp.ne.s32.totalorder %s88, %s89
    %p101 = scmp.eq.s32.totalorder %s16, 1
    %p102 = por %p100, %p101
    %p104 = scmp.ne.s32.totalorder %s89, %s103
    %p105 = scmp.eq.s32.totalorder %s16, 0
    %p106 = por %p104, %p105
    %s107 = ssub.s32 %s10, %s17
    %p108 = scmp.eq.s32.totalorder %s107, 0
    %s110 = sadd.s32 %s109, 1
    %s111 = scalar_select %p108, %s109, %s110
    %p114 = pneg %p108
    %p115 = scmp.eq.s32.totalorder %s10, 1
    %p116 = por %p114, %p115
    %p117 = scmp.ne.s32.totalorder %s109, %s112
    %p118 = scmp.eq.s32.totalorder %s10, 0
    %p119 = por %p117, %p118
    %p120 = scmp.ne.s32.totalorder %s109, %s112
    %p121 = scmp.eq.s32.totalorder %s15, 1
    %p122 = por %p120, %p121
    %p123 = scmp.ne.s32.totalorder %s112, %s113
    %p124 = scmp.eq.s32.totalorder %s15, 0
    %p125 = por %p123, %p124
    %p126 = scmp.ne.s32.totalorder %s112, %s113
    %p127 = scmp.eq.s32.totalorder %s16, 1
    %p128 = por %p126, %p127
    %p130 = scmp.ne.s32.totalorder %s113, %s129
    %p131 = scmp.eq.s32.totalorder %s16, 0
    %p132 = por %p130, %p131
    %p133 = scmp.le.s32.totalorder 1, %s10
    %p134 = scmp.lt.s32.totalorder %s10, 3
    %p135 = pnand %p133, %p134
    %p136 = pneg %p135
    // Predicated region
    $region9: #{collab_forward.8} parent=5 // pred_check
      _
    $region10: #{collab_forward.8} parent=5 // pred_check_branch
      %138 = sbr.rel (%p135) target = $region12
    $region11: #{collab_forward.8} parent=5 // pred_region
      %s139 = ssub.s32 %s10, 1
      // Predicated region
      $region13: #{collab_forward.8} parent=11 // pred_check
        %p140 = pneg %p57
      $region14: #{collab_forward.8} parent=11 // pred_check_branch
        %142 = sbr.rel (%p140) target = $region16
      $region15: #{collab_forward.8} parent=11 // pred_region
        _
      $region16: #{collab_forward.8} parent=11 // pred_fallthru
        _
      // Predicated region
      $region17: #{collab_forward.8} parent=11 // pred_check
        %p143 = pneg %p78
      $region18: #{collab_forward.8} parent=11 // pred_check_branch
        %145 = sbr.rel (%p143) target = $region20
      $region19: #{collab_forward.8} parent=11 // pred_region
        _
      $region20: #{collab_forward.8} parent=11 // pred_fallthru
        _
      // Predicated region
      $region21: #{collab_forward.8} parent=11 // pred_check
        %p146 = pneg %p99
      $region22: #{collab_forward.8} parent=11 // pred_check_branch
        %148 = sbr.rel (%p146) target = $region24
      $region23: #{collab_forward.8} parent=11 // pred_region
        _
      $region24: #{collab_forward.8} parent=11 // pred_fallthru
        _
    $region12: #{collab_forward.8} parent=5 // pred_fallthru
      _
    %p149 = scmp.lt.s32.totalorder %s10, 2
    // Predicated region
    $region25: #{collab_forward.8} parent=5 // pred_check
      %p150 = pneg %p149
    $region26: #{collab_forward.8} parent=5 // pred_check_branch
      %152 = sbr.rel (%p150) target = $region28
    $region27: #{collab_forward.8} parent=5 // pred_region
      // Predicated region
      $region29: #{collab_forward.8} parent=27 // pred_check
        %p153 = pneg %p30
      $region30: #{collab_forward.8} parent=27 // pred_check_branch
        %155 = sbr.rel (%p153) target = $region32
      $region31: #{collab_forward.8} parent=27 // pred_region
        %p156 = scmp.lt.s32.totalorder %s10, 1
        %s157 = scalar_select %p156, %s10, 1
        %s158 = smul.addr %s157, 20
        %s159 = smul.addr %s158, 8
        %s160 = scalar_lea.vmem %s0, %s159
      $region32: #{collab_forward.8} parent=27 // pred_fallthru
        _
    $region28: #{collab_forward.8} parent=5 // pred_fallthru
      _
    %p161 = scmp.le.s32.totalorder 1, %s10
    %p162 = scmp.lt.s32.totalorder %s10, 3
    %p163 = pnand %p161, %p162
    %p164 = pneg %p163
    // Predicated region
    $region33: #{collab_forward.8} parent=5 // pred_check
      _
    $region34: #{collab_forward.8} parent=5 // pred_check_branch
      %166 = sbr.rel (%p163) target = $region36
    $region35: #{collab_forward.8} parent=5 // pred_region
      %s167 = ssub.s32 %s10, 1
      %p168 = scmp.lt.s32.totalorder %s15, 1
      %s169 = scalar_select %p168, %s15, 1
      %s170 = smul.addr %s169, 20
      %s171 = smul.addr %s170, 8
      %s172 = scalar_lea.vmem %s0, %s171
      %p173 = pneg %p36
      %p174 = pneg %p33
      %p175 = pneg %p57
      %p176 = pneg %p54
      %p177 = pneg %p78
      %p178 = pneg %p75
      %p179 = pneg %p99
      %p180 = pneg %p96
      %p181 = pneg %p125
      %p182 = pneg %p122
      %p183 = scmp.lt.s32.totalorder %s15, 1
      %s184 = scalar_select %p183, %s15, 1
      %s185 = smul.addr %s184, 8
      %s186 = smul.addr %s185, 8
      %s187 = scalar_lea.vmem %s4, %s186
      %p188 = scmp.lt.s32.totalorder %s15, 1
      %s189 = scalar_select %p188, %s15, 1
      %s190 = smul.addr %s189, 20
      %s191 = smul.addr %s190, 8
      %s192 = scalar_lea.vmem %s0, %s191
      %p193 = scmp.lt.s32.totalorder %s15, 1
      %s194 = scalar_select %p193, %s15, 1
      %s195 = smul.addr %s194, 8
      %s196 = smul.addr %s195, 8
      %s197 = scalar_lea.vmem %s4, %s196
      %v199 = vld [vmem:[%s192] sm:$0xff]
      %v200 = vld [vmem:[%s192 + $0x8] sm:$0x3]
      %v201 = vld [vmem:[%s192 + $0x10] sm:$0xff]
      %v202 = vld [vmem:[%s192 + $0x18] sm:$0x3]
      %v203 = vld [vmem:[%s192 + $0x20] sm:$0xff]
      %v204 = vld [vmem:[%s192 + $0x28] sm:$0x3]
      %v205 = vld [vmem:[%s192 + $0x30] sm:$0xff]
      %v206 = vld [vmem:[%s192 + $0x38] sm:$0x3]
      %v207 = vld [vmem:[%s192 + $0x40] sm:$0xff]
      %v208 = vld [vmem:[%s192 + $0x48] sm:$0x3]
      %v209 = vld [vmem:[%s192 + $0x50] sm:$0xff]
      %v210 = vld [vmem:[%s192 + $0x58] sm:$0x3]
      %v211 = vld [vmem:[%s192 + $0x60] sm:$0xff]
      %v212 = vld [vmem:[%s192 + $0x68] sm:$0x3]
      %v213 = vld [vmem:[%s192 + $0x70] sm:$0xff]
      %v214 = vld [vmem:[%s192 + $0x78] sm:$0x3]
      %v215 = vld [vmem:[%s192 + $0x80] sm:$0xff]
      %v216 = vld [vmem:[%s192 + $0x88] sm:$0x3]
      %v217 = vld [vmem:[%s192 + $0x90] sm:$0xff]
      %v218 = vld [vmem:[%s192 + $0x98] sm:$0x3]
      %235 = vrot.lane.b32.xlu0 %v201, 32
      %v236 = vpop.permute.xlu0 %235
      %237 = vrot.lane.b32.xlu0 %v202, 32
      %v238 = vpop.permute.xlu0 %237
      %239 = vrot.lane.b32.xlu0 %v203, 32
      %v240 = vpop.permute.xlu0 %239
      %241 = vrot.lane.b32.xlu0 %v204, 32
      %v242 = vpop.permute.xlu0 %241
      %243 = vrot.lane.b32.xlu0 %v205, 32
      %v244 = vpop.permute.xlu0 %243
      %245 = vrot.lane.b32.xlu0 %v206, 32
      %v246 = vpop.permute.xlu0 %245
      %247 = vrot.lane.b32.xlu0 %v207, 32
      %v248 = vpop.permute.xlu0 %247
      %249 = vrot.lane.b32.xlu0 %v208, 32
      %v250 = vpop.permute.xlu0 %249
      %251 = vrot.lane.b32.xlu0 %v209, 32
      %v252 = vpop.permute.xlu0 %251
      %253 = vrot.lane.b32.xlu0 %v210, 32
      %v254 = vpop.permute.xlu0 %253
      %255 = vrot.lane.b32.xlu0 %v211, 32
      %v256 = vpop.permute.xlu0 %255
      %257 = vrot.lane.b32.xlu0 %v212, 32
      %v258 = vpop.permute.xlu0 %257
      %259 = vrot.lane.b32.xlu0 %v213, 32
      %v260 = vpop.permute.xlu0 %259
      %261 = vrot.lane.b32.xlu0 %v214, 32
      %v262 = vpop.permute.xlu0 %261
      %263 = vrot.lane.b32.xlu0 %v215, 32
      %v264 = vpop.permute.xlu0 %263
      %265 = vrot.lane.b32.xlu0 %v216, 32
      %v266 = vpop.permute.xlu0 %265
      %285 = vrot.lane.b32.xlu0 %v203, 64
      %v286 = vpop.permute.xlu0 %285
      %287 = vrot.lane.b32.xlu0 %v204, 64
      %v288 = vpop.permute.xlu0 %287
      %289 = vrot.lane.b32.xlu0 %v205, 64
      %v290 = vpop.permute.xlu0 %289
      %291 = vrot.lane.b32.xlu0 %v206, 64
      %v292 = vpop.permute.xlu0 %291
      %293 = vrot.lane.b32.xlu0 %v207, 64
      %v294 = vpop.permute.xlu0 %293
      %295 = vrot.lane.b32.xlu0 %v208, 64
      %v296 = vpop.permute.xlu0 %295
      %297 = vrot.lane.b32.xlu0 %v209, 64
      %v298 = vpop.permute.xlu0 %297
      %299 = vrot.lane.b32.xlu0 %v210, 64
      %v300 = vpop.permute.xlu0 %299
      %301 = vrot.lane.b32.xlu0 %v211, 64
      %v302 = vpop.permute.xlu0 %301
      %303 = vrot.lane.b32.xlu0 %v212, 64
      %v304 = vpop.permute.xlu0 %303
      %305 = vrot.lane.b32.xlu0 %v213, 64
      %v306 = vpop.permute.xlu0 %305
      %307 = vrot.lane.b32.xlu0 %v214, 64
      %v308 = vpop.permute.xlu0 %307
      %309 = vrot.lane.b32.xlu0 %v215, 64
      %v310 = vpop.permute.xlu0 %309
      %311 = vrot.lane.b32.xlu0 %v216, 64
      %v312 = vpop.permute.xlu0 %311
      %313 = vrot.lane.b32.xlu0 %v217, 64
      %v314 = vpop.permute.xlu0 %313
      %315 = vrot.lane.b32.xlu0 %v218, 64
      %v316 = vpop.permute.xlu0 %315
      %vm333 = vcmask 261120
      %v334 = vsel %vm333, %v199, %v236
      %v335 = vsel %vm333, %v200, %v238
      %v336 = vsel %vm333, %v201, %v240
      %v337 = vsel %vm333, %v202, %v242
      %v338 = vsel %vm333, %v203, %v244
      %v339 = vsel %vm333, %v204, %v246
      %v340 = vsel %vm333, %v205, %v248
      %v341 = vsel %vm333, %v206, %v250
      %v342 = vsel %vm333, %v207, %v252
      %v343 = vsel %vm333, %v208, %v254
      %v344 = vsel %vm333, %v209, %v256
      %v345 = vsel %vm333, %v210, %v258
      %v346 = vsel %vm333, %v211, %v260
      %v347 = vsel %vm333, %v212, %v262
      %v348 = vsel %vm333, %v213, %v264
      %v349 = vsel %vm333, %v214, %v266
      %vm350 = vcmask 523264
      %v351 = vsel %vm350, %v334, %v286
      %v352 = vsel %vm350, %v335, %v288
      %v353 = vsel %vm350, %v336, %v290
      %v354 = vsel %vm350, %v337, %v292
      %v355 = vsel %vm350, %v338, %v294
      %v356 = vsel %vm350, %v339, %v296
      %v357 = vsel %vm350, %v340, %v298
      %v358 = vsel %vm350, %v341, %v300
      %v359 = vsel %vm350, %v342, %v302
      %v360 = vsel %vm350, %v343, %v304
      %v361 = vsel %vm350, %v344, %v306
      %v362 = vsel %vm350, %v345, %v308
      %v363 = vsel %vm350, %v346, %v310
      %v364 = vsel %vm350, %v347, %v312
      %v365 = vsel %vm350, %v348, %v314
      %v366 = vsel %vm350, %v349, %v316
      %vm383 = vcmask 1046528
      %v384 = vrot.slane %v351, 1
      %v385 = vrot.slane %v352, 1
      %v386 = vsel %vm383, %v384, %v385
      %v387 = vrot.slane %v353, 1
      %v388 = vrot.slane %v354, 1
      %v389 = vsel %vm383, %v387, %v388
      %v390 = vrot.slane %v355, 1
      %v391 = vrot.slane %v356, 1
      %v392 = vsel %vm383, %v390, %v391
      %v393 = vrot.slane %v357, 1
      %v394 = vrot.slane %v358, 1
      %v395 = vsel %vm383, %v393, %v394
      %v396 = vrot.slane %v359, 1
      %v397 = vrot.slane %v360, 1
      %v398 = vsel %vm383, %v396, %v397
      %v399 = vrot.slane %v361, 1
      %v400 = vrot.slane %v362, 1
      %v401 = vsel %vm383, %v399, %v400
      %v402 = vrot.slane %v363, 1
      %v403 = vrot.slane %v364, 1
      %v404 = vsel %vm383, %v402, %v403
      %v405 = vrot.slane %v365, 1
      %v406 = vrot.slane %v366, 1
      %v407 = vsel %vm383, %v405, %v406
      %408 = vrot.lane.b32.xlu0 %v386, 96
      %v409 = vpop.permute.xlu0 %408
      %410 = vrot.lane.b32.xlu0 %v389, 96
      %v411 = vpop.permute.xlu0 %410
      %412 = vrot.lane.b32.xlu0 %v392, 96
      %v413 = vpop.permute.xlu0 %412
      %414 = vrot.lane.b32.xlu0 %v395, 96
      %v415 = vpop.permute.xlu0 %414
      %416 = vrot.lane.b32.xlu0 %v398, 96
      %v417 = vpop.permute.xlu0 %416
      %418 = vrot.lane.b32.xlu0 %v401, 96
      %v419 = vpop.permute.xlu0 %418
      %420 = vrot.lane.b32.xlu0 %v404, 96
      %v421 = vpop.permute.xlu0 %420
      %422 = vrot.lane.b32.xlu0 %v407, 96
      %v423 = vpop.permute.xlu0 %422
      %vm432 = vcmask 1045504
      %v433 = vrot.slane %v351, 2
      %v434 = vrot.slane %v352, 2
      %v435 = vsel %vm432, %v433, %v434
      %v436 = vrot.slane %v353, 2
      %v437 = vrot.slane %v354, 2
      %v438 = vsel %vm432, %v436, %v437
      %v439 = vrot.slane %v355, 2
      %v440 = vrot.slane %v356, 2
      %v441 = vsel %vm432, %v439, %v440
      %v442 = vrot.slane %v357, 2
      %v443 = vrot.slane %v358, 2
      %v444 = vsel %vm432, %v442, %v443
      %v445 = vrot.slane %v359, 2
      %v446 = vrot.slane %v360, 2
      %v447 = vsel %vm432, %v445, %v446
      %v448 = vrot.slane %v361, 2
      %v449 = vrot.slane %v362, 2
      %v450 = vsel %vm432, %v448, %v449
      %v451 = vrot.slane %v363, 2
      %v452 = vrot.slane %v364, 2
      %v453 = vsel %vm432, %v451, %v452
      %v454 = vrot.slane %v365, 2
      %v455 = vrot.slane %v366, 2
      %v456 = vsel %vm432, %v454, %v455
      %457 = vrot.lane.b32.xlu0 %v435, 64
      %v458 = vpop.permute.xlu0 %457
      %459 = vrot.lane.b32.xlu0 %v438, 64
      %v460 = vpop.permute.xlu0 %459
      %461 = vrot.lane.b32.xlu0 %v441, 64
      %v462 = vpop.permute.xlu0 %461
      %463 = vrot.lane.b32.xlu0 %v444, 64
      %v464 = vpop.permute.xlu0 %463
      %465 = vrot.lane.b32.xlu0 %v447, 64
      %v466 = vpop.permute.xlu0 %465
      %467 = vrot.lane.b32.xlu0 %v450, 64
      %v468 = vpop.permute.xlu0 %467
      %469 = vrot.lane.b32.xlu0 %v453, 64
      %v470 = vpop.permute.xlu0 %469
      %471 = vrot.lane.b32.xlu0 %v456, 64
      %v472 = vpop.permute.xlu0 %471
      %vm481 = vcmask 785408
      %v482 = vsel %vm481, %v351, %v409
      %v483 = vsel %vm481, %v353, %v411
      %v484 = vsel %vm481, %v355, %v413
      %v485 = vsel %vm481, %v357, %v415
      %v486 = vsel %vm481, %v359, %v417
      %v487 = vsel %vm481, %v361, %v419
      %v488 = vsel %vm481, %v363, %v421
      %v489 = vsel %vm481, %v365, %v423
      %v490 = vsel %vm350, %v409, %v458
      %v491 = vsel %vm350, %v411, %v460
      %v492 = vsel %vm350, %v413, %v462
      %v493 = vsel %vm350, %v415, %v464
      %v494 = vsel %vm350, %v417, %v466
      %v495 = vsel %vm350, %v419, %v468
      %v496 = vsel %vm350, %v421, %v470
      %v497 = vsel %vm350, %v423, %v472
      %v498 = vpack.c.bf16 %v483, %v482
      %v499 = vpack.c.bf16 %v491, %v490
      %v500 = vpack.c.bf16 %v460, %v458
      %v501 = vpack.c.bf16 %v485, %v484
      %v502 = vpack.c.bf16 %v493, %v492
      %v503 = vpack.c.bf16 %v464, %v462
      %v504 = vpack.c.bf16 %v487, %v486
      %v505 = vpack.c.bf16 %v495, %v494
      %v506 = vpack.c.bf16 %v468, %v466
      %v507 = vpack.c.bf16 %v489, %v488
      %v508 = vpack.c.bf16 %v497, %v496
      %v509 = vpack.c.bf16 %v472, %v470
      %v510 = vld [vmem:[%s1] sm:$0xf]
      %v511 = vld [vmem:[%s1 + $0x4] sm:$0xf]
      %v512 = vld [vmem:[%s1 + $0x8] sm:$0xf]
      %v513 = vld [vmem:[%s1 + $0xc] sm:$0xf]
      %v514 = vld [vmem:[%s1 + $0x10] sm:$0xf]
      %v515 = vld [vmem:[%s1 + $0x14] sm:$0xf]
      %v516 = vld [vmem:[%s1 + $0x18] sm:$0xf]
      %v517 = vld [vmem:[%s1 + $0x1c] sm:$0xf]
      %v518 = vld [vmem:[%s1 + $0x20] sm:$0xf]
      %v519 = vld [vmem:[%s1 + $0x24] sm:$0xf]
      %v520 = vld [vmem:[%s1 + $0x28] sm:$0xf]
      %v521 = vld [vmem:[%s1 + $0x2c] sm:$0xf]
      %v522 = vld [vmem:[%s1 + $0x30] sm:$0xf]
      %v523 = vld [vmem:[%s1 + $0x34] sm:$0xf]
      %v524 = vld [vmem:[%s1 + $0x38] sm:$0xf]
      %v525 = vld [vmem:[%s1 + $0x3c] sm:$0xf]
      %v526 = vld [vmem:[%s1 + $0x40] sm:$0xf]
      %v527 = vld [vmem:[%s1 + $0x44] sm:$0xf]
      %v528 = vld [vmem:[%s1 + $0x48] sm:$0xf]
      %v529 = vld [vmem:[%s1 + $0x4c] sm:$0xf]
      %v530 = vld [vmem:[%s1 + $0x50] sm:$0xf]
      %v531 = vld [vmem:[%s1 + $0x54] sm:$0xf]
      %v532 = vld [vmem:[%s1 + $0x58] sm:$0xf]
      %v533 = vld [vmem:[%s1 + $0x5c] sm:$0xf]
      %v534 = vld [vmem:[%s1 + $0x60] sm:$0xf]
      %v535 = vld [vmem:[%s1 + $0x64] sm:$0xf]
      %v536 = vld [vmem:[%s1 + $0x68] sm:$0xf]
      %v537 = vld [vmem:[%s1 + $0x6c] sm:$0xf]
      %v538 = vld [vmem:[%s1 + $0x70] sm:$0xf]
      %v539 = vld [vmem:[%s1 + $0x74] sm:$0xf]
      %v540 = vld [vmem:[%s1 + $0x78] sm:$0xf]
      %v541 = vld [vmem:[%s1 + $0x7c] sm:$0xf]
      %v542 = vld [vmem:[%s1 + $0x80] sm:$0xf]
      %v543 = vld [vmem:[%s1 + $0x84] sm:$0xf]
      %v544 = vld [vmem:[%s1 + $0x88] sm:$0xf]
      %v545 = vld [vmem:[%s1 + $0x8c] sm:$0xf]
      %v582 = vunpack.c.l.b16 %v510
      %v583 = vunpack.c.l.b16 %v511
      %v584 = vunpack.c.l.b16 %v512
      %v585 = vunpack.c.l.b16 %v513
      %v586 = vunpack.c.l.b16 %v514
      %v587 = vunpack.c.l.b16 %v515
      %v588 = vunpack.c.l.b16 %v516
      %v589 = vunpack.c.l.b16 %v517
      %v590 = vunpack.c.l.b16 %v518
      %v591 = vunpack.c.l.b16 %v519
      %v592 = vunpack.c.l.b16 %v520
      %v593 = vunpack.c.l.b16 %v521
      %v594 = vunpack.c.l.b16 %v522
      %v595 = vunpack.c.l.b16 %v523
      %v596 = vunpack.c.l.b16 %v524
      %v597 = vunpack.c.l.b16 %v525
      %v598 = vunpack.c.l.b16 %v526
      %v599 = vunpack.c.l.b16 %v527
      %v600 = vunpack.c.l.b16 %v528
      %v601 = vunpack.c.l.b16 %v529
      %v602 = vunpack.c.l.b16 %v530
      %v603 = vunpack.c.l.b16 %v531
      %v604 = vunpack.c.l.b16 %v532
      %v605 = vunpack.c.l.b16 %v533
      %v606 = vunpack.c.l.b16 %v534
      %v607 = vunpack.c.l.b16 %v535
      %v608 = vunpack.c.l.b16 %v536
      %v609 = vunpack.c.l.b16 %v537
      %v610 = vunpack.c.l.b16 %v538
      %v611 = vunpack.c.l.b16 %v539
      %v612 = vunpack.c.l.b16 %v540
      %v613 = vunpack.c.l.b16 %v541
      %v614 = vunpack.c.l.b16 %v542
      %v615 = vunpack.c.l.b16 %v543
      %v616 = vunpack.c.l.b16 %v544
      %v617 = vunpack.c.l.b16 %v545
      %v618 = vpack.c.b16 %v583, %v582
      %v619 = vpack.c.b16 %v585, %v584
      %v620 = vpack.c.b16 %v587, %v586
      %v621 = vpack.c.b16 %v589, %v588
      %v622 = vpack.c.b16 %v591, %v590
      %v623 = vpack.c.b16 %v593, %v592
      %v624 = vpack.c.b16 %v595, %v594
      %v625 = vpack.c.b16 %v597, %v596
      %v626 = vpack.c.b16 %v599, %v598
      %v627 = vpack.c.b16 %v601, %v600
      %v628 = vpack.c.b16 %v603, %v602
      %v629 = vpack.c.b16 %v605, %v604
      %v630 = vpack.c.b16 %v607, %v606
      %v631 = vpack.c.b16 %v609, %v608
      %v632 = vpack.c.b16 %v611, %v610
      %v633 = vpack.c.b16 %v613, %v612
      %v634 = vpack.c.b16 %v615, %v614
      %v635 = vpack.c.b16 %v617, %v616
      %v655 = vsel %vm333, %v500, 0
      %v658 = vsel %vm333, %v503, 0
      %v661 = vsel %vm333, %v506, 0
      %v664 = vsel %vm333, %v509, 0
      %666 = vmatprep.subr.bf16.mxu0 0
      %667 = vmatpush1.bf16.msra.mxu0 %v618
      %668 = vmatprep.subr.bf16.mxu0 0
      %669 = vmatpush1.bf16.msra.mxu0 %v619
      %670 = vmatprep.subr.bf16.mxu0 0
      %671 = vmatpush1.bf16.msra.mxu0 %v620
      %672 = vmatprep.subr.bf16.mxu0 0
      %673 = vmatpush1.bf16.msra.mxu0 %v621
      %674 = vmatprep.subr.bf16.mxu0 0
      %675 = vmatpush1.bf16.msra.mxu0 %v622
      %676 = vmatprep.subr.bf16.mxu0 0
      %677 = vmatpush1.bf16.msra.mxu0 %v623
      %678 = vmatprep.subr.bf16.mxu0 0
      %679 = vmatpush1.bf16.msra.mxu0 %v624
      %680 = vmatprep.subr.bf16.mxu0 0
      %681 = vmatpush1.bf16.msra.mxu0 %v625
      %682 = vmatprep.subr.bf16.mxu0 0
      %683 = vmatpush1.bf16.msra.mxu0 %v626
      %684 = vmatprep.subr.bf16.mxu0 0
      %685 = vmatpush1.bf16.msra.mxu0 %v627
      %686 = vmatprep.subr.bf16.mxu0 0
      %687 = vmatpush1.bf16.msra.mxu0 %v628
      %688 = vmatprep.subr.bf16.mxu0 0
      %689 = vmatpush1.bf16.msra.mxu0 %v629
      %690 = vmatprep.subr.bf16.mxu0 0
      %691 = vmatpush1.bf16.msra.mxu0 %v630
      %692 = vmatprep.subr.bf16.mxu0 0
      %693 = vmatpush1.bf16.msra.mxu0 %v631
      %694 = vmatprep.subr.bf16.mxu0 0
      %695 = vmatpush1.bf16.msra.mxu0 %v632
      %696 = vmatprep.subr.bf16.mxu0 0
      %697 = vmatpush1.bf16.msra.mxu0 %v633
      %698 = vmatprep.mubr.bf16.mxu0 %v499
      %699 = vmatmul.mubr.bf16.gmra.mrb[0].mxu0 %v498
      %v700 = vpop.f32.mrb[0].mxu0
      %v701 = vadd.f32 0.0, %v700
      %v702 = vpop.f32.mrb[0].mxu0
      %v703 = vpop.f32.mrb[0].mxu0
      %v704 = vadd.f32 0.0, %v703
      %v705 = vpop.f32.mrb[0].mxu0
      %706 = vmatprep.mubr.bf16.mxu0 %v502
      %707 = vmatmul.mubr.bf16.gmra.mrb[0].mxu0 %v501
      %v708 = vpop.f32.mrb[0].mxu0
      %v709 = vadd.f32 0.0, %v708
      %v710 = vpop.f32.mrb[0].mxu0
      %v711 = vpop.f32.mrb[0].mxu0
      %v712 = vadd.f32 0.0, %v711
      %v713 = vpop.f32.mrb[0].mxu0
      %714 = vmatprep.mubr.bf16.mxu0 %v505
      %715 = vmatmul.mubr.bf16.gmra.mrb[0].mxu0 %v504
      %v716 = vpop.f32.mrb[0].mxu0
      %v717 = vadd.f32 0.0, %v716
      %v718 = vpop.f32.mrb[0].mxu0
      %v719 = vpop.f32.mrb[0].mxu0
      %v720 = vadd.f32 0.0, %v719
      %v721 = vpop.f32.mrb[0].mxu0
      %722 = vmatprep.mubr.bf16.mxu0 %v508
      %723 = vmatmul.mubr.bf16.gmra.mrb[0].mxu0 %v507
      %v724 = vpop.f32.mrb[0].mxu0
      %v725 = vadd.f32 0.0, %v724
      %v726 = vpop.f32.mrb[0].mxu0
      %v727 = vpop.f32.mrb[0].mxu0
      %v728 = vadd.f32 0.0, %v727
      %v729 = vpop.f32.mrb[0].mxu0
      %730 = vdwg.mxu0
      %731 = vmatprep.subr.bf16.mxu0 0
      %732 = vmatpush1.bf16.msra.mxu0 %v634
      %733 = vmatprep.subr.bf16.mxu0 0
      %734 = vmatpush1.bf16.msra.mxu0 %v635
      %735 = vmatprep.subr.bf16.mxu0 0
      %736 = vmatpush1.bf16.msra.mxu0 0
      %737 = vmatprep.subr.bf16.mxu0 0
      %738 = vmatpush1.bf16.msra.mxu0 0
      %739 = vmatprep.subr.bf16.mxu0 0
      %740 = vmatpush1.bf16.msra.mxu0 0
      %741 = vmatprep.subr.bf16.mxu0 0
      %742 = vmatpush1.bf16.msra.mxu0 0
      %743 = vmatprep.subr.bf16.mxu0 0
      %744 = vmatpush1.bf16.msra.mxu0 0
      %745 = vmatprep.subr.bf16.mxu0 0
      %746 = vmatpush1.bf16.msra.mxu0 0
      %747 = vmatprep.subr.bf16.mxu0 0
      %748 = vmatpush1.bf16.msra.mxu0 0
      %749 = vmatprep.subr.bf16.mxu0 0
      %750 = vmatpush1.bf16.msra.mxu0 0
      %751 = vmatprep.subr.bf16.mxu0 0
      %752 = vmatpush1.bf16.msra.mxu0 0
      %753 = vmatprep.subr.bf16.mxu0 0
      %754 = vmatpush1.bf16.msra.mxu0 0
      %755 = vmatprep.subr.bf16.mxu0 0
      %756 = vmatpush1.bf16.msra.mxu0 0
      %757 = vmatprep.subr.bf16.mxu0 0
      %758 = vmatpush1.bf16.msra.mxu0 0
      %759 = vmatprep.subr.bf16.mxu0 0
      %760 = vmatpush1.bf16.msra.mxu0 0
      %761 = vmatprep.subr.bf16.mxu0 0
      %762 = vmatpush1.bf16.msra.mxu0 0
      %763 = vmatprep.mubr.bf16.mxu0 0
      %764 = vmatmul.mubr.bf16.gmra.mrb[0].mxu0 %v655
      %v765 = vpop.f32.mrb[0].mxu0
      %v766 = vadd.f32 %v701, %v765
      %v767 = vpop.f32.mrb[0].mxu0
      %v768 = vpop.f32.mrb[0].mxu0
      %v769 = vadd.f32 %v704, %v768
      %v770 = vpop.f32.mrb[0].mxu0
      %771 = vmatprep.mubr.bf16.mxu0 0
      %772 = vmatmul.mubr.bf16.gmra.mrb[0].mxu0 %v658
      %v773 = vpop.f32.mrb[0].mxu0
      %v774 = vadd.f32 %v709, %v773
      %v775 = vpop.f32.mrb[0].mxu0
      %v776 = vpop.f32.mrb[0].mxu0
      %v777 = vadd.f32 %v712, %v776
      %v778 = vpop.f32.mrb[0].mxu0
      %779 = vmatprep.mubr.bf16.mxu0 0
      %780 = vmatmul.mubr.bf16.gmra.mrb[0].mxu0 %v661
      %v781 = vpop.f32.mrb[0].mxu0
      %v782 = vadd.f32 %v717, %v781
      %v783 = vpop.f32.mrb[0].mxu0
      %v784 = vpop.f32.mrb[0].mxu0
      %v785 = vadd.f32 %v720, %v784
      %v786 = vpop.f32.mrb[0].mxu0
      %787 = vmatprep.mubr.bf16.mxu0 0
      %788 = vmatmul.mubr.bf16.gmra.mrb[0].mxu0 %v664
      %v789 = vpop.f32.mrb[0].mxu0
      %v790 = vadd.f32 %v725, %v789
      %v791 = vpop.f32.mrb[0].mxu0
      %v792 = vpop.f32.mrb[0].mxu0
      %v793 = vadd.f32 %v728, %v792
      %v794 = vpop.f32.mrb[0].mxu0
      %795 = vdwg.mxu0
      %v796 = vld [vmem:[%s2] sm:$0x1]
      %v798 = vlaneseq
      %v799 = vshrl.u32 %v798, 7
      %v800 = vsub.s32 0, %v799
      %v801 = vrot.slane %v796, %v800
      %v803 = vmul.f32 %v766, %v801
      %v804 = vmul.f32 %v769, %v801
      %v805 = vmul.f32 %v774, %v801
      %v806 = vmul.f32 %v777, %v801
      %v807 = vmul.f32 %v782, %v801
      %v808 = vmul.f32 %v785, %v801
      %v809 = vmul.f32 %v790, %v801
      %v810 = vmul.f32 %v793, %v801
      %v811 = vld [vmem:[%s3] sm:$0x1]
      %v813 = vlaneseq
      %v814 = vshrl.u32 %v813, 7
      %v815 = vsub.s32 0, %v814
      %v816 = vrot.slane %v811, %v815
      %v818 = vadd.f32 %v803, %v816
      %v819 = vadd.f32 %v804, %v816
      %v820 = vadd.f32 %v805, %v816
      %v821 = vadd.f32 %v806, %v816
      %v822 = vadd.f32 %v807, %v816
      %v823 = vadd.f32 %v808, %v816
      %v824 = vadd.f32 %v809, %v816
      %v825 = vadd.f32 %v810, %v816
      %v826 = vmax.f32 %v818, 0.0
      %v827 = vmax.f32 %v819, 0.0
      %v828 = vmax.f32 %v820, 0.0
      %v829 = vmax.f32 %v821, 0.0
      %v830 = vmax.f32 %v822, 0.0
      %v831 = vmax.f32 %v823, 0.0
      %v832 = vmax.f32 %v824, 0.0
      %v833 = vmax.f32 %v825, 0.0
      %834 = vst.msk [vmem:[%s197] sm:$0xff] %vm350, %v826
      %835 = vst.msk [vmem:[%s197 + $0x8] sm:$0xff] %vm350, %v827
      %836 = vst.msk [vmem:[%s197 + $0x10] sm:$0xff] %vm350, %v828
      %837 = vst.msk [vmem:[%s197 + $0x18] sm:$0xff] %vm350, %v829
      %838 = vst.msk [vmem:[%s197 + $0x20] sm:$0xff] %vm350, %v830
      %839 = vst.msk [vmem:[%s197 + $0x28] sm:$0xff] %vm350, %v831
      %840 = vst.msk [vmem:[%s197 + $0x30] sm:$0xff] %vm350, %v832
      %841 = vst.msk [vmem:[%s197 + $0x38] sm:$0xff] %vm350, %v833
      %p842 = scmp.lt.s32.totalorder %s15, 1
      %s843 = scalar_select %p842, %s15, 1
      %s844 = smul.addr %s843, 8
      %s845 = smul.addr %s844, 8
      %s846 = scalar_lea.vmem %s4, %s845
      // Predicated region
      $region37: #{collab_forward.8} parent=35 // pred_check
        %p847 = pneg %p122
      $region38: #{collab_forward.8} parent=35 // pred_check_branch
        %849 = sbr.rel (%p847) target = $region40
      $region39: #{collab_forward.8} parent=35 // pred_region
        _
      $region40: #{collab_forward.8} parent=35 // pred_fallthru
        _
    $region36: #{collab_forward.8} parent=5 // pred_fallthru
      _
    %p850 = scmp.le.s32.totalorder 2, %s10
    // Predicated region
    $region41: #{collab_forward.8} parent=5 // pred_check
      %p851 = pneg %p850
    $region42: #{collab_forward.8} parent=5 // pred_check_branch
      %853 = sbr.rel (%p851) target = $region44
    $region43: #{collab_forward.8} parent=5 // pred_region
      %s854 = ssub.s32 %s10, 2
      // Predicated region
      $region45: #{collab_forward.8} parent=43 // pred_check
        %p855 = pneg %p128
      $region46: #{collab_forward.8} parent=43 // pred_check_branch
        %857 = sbr.rel (%p855) target = $region48
      $region47: #{collab_forward.8} parent=43 // pred_region
        %p858 = scmp.lt.s32.totalorder %s16, 1
        %s859 = scalar_select %p858, %s16, 1
        %s860 = smul.addr %s859, 8
        %s861 = smul.addr %s860, 8
        %s862 = scalar_lea.vmem %s4, %s861
      $region48: #{collab_forward.8} parent=43 // pred_fallthru
        _
    $region44: #{collab_forward.8} parent=5 // pred_fallthru
      _
  $region6: #{collab_forward.8} parent=0 // loop_footer
    %s14 = sadd.s32 1, %s10
  $region7: #{collab_forward.8} parent=0 // loop_footer_branch
    %9 = sbr.rel target = $region3
  $region8: #{collab_forward.8} parent=0 // loop_exit
    _

// kernel: collab_forward.7
$region0: #{collab_forward.7}
  #allocation0 [shape = 'u32[]', space=smem, size = 0x4, offset = 0x4, fixed_abs, tag = 'smem constant byte address 0x4 - core index']
  #allocation1 [shape = 'u32[144,128]{1,0:T(1,128)}', space=vmem, size = 0x12000, scoped, tag = 'internal scratch']
  %s0 = inlined_call_operand.hbm [shape: f32[128,32], index: 0, kind: input, shape index: {}]
  %s1 = inlined_call_operand.hbm [shape: f32[128,32], index: 1, kind: input, shape index: {}]
  %s2 = inlined_call_operand.hbm [shape: f32[128,32], index: 2, kind: input, shape index: {}]
  %s3 = inlined_call_operand.hbm [shape: f32[128,32], index: 3, kind: input, shape index: {}]
  %s4 = inlined_call_operand.vmem [shape: bf16[32,32], index: 4, kind: input, shape index: {}]
  %s5 = inlined_call_operand.vmem [shape: f32[1,32], index: 5, kind: input, shape index: {}]
  %s6 = inlined_call_operand.vmem [shape: f32[1,32], index: 6, kind: input, shape index: {}]
  %s7 = inlined_call_operand.vmem [shape: bf16[32,32], index: 7, kind: input, shape index: {}]
  %s8 = inlined_call_operand.vmem [shape: f32[1,32], index: 8, kind: input, shape index: {}]
  %s9 = inlined_call_operand.vmem [shape: f32[1,32], index: 9, kind: input, shape index: {}]
  %s10 = inlined_call_operand.hbm [shape: f32[128,32], index: 10, kind: output, shape index: {0}]
  %s11 = inlined_call_operand.hbm [shape: f32[128,32], index: 11, kind: output, shape index: {1}]
  %s12 = inlined_call_operand.vmem [shape: f32[128,32], index: 12, kind: output, shape index: {2}]
  %13 = xla_tuple %s10, %s11, %s12
  %s14 = sld [smem:[#allocation0]]
  $region82: #{collab_forward.7} parent=0
    _
  %s16 = ssub.s32 1, %s14
  %s17 = scalar_select 0, %s16, %s14
  $region1: #{collab_forward.7} parent=0
    #allocation2 [shape = 'u8[65536]{0}', space=vmem, size = 0x10000, scoped, tag = 'input window, operand 0, single buffered']
    #allocation3 [shape = 's32[1]{0}', space=sflag, size = 0x4, scoped, tag = 'scoped memory for collab_forward.7']
    #allocation4 [shape = 's32[1]{0}', space=sflag, size = 0x4, scoped, tag = 'scoped memory for collab_forward.7']
    #allocation5 [shape = 'u8[65536]{0}', space=vmem, size = 0x10000, scoped, tag = 'input window, operand 1, single buffered']
    #allocation6 [shape = 's32[1]{0}', space=sflag, size = 0x4, scoped, tag = 'scoped memory for collab_forward.7']
    #allocation7 [shape = 'u8[65536]{0}', space=vmem, size = 0x10000, scoped, tag = 'input window, operand 2, single buffered']
    #allocation8 [shape = 'u8[65536]{0}', space=vmem, size = 0x10000, scoped, tag = 'input window, operand 3, single buffered']
    #allocation9 [shape = 's32[1]{0}', space=sflag, size = 0x4, scoped, tag = 'scoped memory for collab_forward.7']
    #allocation10 [shape = 'u8[65536]{0}', space=vmem, size = 0x10000, scoped, tag = 'output window, operand 0, single buffered']
    #allocation11 [shape = 'u8[65536]{0}', space=vmem, size = 0x10000, scoped, tag = 'output window, operand 1, single buffered']
    #allocation12 [shape = 's32[1]{0}', space=sflag, size = 0x4, scoped, tag = 'scoped memory for collab_forward.7']
    %18 = vsyncpa [#allocation3], 0
    %19 = vsyncpa [#allocation6], 0
    %20 = vsyncpa [#allocation9], 0
    %21 = vsyncpa [#allocation4], 0
    %22 = vsyncpa [#allocation12], 0
    // Predicated region
    $region2: #{collab_forward.7} parent=1 // pred_check
      _
    $region3: #{collab_forward.7} parent=1 // pred_check_branch
      %24 = sbr.rel (0) target = $region5
    $region4: #{collab_forward.7} parent=1 // pred_region
      %s26 = ssub.s32 2048, 2048
      %27 = vsyncadd [#allocation3], %s26
      %s28 = sshll.u32 [#allocation2], 4
      %s29 = int_to_ptr.vmem [resolvable:$true] %s28
      %34 = dma.hbm_to_vmem [thread:$0]  %s0, 2048, %s29, [#allocation3], 128, 128, 8
    $region5: #{collab_forward.7} parent=1 // pred_fallthru
      _
    // Predicated region
    $region6: #{collab_forward.7} parent=1 // pred_check
      _
    $region7: #{collab_forward.7} parent=1 // pred_check_branch
      %36 = sbr.rel (0) target = $region9
    $region8: #{collab_forward.7} parent=1 // pred_region
      %s38 = ssub.s32 2048, 2048
      %39 = vsyncadd [#allocation6], %s38
      %s40 = sshll.u32 [#allocation5], 4
      %s41 = int_to_ptr.vmem [resolvable:$true] %s40
      %46 = dma.hbm_to_vmem [thread:$0]  %s1, 2048, %s41, [#allocation6], 128, 128, 8
    $region9: #{collab_forward.7} parent=1 // pred_fallthru
      _
    // Predicated region
    $region10: #{collab_forward.7} parent=1 // pred_check
      _
    $region11: #{collab_forward.7} parent=1 // pred_check_branch
      %48 = sbr.rel (0) target = $region13
    $region12: #{collab_forward.7} parent=1 // pred_region
      %s50 = ssub.s32 2048, 2048
      %51 = vsyncadd [#allocation6], %s50
      %s52 = sshll.u32 [#allocation7], 4
      %s53 = int_to_ptr.vmem [resolvable:$true] %s52
      %58 = dma.hbm_to_vmem [thread:$0]  %s2, 2048, %s53, [#allocation6], 128, 128, 8
    $region13: #{collab_forward.7} parent=1 // pred_fallthru
      _
    // Predicated region
    $region14: #{collab_forward.7} parent=1 // pred_check
      _
    $region15: #{collab_forward.7} parent=1 // pred_check_branch
      %60 = sbr.rel (0) target = $region17
    $region16: #{collab_forward.7} parent=1 // pred_region
      %s62 = ssub.s32 2048, 2048
      %63 = vsyncadd [#allocation9], %s62
      %s64 = sshll.u32 [#allocation8], 4
      %s65 = int_to_ptr.vmem [resolvable:$true] %s64
      %70 = dma.hbm_to_vmem [thread:$0]  %s3, 2048, %s65, [#allocation9], 128, 128, 8
    $region17: #{collab_forward.7} parent=1 // pred_fallthru
      _
    // Predicated region
    $region18: #{collab_forward.7} parent=1 // pred_check
      _
    $region19: #{collab_forward.7} parent=1 // pred_check_branch
      %72 = sbr.rel (0) target = $region21
    $region20: #{collab_forward.7} parent=1 // pred_region
      _
    $region21: #{collab_forward.7} parent=1 // pred_fallthru
      _
    // Predicated region
    $region22: #{collab_forward.7} parent=1 // pred_check
      _
    $region23: #{collab_forward.7} parent=1 // pred_check_branch
      %74 = sbr.rel (0) target = $region25
    $region24: #{collab_forward.7} parent=1 // pred_region
      _
    $region25: #{collab_forward.7} parent=1 // pred_fallthru
      _
    // Predicated region
    $region26: #{collab_forward.7} parent=1 // pred_check
      _
    $region27: #{collab_forward.7} parent=1 // pred_check_branch
      %76 = sbr.rel (0) target = $region29
    $region28: #{collab_forward.7} parent=1 // pred_region
      _
    $region29: #{collab_forward.7} parent=1 // pred_fallthru
      _
    // Predicated region
    $region30: #{collab_forward.7} parent=1 // pred_check
      _
    $region31: #{collab_forward.7} parent=1 // pred_check_branch
      %78 = sbr.rel (0) target = $region33
    $region32: #{collab_forward.7} parent=1 // pred_region
      _
    $region33: #{collab_forward.7} parent=1 // pred_fallthru
      _
    // Predicated region
    $region34: #{collab_forward.7} parent=1 // pred_check
      _
    $region35: #{collab_forward.7} parent=1 // pred_check_branch
      %80 = sbr.rel (0) target = $region37
    $region36: #{collab_forward.7} parent=1 // pred_region
      _
    $region37: #{collab_forward.7} parent=1 // pred_fallthru
      _
    // Predicated region
    $region38: #{collab_forward.7} parent=1 // pred_check
      _
    $region39: #{collab_forward.7} parent=1 // pred_check_branch
      %82 = sbr.rel (0) target = $region41
    $region40: #{collab_forward.7} parent=1 // pred_region
      _
    $region41: #{collab_forward.7} parent=1 // pred_fallthru
      _
    // Predicated region
    $region42: #{collab_forward.7} parent=1 // pred_check
      _
    $region43: #{collab_forward.7} parent=1 // pred_check_branch
      %84 = sbr.rel (0) target = $region45
    $region44: #{collab_forward.7} parent=1 // pred_region
      %85 = dma.done [#allocation3], 2048
    $region45: #{collab_forward.7} parent=1 // pred_fallthru
      _
    // Predicated region
    $region46: #{collab_forward.7} parent=1 // pred_check
      _
    $region47: #{collab_forward.7} parent=1 // pred_check_branch
      %87 = sbr.rel (0) target = $region49
    $region48: #{collab_forward.7} parent=1 // pred_region
      %88 = dma.done [#allocation6], 2048
    $region49: #{collab_forward.7} parent=1 // pred_fallthru
      _
    // Predicated region
    $region50: #{collab_forward.7} parent=1 // pred_check
      _
    $region51: #{collab_forward.7} parent=1 // pred_check_branch
      %90 = sbr.rel (0) target = $region53
    $region52: #{collab_forward.7} parent=1 // pred_region
      %91 = dma.done [#allocation6], 2048
    $region53: #{collab_forward.7} parent=1 // pred_fallthru
      _
    // Predicated region
    $region54: #{collab_forward.7} parent=1 // pred_check
      _
    $region55: #{collab_forward.7} parent=1 // pred_check_branch
      %93 = sbr.rel (0) target = $region57
    $region56: #{collab_forward.7} parent=1 // pred_region
      %94 = dma.done [#allocation9], 2048
    $region57: #{collab_forward.7} parent=1 // pred_fallthru
      _
    %v96 = vld [vmem:[#allocation2] sm:$0xff]
    %v97 = vld [vmem:[#allocation2 + $0x8] sm:$0xff]
    %v98 = vld [vmem:[#allocation2 + $0x10] sm:$0xff]
    %v99 = vld [vmem:[#allocation2 + $0x18] sm:$0xff]
    %v100 = vld [vmem:[#allocation2 + $0x20] sm:$0xff]
    %v101 = vld [vmem:[#allocation2 + $0x28] sm:$0xff]
    %v102 = vld [vmem:[#allocation2 + $0x30] sm:$0xff]
    %v103 = vld [vmem:[#allocation2 + $0x38] sm:$0xff]
    %v104 = vld [vmem:[#allocation2 + $0x40] sm:$0xff]
    %v105 = vld [vmem:[#allocation2 + $0x48] sm:$0xff]
    %v106 = vld [vmem:[#allocation2 + $0x50] sm:$0xff]
    %v107 = vld [vmem:[#allocation2 + $0x58] sm:$0xff]
    %v108 = vld [vmem:[#allocation2 + $0x60] sm:$0xff]
    %v109 = vld [vmem:[#allocation2 + $0x68] sm:$0xff]
    %v110 = vld [vmem:[#allocation2 + $0x70] sm:$0xff]
    %v111 = vld [vmem:[#allocation2 + $0x78] sm:$0xff]
    %v112 = vld [vmem:[#allocation5] sm:$0xff]
    %v113 = vld [vmem:[#allocation5 + $0x8] sm:$0xff]
    %v114 = vld [vmem:[#allocation5 + $0x10] sm:$0xff]
    %v115 = vld [vmem:[#allocation5 + $0x18] sm:$0xff]
    %v116 = vld [vmem:[#allocation5 + $0x20] sm:$0xff]
    %v117 = vld [vmem:[#allocation5 + $0x28] sm:$0xff]
    %v118 = vld [vmem:[#allocation5 + $0x30] sm:$0xff]
    %v119 = vld [vmem:[#allocation5 + $0x38] sm:$0xff]
    %v120 = vld [vmem:[#allocation5 + $0x40] sm:$0xff]
    %v121 = vld [vmem:[#allocation5 + $0x48] sm:$0xff]
    %v122 = vld [vmem:[#allocation5 + $0x50] sm:$0xff]
    %v123 = vld [vmem:[#allocation5 + $0x58] sm:$0xff]
    %v124 = vld [vmem:[#allocation5 + $0x60] sm:$0xff]
    %v125 = vld [vmem:[#allocation5 + $0x68] sm:$0xff]
    %v126 = vld [vmem:[#allocation5 + $0x70] sm:$0xff]
    %v127 = vld [vmem:[#allocation5 + $0x78] sm:$0xff]
    %v128 = vadd.f32 %v96, %v112
    %v129 = vadd.f32 %v97, %v113
    %v130 = vadd.f32 %v98, %v114
    %v131 = vadd.f32 %v99, %v115
    %v132 = vadd.f32 %v100, %v116
    %v133 = vadd.f32 %v101, %v117
    %v134 = vadd.f32 %v102, %v118
    %v135 = vadd.f32 %v103, %v119
    %v136 = vadd.f32 %v104, %v120
    %v137 = vadd.f32 %v105, %v121
    %v138 = vadd.f32 %v106, %v122
    %v139 = vadd.f32 %v107, %v123
    %v140 = vadd.f32 %v108, %v124
    %v141 = vadd.f32 %v109, %v125
    %v142 = vadd.f32 %v110, %v126
    %v143 = vadd.f32 %v111, %v127
    %v144 = vld [vmem:[#allocation7] sm:$0xff]
    %v145 = vld [vmem:[#allocation7 + $0x8] sm:$0xff]
    %v146 = vld [vmem:[#allocation7 + $0x10] sm:$0xff]
    %v147 = vld [vmem:[#allocation7 + $0x18] sm:$0xff]
    %v148 = vld [vmem:[#allocation7 + $0x20] sm:$0xff]
    %v149 = vld [vmem:[#allocation7 + $0x28] sm:$0xff]
    %v150 = vld [vmem:[#allocation7 + $0x30] sm:$0xff]
    %v151 = vld [vmem:[#allocation7 + $0x38] sm:$0xff]
    %v152 = vld [vmem:[#allocation7 + $0x40] sm:$0xff]
    %v153 = vld [vmem:[#allocation7 + $0x48] sm:$0xff]
    %v154 = vld [vmem:[#allocation7 + $0x50] sm:$0xff]
    %v155 = vld [vmem:[#allocation7 + $0x58] sm:$0xff]
    %v156 = vld [vmem:[#allocation7 + $0x60] sm:$0xff]
    %v157 = vld [vmem:[#allocation7 + $0x68] sm:$0xff]
    %v158 = vld [vmem:[#allocation7 + $0x70] sm:$0xff]
    %v159 = vld [vmem:[#allocation7 + $0x78] sm:$0xff]
    %v160 = vadd.f32 %v128, %v144
    %v161 = vadd.f32 %v129, %v145
    %v162 = vadd.f32 %v130, %v146
    %v163 = vadd.f32 %v131, %v147
    %v164 = vadd.f32 %v132, %v148
    %v165 = vadd.f32 %v133, %v149
    %v166 = vadd.f32 %v134, %v150
    %v167 = vadd.f32 %v135, %v151
    %v168 = vadd.f32 %v136, %v152
    %v169 = vadd.f32 %v137, %v153
    %v170 = vadd.f32 %v138, %v154
    %v171 = vadd.f32 %v139, %v155
    %v172 = vadd.f32 %v140, %v156
    %v173 = vadd.f32 %v141, %v157
    %v174 = vadd.f32 %v142, %v158
    %v175 = vadd.f32 %v143, %v159
    %v176 = vld [vmem:[#allocation8] sm:$0xff]
    %v177 = vld [vmem:[#allocation8 + $0x8] sm:$0xff]
    %v178 = vld [vmem:[#allocation8 + $0x10] sm:$0xff]
    %v179 = vld [vmem:[#allocation8 + $0x18] sm:$0xff]
    %v180 = vld [vmem:[#allocation8 + $0x20] sm:$0xff]
    %v181 = vld [vmem:[#allocation8 + $0x28] sm:$0xff]
    %v182 = vld [vmem:[#allocation8 + $0x30] sm:$0xff]
    %v183 = vld [vmem:[#allocation8 + $0x38] sm:$0xff]
    %v184 = vld [vmem:[#allocation8 + $0x40] sm:$0xff]
    %v185 = vld [vmem:[#allocation8 + $0x48] sm:$0xff]
    %v186 = vld [vmem:[#allocation8 + $0x50] sm:$0xff]
    %v187 = vld [vmem:[#allocation8 + $0x58] sm:$0xff]
    %v188 = vld [vmem:[#allocation8 + $0x60] sm:$0xff]
    %v189 = vld [vmem:[#allocation8 + $0x68] sm:$0xff]
    %v190 = vld [vmem:[#allocation8 + $0x70] sm:$0xff]
    %v191 = vld [vmem:[#allocation8 + $0x78] sm:$0xff]
    %v192 = vadd.f32 %v128, %v176
    %v193 = vadd.f32 %v129, %v177
    %v194 = vadd.f32 %v130, %v178
    %v195 = vadd.f32 %v131, %v179
    %v196 = vadd.f32 %v132, %v180
    %v197 = vadd.f32 %v133, %v181
    %v198 = vadd.f32 %v134, %v182
    %v199 = vadd.f32 %v135, %v183
    %v200 = vadd.f32 %v136, %v184
    %v201 = vadd.f32 %v137, %v185
    %v202 = vadd.f32 %v138, %v186
    %v203 = vadd.f32 %v139, %v187
    %v204 = vadd.f32 %v140, %v188
    %v205 = vadd.f32 %v141, %v189
    %v206 = vadd.f32 %v142, %v190
    %v207 = vadd.f32 %v143, %v191
    %vm208 = vcmask 261120
    %209 = vst.msk [vmem:[#allocation10] sm:$0xff] %vm208, %v160
    %210 = vst.msk [vmem:[#allocation10 + $0x8] sm:$0xff] %vm208, %v161
    %211 = vst.msk [vmem:[#allocation10 + $0x10] sm:$0xff] %vm208, %v162
    %212 = vst.msk [vmem:[#allocation10 + $0x18] sm:$0xff] %vm208, %v163
    %213 = vst.msk [vmem:[#allocation10 + $0x20] sm:$0xff] %vm208, %v164
    %214 = vst.msk [vmem:[#allocation10 + $0x28] sm:$0xff] %vm208, %v165
    %215 = vst.msk [vmem:[#allocation10 + $0x30] sm:$0xff] %vm208, %v166
    %216 = vst.msk [vmem:[#allocation10 + $0x38] sm:$0xff] %vm208, %v167
    %217 = vst.msk [vmem:[#allocation10 + $0x40] sm:$0xff] %vm208, %v168
    %218 = vst.msk [vmem:[#allocation10 + $0x48] sm:$0xff] %vm208, %v169
    %219 = vst.msk [vmem:[#allocation10 + $0x50] sm:$0xff] %vm208, %v170
    %220 = vst.msk [vmem:[#allocation10 + $0x58] sm:$0xff] %vm208, %v171
    %221 = vst.msk [vmem:[#allocation10 + $0x60] sm:$0xff] %vm208, %v172
    %222 = vst.msk [vmem:[#allocation10 + $0x68] sm:$0xff] %vm208, %v173
    %223 = vst.msk [vmem:[#allocation10 + $0x70] sm:$0xff] %vm208, %v174
    %224 = vst.msk [vmem:[#allocation10 + $0x78] sm:$0xff] %vm208, %v175
    %225 = vst.msk [vmem:[#allocation11] sm:$0xff] %vm208, %v192
    %226 = vst.msk [vmem:[#allocation11 + $0x8] sm:$0xff] %vm208, %v193
    %227 = vst.msk [vmem:[#allocation11 + $0x10] sm:$0xff] %vm208, %v194
    %228 = vst.msk [vmem:[#allocation11 + $0x18] sm:$0xff] %vm208, %v195
    %229 = vst.msk [vmem:[#allocation11 + $0x20] sm:$0xff] %vm208, %v196
    %230 = vst.msk [vmem:[#allocation11 + $0x28] sm:$0xff] %vm208, %v197
    %231 = vst.msk [vmem:[#allocation11 + $0x30] sm:$0xff] %vm208, %v198
    %232 = vst.msk [vmem:[#allocation11 + $0x38] sm:$0xff] %vm208, %v199
    %233 = vst.msk [vmem:[#allocation11 + $0x40] sm:$0xff] %vm208, %v200
    %234 = vst.msk [vmem:[#allocation11 + $0x48] sm:$0xff] %vm208, %v201
    %235 = vst.msk [vmem:[#allocation11 + $0x50] sm:$0xff] %vm208, %v202
    %236 = vst.msk [vmem:[#allocation11 + $0x58] sm:$0xff] %vm208, %v203
    %237 = vst.msk [vmem:[#allocation11 + $0x60] sm:$0xff] %vm208, %v204
    %238 = vst.msk [vmem:[#allocation11 + $0x68] sm:$0xff] %vm208, %v205
    %239 = vst.msk [vmem:[#allocation11 + $0x70] sm:$0xff] %vm208, %v206
    %240 = vst.msk [vmem:[#allocation11 + $0x78] sm:$0xff] %vm208, %v207
    %v241 = vpack.c.bf16 %v161, %v160
    %v242 = vpack.c.bf16 %v163, %v162
    %v243 = vpack.c.bf16 %v165, %v164
    %v244 = vpack.c.bf16 %v167, %v166
    %v245 = vpack.c.bf16 %v169, %v168
    %v246 = vpack.c.bf16 %v171, %v170
    %v247 = vpack.c.bf16 %v173, %v172
    %v248 = vpack.c.bf16 %v175, %v174
    %v249 = vld [vmem:[%s4] sm:$0xf]
    %v250 = vld [vmem:[%s4 + $0x4] sm:$0xf]
    %v251 = vld [vmem:[%s4 + $0x8] sm:$0xf]
    %v252 = vld [vmem:[%s4 + $0xc] sm:$0xf]
    %v257 = vunpack.c.l.b16 %v249
    %v258 = vunpack.c.l.b16 %v250
    %v259 = vunpack.c.l.b16 %v251
    %v260 = vunpack.c.l.b16 %v252
    %v261 = vpack.c.b16 %v258, %v257
    %v262 = vpack.c.b16 %v260, %v259
    %v266 = vsel %vm208, %v241, 0
    %v269 = vsel %vm208, %v242, 0
    %v272 = vsel %vm208, %v243, 0
    %v275 = vsel %vm208, %v244, 0
    %v278 = vsel %vm208, %v245, 0
    %v281 = vsel %vm208, %v246, 0
    %v284 = vsel %vm208, %v247, 0
    %v287 = vsel %vm208, %v248, 0
    %289 = vmatprep.subr.bf16.mxu0 0
    %290 = vmatpush1.bf16.msra.mxu0 %v261
    %291 = vmatprep.subr.bf16.mxu0 0
    %292 = vmatpush1.bf16.msra.mxu0 %v262
    %293 = vmatprep.subr.bf16.mxu0 0
    %294 = vmatpush1.bf16.msra.mxu0 0
    %295 = vmatprep.subr.bf16.mxu0 0
    %296 = vmatpush1.bf16.msra.mxu0 0
    %297 = vmatprep.subr.bf16.mxu0 0
    %298 = vmatpush1.bf16.msra.mxu0 0
    %299 = vmatprep.subr.bf16.mxu0 0
    %300 = vmatpush1.bf16.msra.mxu0 0
    %301 = vmatprep.subr.bf16.mxu0 0
    %302 = vmatpush1.bf16.msra.mxu0 0
    %303 = vmatprep.subr.bf16.mxu0 0
    %304 = vmatpush1.bf16.msra.mxu0 0
    %305 = vmatprep.subr.bf16.mxu0 0
    %306 = vmatpush1.bf16.msra.mxu0 0
    %307 = vmatprep.subr.bf16.mxu0 0
    %308 = vmatpush1.bf16.msra.mxu0 0
    %309 = vmatprep.subr.bf16.mxu0 0
    %310 = vmatpush1.bf16.msra.mxu0 0
    %311 = vmatprep.subr.bf16.mxu0 0
    %312 = vmatpush1.bf16.msra.mxu0 0
    %313 = vmatprep.subr.bf16.mxu0 0
    %314 = vmatpush1.bf16.msra.mxu0 0
    %315 = vmatprep.subr.bf16.mxu0 0
    %316 = vmatpush1.bf16.msra.mxu0 0
    %317 = vmatprep.subr.bf16.mxu0 0
    %318 = vmatpush1.bf16.msra.mxu0 0
    %319 = vmatprep.subr.bf16.mxu0 0
    %320 = vmatpush1.bf16.msra.mxu0 0
    %321 = vmatprep.mubr.bf16.mxu0 0
    %322 = vmatmul.mubr.bf16.gmra.mrb[0].mxu0 %v266
    %v323 = vpop.f32.mrb[0].mxu0
    %v324 = vadd.f32 0.0, %v323
    %v325 = vpop.f32.mrb[0].mxu0
    %v326 = vpop.f32.mrb[0].mxu0
    %v327 = vadd.f32 0.0, %v326
    %v328 = vpop.f32.mrb[0].mxu0
    %329 = vmatprep.mubr.bf16.mxu0 0
    %330 = vmatmul.mubr.bf16.gmra.mrb[0].mxu0 %v269
    %v331 = vpop.f32.mrb[0].mxu0
    %v332 = vadd.f32 0.0, %v331
    %v333 = vpop.f32.mrb[0].mxu0
    %v334 = vpop.f32.mrb[0].mxu0
    %v335 = vadd.f32 0.0, %v334
    %v336 = vpop.f32.mrb[0].mxu0
    %337 = vmatprep.mubr.bf16.mxu0 0
    %338 = vmatmul.mubr.bf16.gmra.mrb[0].mxu0 %v272
    %v339 = vpop.f32.mrb[0].mxu0
    %v340 = vadd.f32 0.0, %v339
    %v341 = vpop.f32.mrb[0].mxu0
    %v342 = vpop.f32.mrb[0].mxu0
    %v343 = vadd.f32 0.0, %v342
    %v344 = vpop.f32.mrb[0].mxu0
    %345 = vmatprep.mubr.bf16.mxu0 0
    %346 = vmatmul.mubr.bf16.gmra.mrb[0].mxu0 %v275
    %v347 = vpop.f32.mrb[0].mxu0
    %v348 = vadd.f32 0.0, %v347
    %v349 = vpop.f32.mrb[0].mxu0
    %v350 = vpop.f32.mrb[0].mxu0
    %v351 = vadd.f32 0.0, %v350
    %v352 = vpop.f32.mrb[0].mxu0
    %353 = vmatprep.mubr.bf16.mxu0 0
    %354 = vmatmul.mubr.bf16.gmra.mrb[0].mxu0 %v278
    %v355 = vpop.f32.mrb[0].mxu0
    %v356 = vadd.f32 0.0, %v355
    %v357 = vpop.f32.mrb[0].mxu0
    %v358 = vpop.f32.mrb[0].mxu0
    %v359 = vadd.f32 0.0, %v358
    %v360 = vpop.f32.mrb[0].mxu0
    %361 = vmatprep.mubr.bf16.mxu0 0
    %362 = vmatmul.mubr.bf16.gmra.mrb[0].mxu0 %v281
    %v363 = vpop.f32.mrb[0].mxu0
    %v364 = vadd.f32 0.0, %v363
    %v365 = vpop.f32.mrb[0].mxu0
    %v366 = vpop.f32.mrb[0].mxu0
    %v367 = vadd.f32 0.0, %v366
    %v368 = vpop.f32.mrb[0].mxu0
    %369 = vmatprep.mubr.bf16.mxu0 0
    %370 = vmatmul.mubr.bf16.gmra.mrb[0].mxu0 %v284
    %v371 = vpop.f32.mrb[0].mxu0
    %v372 = vadd.f32 0.0, %v371
    %v373 = vpop.f32.mrb[0].mxu0
    %v374 = vpop.f32.mrb[0].mxu0
    %v375 = vadd.f32 0.0, %v374
    %v376 = vpop.f32.mrb[0].mxu0
    %377 = vmatprep.mubr.bf16.mxu0 0
    %378 = vmatmul.mubr.bf16.gmra.mrb[0].mxu0 %v287
    %v379 = vpop.f32.mrb[0].mxu0
    %v380 = vadd.f32 0.0, %v379
    %v381 = vpop.f32.mrb[0].mxu0
    %v382 = vpop.f32.mrb[0].mxu0
    %v383 = vadd.f32 0.0, %v382
    %v384 = vpop.f32.mrb[0].mxu0
    %385 = vdwg.mxu0
    %v386 = vld [vmem:[%s5] sm:$0x1]
    %v388 = vlaneseq
    %v389 = vshrl.u32 %v388, 7
    %v390 = vsub.s32 0, %v389
    %v391 = vrot.slane %v386, %v390
    %v393 = vmul.f32 %v324, %v391
    %v394 = vmul.f32 %v327, %v391
    %v395 = vmul.f32 %v332, %v391
    %v396 = vmul.f32 %v335, %v391
    %v397 = vmul.f32 %v340, %v391
    %v398 = vmul.f32 %v343, %v391
    %v399 = vmul.f32 %v348, %v391
    %v400 = vmul.f32 %v351, %v391
    %v401 = vmul.f32 %v356, %v391
    %v402 = vmul.f32 %v359, %v391
    %v403 = vmul.f32 %v364, %v391
    %v404 = vmul.f32 %v367, %v391
    %v405 = vmul.f32 %v372, %v391
    %v406 = vmul.f32 %v375, %v391
    %v407 = vmul.f32 %v380, %v391
    %v408 = vmul.f32 %v383, %v391
    %v409 = vld [vmem:[%s6] sm:$0x1]
    %v411 = vlaneseq
    %v412 = vshrl.u32 %v411, 7
    %v413 = vsub.s32 0, %v412
    %v414 = vrot.slane %v409, %v413
    %v416 = vadd.f32 %v393, %v414
    %v417 = vadd.f32 %v394, %v414
    %v418 = vadd.f32 %v395, %v414
    %v419 = vadd.f32 %v396, %v414
    %v420 = vadd.f32 %v397, %v414
    %v421 = vadd.f32 %v398, %v414
    %v422 = vadd.f32 %v399, %v414
    %v423 = vadd.f32 %v400, %v414
    %v424 = vadd.f32 %v401, %v414
    %v425 = vadd.f32 %v402, %v414
    %v426 = vadd.f32 %v403, %v414
    %v427 = vadd.f32 %v404, %v414
    %v428 = vadd.f32 %v405, %v414
    %v429 = vadd.f32 %v406, %v414
    %v430 = vadd.f32 %v407, %v414
    %v431 = vadd.f32 %v408, %v414
    %v432 = vmax.f32 %v416, 0.0
    %v433 = vmax.f32 %v417, 0.0
    %v434 = vmax.f32 %v418, 0.0
    %v435 = vmax.f32 %v419, 0.0
    %v436 = vmax.f32 %v420, 0.0
    %v437 = vmax.f32 %v421, 0.0
    %v438 = vmax.f32 %v422, 0.0
    %v439 = vmax.f32 %v423, 0.0
    %v440 = vmax.f32 %v424, 0.0
    %v441 = vmax.f32 %v425, 0.0
    %v442 = vmax.f32 %v426, 0.0
    %v443 = vmax.f32 %v427, 0.0
    %v444 = vmax.f32 %v428, 0.0
    %v445 = vmax.f32 %v429, 0.0
    %v446 = vmax.f32 %v430, 0.0
    %v447 = vmax.f32 %v431, 0.0
    %v448 = vpack.c.bf16 %v193, %v192
    %v449 = vpack.c.bf16 %v195, %v194
    %v450 = vpack.c.bf16 %v197, %v196
    %v451 = vpack.c.bf16 %v199, %v198
    %v452 = vpack.c.bf16 %v201, %v200
    %v453 = vpack.c.bf16 %v203, %v202
    %v454 = vpack.c.bf16 %v205, %v204
    %v455 = vpack.c.bf16 %v207, %v206
    %v456 = vld [vmem:[%s7] sm:$0xf]
    %v457 = vld [vmem:[%s7 + $0x4] sm:$0xf]
    %v458 = vld [vmem:[%s7 + $0x8] sm:$0xf]
    %v459 = vld [vmem:[%s7 + $0xc] sm:$0xf]
    %v464 = vunpack.c.l.b16 %v456
    %v465 = vunpack.c.l.b16 %v457
    %v466 = vunpack.c.l.b16 %v458
    %v467 = vunpack.c.l.b16 %v459
    %v468 = vpack.c.b16 %v465, %v464
    %v469 = vpack.c.b16 %v467, %v466
    %v473 = vsel %vm208, %v448, 0
    %v476 = vsel %vm208, %v449, 0
    %v479 = vsel %vm208, %v450, 0
    %v482 = vsel %vm208, %v451, 0
    %v485 = vsel %vm208, %v452, 0
    %v488 = vsel %vm208, %v453, 0
    %v491 = vsel %vm208, %v454, 0
    %v494 = vsel %vm208, %v455, 0
    %496 = vmatprep.subr.bf16.mxu0 0
    %497 = vmatpush1.bf16.msra.mxu0 %v468
    %498 = vmatprep.subr.bf16.mxu0 0
    %499 = vmatpush1.bf16.msra.mxu0 %v469
    %500 = vmatprep.subr.bf16.mxu0 0
    %501 = vmatpush1.bf16.msra.mxu0 0
    %502 = vmatprep.subr.bf16.mxu0 0
    %503 = vmatpush1.bf16.msra.mxu0 0
    %504 = vmatprep.subr.bf16.mxu0 0
    %505 = vmatpush1.bf16.msra.mxu0 0
    %506 = vmatprep.subr.bf16.mxu0 0
    %507 = vmatpush1.bf16.msra.mxu0 0
    %508 = vmatprep.subr.bf16.mxu0 0
    %509 = vmatpush1.bf16.msra.mxu0 0
    %510 = vmatprep.subr.bf16.mxu0 0
    %511 = vmatpush1.bf16.msra.mxu0 0
    %512 = vmatprep.subr.bf16.mxu0 0
    %513 = vmatpush1.bf16.msra.mxu0 0
    %514 = vmatprep.subr.bf16.mxu0 0
    %515 = vmatpush1.bf16.msra.mxu0 0
    %516 = vmatprep.subr.bf16.mxu0 0
    %517 = vmatpush1.bf16.msra.mxu0 0
    %518 = vmatprep.subr.bf16.mxu0 0
    %519 = vmatpush1.bf16.msra.mxu0 0
    %520 = vmatprep.subr.bf16.mxu0 0
    %521 = vmatpush1.bf16.msra.mxu0 0
    %522 = vmatprep.subr.bf16.mxu0 0
    %523 = vmatpush1.bf16.msra.mxu0 0
    %524 = vmatprep.subr.bf16.mxu0 0
    %525 = vmatpush1.bf16.msra.mxu0 0
    %526 = vmatprep.subr.bf16.mxu0 0
    %527 = vmatpush1.bf16.msra.mxu0 0
    %528 = vmatprep.mubr.bf16.mxu0 0
    %529 = vmatmul.mubr.bf16.gmra.mrb[0].mxu0 %v473
    %v530 = vpop.f32.mrb[0].mxu0
    %v531 = vadd.f32 0.0, %v530
    %v532 = vpop.f32.mrb[0].mxu0
    %v533 = vpop.f32.mrb[0].mxu0
    %v534 = vadd.f32 0.0, %v533
    %v535 = vpop.f32.mrb[0].mxu0
    %536 = vmatprep.mubr.bf16.mxu0 0
    %537 = vmatmul.mubr.bf16.gmra.mrb[0].mxu0 %v476
    %v538 = vpop.f32.mrb[0].mxu0
    %v539 = vadd.f32 0.0, %v538
    %v540 = vpop.f32.mrb[0].mxu0
    %v541 = vpop.f32.mrb[0].mxu0
    %v542 = vadd.f32 0.0, %v541
    %v543 = vpop.f32.mrb[0].mxu0
    %544 = vmatprep.mubr.bf16.mxu0 0
    %545 = vmatmul.mubr.bf16.gmra.mrb[0].mxu0 %v479
    %v546 = vpop.f32.mrb[0].mxu0
    %v547 = vadd.f32 0.0, %v546
    %v548 = vpop.f32.mrb[0].mxu0
    %v549 = vpop.f32.mrb[0].mxu0
    %v550 = vadd.f32 0.0, %v549
    %v551 = vpop.f32.mrb[0].mxu0
    %552 = vmatprep.mubr.bf16.mxu0 0
    %553 = vmatmul.mubr.bf16.gmra.mrb[0].mxu0 %v482
    %v554 = vpop.f32.mrb[0].mxu0
    %v555 = vadd.f32 0.0, %v554
    %v556 = vpop.f32.mrb[0].mxu0
    %v557 = vpop.f32.mrb[0].mxu0
    %v558 = vadd.f32 0.0, %v557
    %v559 = vpop.f32.mrb[0].mxu0
    %560 = vmatprep.mubr.bf16.mxu0 0
    %561 = vmatmul.mubr.bf16.gmra.mrb[0].mxu0 %v485
    %v562 = vpop.f32.mrb[0].mxu0
    %v563 = vadd.f32 0.0, %v562
    %v564 = vpop.f32.mrb[0].mxu0
    %v565 = vpop.f32.mrb[0].mxu0
    %v566 = vadd.f32 0.0, %v565
    %v567 = vpop.f32.mrb[0].mxu0
    %568 = vmatprep.mubr.bf16.mxu0 0
    %569 = vmatmul.mubr.bf16.gmra.mrb[0].mxu0 %v488
    %v570 = vpop.f32.mrb[0].mxu0
    %v571 = vadd.f32 0.0, %v570
    %v572 = vpop.f32.mrb[0].mxu0
    %v573 = vpop.f32.mrb[0].mxu0
    %v574 = vadd.f32 0.0, %v573
    %v575 = vpop.f32.mrb[0].mxu0
    %576 = vmatprep.mubr.bf16.mxu0 0
    %577 = vmatmul.mubr.bf16.gmra.mrb[0].mxu0 %v491
    %v578 = vpop.f32.mrb[0].mxu0
    %v579 = vadd.f32 0.0, %v578
    %v580 = vpop.f32.mrb[0].mxu0
    %v581 = vpop.f32.mrb[0].mxu0
    %v582 = vadd.f32 0.0, %v581
    %v583 = vpop.f32.mrb[0].mxu0
    %584 = vmatprep.mubr.bf16.mxu0 0
    %585 = vmatmul.mubr.bf16.gmra.mrb[0].mxu0 %v494
    %v586 = vpop.f32.mrb[0].mxu0
    %v587 = vadd.f32 0.0, %v586
    %v588 = vpop.f32.mrb[0].mxu0
    %v589 = vpop.f32.mrb[0].mxu0
    %v590 = vadd.f32 0.0, %v589
    %v591 = vpop.f32.mrb[0].mxu0
    %592 = vdwg.mxu0
    %v593 = vld [vmem:[%s8] sm:$0x1]
    %v595 = vlaneseq
    %v596 = vshrl.u32 %v595, 7
    %v597 = vsub.s32 0, %v596
    %v598 = vrot.slane %v593, %v597
    %v600 = vmul.f32 %v531, %v598
    %v601 = vmul.f32 %v534, %v598
    %v602 = vmul.f32 %v539, %v598
    %v603 = vmul.f32 %v542, %v598
    %v604 = vmul.f32 %v547, %v598
    %v605 = vmul.f32 %v550, %v598
    %v606 = vmul.f32 %v555, %v598
    %v607 = vmul.f32 %v558, %v598
    %v608 = vmul.f32 %v563, %v598
    %v609 = vmul.f32 %v566, %v598
    %v610 = vmul.f32 %v571, %v598
    %v611 = vmul.f32 %v574, %v598
    %v612 = vmul.f32 %v579, %v598
    %v613 = vmul.f32 %v582, %v598
    %v614 = vmul.f32 %v587, %v598
    %v615 = vmul.f32 %v590, %v598
    %v616 = vld [vmem:[%s9] sm:$0x1]
    %v618 = vlaneseq
    %v619 = vshrl.u32 %v618, 7
    %v620 = vsub.s32 0, %v619
    %v621 = vrot.slane %v616, %v620
    %v623 = vadd.f32 %v600, %v621
    %v624 = vadd.f32 %v601, %v621
    %v625 = vadd.f32 %v602, %v621
    %v626 = vadd.f32 %v603, %v621
    %v627 = vadd.f32 %v604, %v621
    %v628 = vadd.f32 %v605, %v621
    %v629 = vadd.f32 %v606, %v621
    %v630 = vadd.f32 %v607, %v621
    %v631 = vadd.f32 %v608, %v621
    %v632 = vadd.f32 %v609, %v621
    %v633 = vadd.f32 %v610, %v621
    %v634 = vadd.f32 %v611, %v621
    %v635 = vadd.f32 %v612, %v621
    %v636 = vadd.f32 %v613, %v621
    %v637 = vadd.f32 %v614, %v621
    %v638 = vadd.f32 %v615, %v621
    %v639 = vmax.f32 %v623, 0.0
    %v640 = vmax.f32 %v624, 0.0
    %v641 = vmax.f32 %v625, 0.0
    %v642 = vmax.f32 %v626, 0.0
    %v643 = vmax.f32 %v627, 0.0
    %v644 = vmax.f32 %v628, 0.0
    %v645 = vmax.f32 %v629, 0.0
    %v646 = vmax.f32 %v630, 0.0
    %v647 = vmax.f32 %v631, 0.0
    %v648 = vmax.f32 %v632, 0.0
    %v649 = vmax.f32 %v633, 0.0
    %v650 = vmax.f32 %v634, 0.0
    %v651 = vmax.f32 %v635, 0.0
    %v652 = vmax.f32 %v636, 0.0
    %v653 = vmax.f32 %v637, 0.0
    %v654 = vmax.f32 %v638, 0.0
    %v655 = vadd.f32 %v432, %v639
    %v656 = vadd.f32 %v433, %v640
    %v657 = vadd.f32 %v434, %v641
    %v658 = vadd.f32 %v435, %v642
    %v659 = vadd.f32 %v436, %v643
    %v660 = vadd.f32 %v437, %v644
    %v661 = vadd.f32 %v438, %v645
    %v662 = vadd.f32 %v439, %v646
    %v663 = vadd.f32 %v440, %v647
    %v664 = vadd.f32 %v441, %v648
    %v665 = vadd.f32 %v442, %v649
    %v666 = vadd.f32 %v443, %v650
    %v667 = vadd.f32 %v444, %v651
    %v668 = vadd.f32 %v445, %v652
    %v669 = vadd.f32 %v446, %v653
    %v670 = vadd.f32 %v447, %v654
    %v671 = vadd.f32 %v655, %v96
    %v672 = vadd.f32 %v656, %v97
    %v673 = vadd.f32 %v657, %v98
    %v674 = vadd.f32 %v658, %v99
    %v675 = vadd.f32 %v659, %v100
    %v676 = vadd.f32 %v660, %v101
    %v677 = vadd.f32 %v661, %v102
    %v678 = vadd.f32 %v662, %v103
    %v679 = vadd.f32 %v663, %v104
    %v680 = vadd.f32 %v664, %v105
    %v681 = vadd.f32 %v665, %v106
    %v682 = vadd.f32 %v666, %v107
    %v683 = vadd.f32 %v667, %v108
    %v684 = vadd.f32 %v668, %v109
    %v685 = vadd.f32 %v669, %v110
    %v686 = vadd.f32 %v670, %v111
    %687 = vst.msk [vmem:[%s12] sm:$0xff] %vm208, %v671
    %688 = vst.msk [vmem:[%s12 + $0x8] sm:$0xff] %vm208, %v672
    %689 = vst.msk [vmem:[%s12 + $0x10] sm:$0xff] %vm208, %v673
    %690 = vst.msk [vmem:[%s12 + $0x18] sm:$0xff] %vm208, %v674
    %691 = vst.msk [vmem:[%s12 + $0x20] sm:$0xff] %vm208, %v675
    %692 = vst.msk [vmem:[%s12 + $0x28] sm:$0xff] %vm208, %v676
    %693 = vst.msk [vmem:[%s12 + $0x30] sm:$0xff] %vm208, %v677
    %694 = vst.msk [vmem:[%s12 + $0x38] sm:$0xff] %vm208, %v678
    %695 = vst.msk [vmem:[%s12 + $0x40] sm:$0xff] %vm208, %v679
    %696 = vst.msk [vmem:[%s12 + $0x48] sm:$0xff] %vm208, %v680
    %697 = vst.msk [vmem:[%s12 + $0x50] sm:$0xff] %vm208, %v681
    %698 = vst.msk [vmem:[%s12 + $0x58] sm:$0xff] %vm208, %v682
    %699 = vst.msk [vmem:[%s12 + $0x60] sm:$0xff] %vm208, %v683
    %700 = vst.msk [vmem:[%s12 + $0x68] sm:$0xff] %vm208, %v684
    %701 = vst.msk [vmem:[%s12 + $0x70] sm:$0xff] %vm208, %v685
    %702 = vst.msk [vmem:[%s12 + $0x78] sm:$0xff] %vm208, %v686
    // Predicated region
    $region58: #{collab_forward.7} parent=1 // pred_check
      _
    $region59: #{collab_forward.7} parent=1 // pred_check_branch
      %704 = sbr.rel (0) target = $region61
    $region60: #{collab_forward.7} parent=1 // pred_region
      %s706 = ssub.s32 2048, 2048
      %707 = vsyncadd [#allocation4], %s706
      %s708 = sshll.u32 [#allocation10], 4
      %s709 = int_to_ptr.vmem [resolvable:$true] %s708
      %714 = dma.vmem_to_hbm [thread:$0]  %s709, 2048, %s10, [#allocation4], 128, 128, 8
    $region61: #{collab_forward.7} parent=1 // pred_fallthru
      _
    // Predicated region
    $region62: #{collab_forward.7} parent=1 // pred_check
      _
    $region63: #{collab_forward.7} parent=1 // pred_check_branch
      %716 = sbr.rel (0) target = $region65
    $region64: #{collab_forward.7} parent=1 // pred_region
      %s718 = ssub.s32 2048, 2048
      %719 = vsyncadd [#allocation12], %s718
      %s720 = sshll.u32 [#allocation11], 4
      %s721 = int_to_ptr.vmem [resolvable:$true] %s720
      %726 = dma.vmem_to_hbm [thread:$0]  %s721, 2048, %s11, [#allocation12], 128, 128, 8
    $region65: #{collab_forward.7} parent=1 // pred_fallthru
      _
    // Predicated region
    $region66: #{collab_forward.7} parent=1 // pred_check
      _
    $region67: #{collab_forward.7} parent=1 // pred_check_branch
      %728 = sbr.rel (0) target = $region69
    $region68: #{collab_forward.7} parent=1 // pred_region
      _
    $region69: #{collab_forward.7} parent=1 // pred_fallthru
      _
    // Predicated region
    $region70: #{collab_forward.7} parent=1 // pred_check
      _
    $region71: #{collab_forward.7} parent=1 // pred_check_branch
      %730 = sbr.rel (0) target = $region73
    $region72: #{collab_forward.7} parent=1 // pred_region
      %731 = dma.done [#allocation4], 2048
    $region73: #{collab_forward.7} parent=1 // pred_fallthru
      _
    // Predicated region
    $region74: #{collab_forward.7} parent=1 // pred_check
      _
    $region75: #{collab_forward.7} parent=1 // pred_check_branch
      %733 = sbr.rel (0) target = $region77
    $region76: #{collab_forward.7} parent=1 // pred_region
      %734 = dma.done [#allocation12], 2048
    $region77: #{collab_forward.7} parent=1 // pred_fallthru
      _
    // Predicated region
    $region78: #{collab_forward.7} parent=1 // pred_check
      _
    $region79: #{collab_forward.7} parent=1 // pred_check_branch
      %736 = sbr.rel (0) target = $region81
    $region80: #{collab_forward.7} parent=1 // pred_region
      _
    $region81: #{collab_forward.7} parent=1 // pred_fallthru
      _
    %737 = vsyncpa [#allocation3], 1
    %738 = vsyncpa [#allocation6], 1
    %739 = vsyncpa [#allocation9], 1
    %740 = vsyncpa [#allocation4], 1
    %741 = vsyncpa [#allocation12], 1

// kernel: collab_forward.9
$region0: #{collab_forward.9}
  #allocation0 [shape = 'u32[]', space=smem, size = 0x4, offset = 0x4, fixed_abs, tag = 'smem constant byte address 0x4 - core index']
  #allocation1 [shape = 'u32[144,128]{1,0:T(1,128)}', space=vmem, size = 0x12000, scoped, tag = 'internal scratch']
  %s0 = inlined_call_operand.vmem [shape: f32[2,10,10,64], index: 0, kind: input, shape index: {}]
  %s1 = inlined_call_operand.vmem [shape: bf16[576,64], index: 1, kind: input, shape index: {}]
  %s2 = inlined_call_operand.vmem [shape: f32[1,64], index: 2, kind: input, shape index: {}]
  %s3 = inlined_call_operand.vmem [shape: f32[1,64], index: 3, kind: input, shape index: {}]
  %s4 = inlined_call_operand.vmem [shape: f32[2,4,4,64], index: 4, kind: output, shape index: {}]
  %s5 = sld [smem:[#allocation0]]
  $region49: #{collab_forward.9} parent=0
    _
  %s7 = ssub.s32 1, %s5
  %s8 = scalar_select 0, %s7, %s5
  loop: start=0, step=1, limit=4
  $region2: #{collab_forward.9} parent=0 // loop_pre_header
    _
  $region3: #{collab_forward.9} parent=0 // loop_header
    %s10 = sphi 0, %s14
    %p11 = scmp.ge.s32.totalorder %s10, 4
    %s20 = sphi 0, %s22
    %s23 = sphi 0, %s20
    %s24 = sphi 0, %s23
    %s40 = sphi 0, %s24
    %s44 = sphi 0, %s44
    %s46 = sphi 0, %s44
    %s47 = sphi 0, %s46
    %s61 = sphi 0, %s47
    %s65 = sphi 0, %s65
    %s67 = sphi 0, %s65
    %s68 = sphi 0, %s67
    %s82 = sphi 0, %s68
    %s86 = sphi 0, %s86
    %s88 = sphi 0, %s86
    %s89 = sphi 0, %s88
    %s103 = sphi 0, %s89
    %s109 = sphi 0, %s111
    %s112 = sphi 0, %s109
    %s113 = sphi 0, %s112
    %s129 = sphi 0, %s113
  $region4: #{collab_forward.9} parent=0 // loop_header_branch
    %13 = sbr.rel (%p11) target = $region8
  $region5: #{collab_forward.9} parent=0 // loop_body
    %s15 = ssub.s32 %s10, 1
    %s16 = ssub.s32 %s10, 2
    %s17 = sadd.s32 %s10, 1
    %s18 = ssub.s32 %s10, %s17
    %p19 = scmp.eq.s32.totalorder %s18, 0
    %s21 = sadd.s32 %s20, 1
    %s22 = scalar_select %p19, %s20, %s21
    %p25 = pneg %p19
    %p26 = scmp.eq.s32.totalorder %s10, 1
    %p27 = por %p25, %p26
    %p28 = scmp.ne.s32.totalorder %s20, %s23
    %p29 = scmp.eq.s32.totalorder %s10, 0
    %p30 = por %p28, %p29
    %p31 = scmp.ne.s32.totalorder %s20, %s23
    %p32 = scmp.eq.s32.totalorder %s15, 1
    %p33 = por %p31, %p32
    %p34 = scmp.ne.s32.totalorder %s23, %s24
    %p35 = scmp.eq.s32.totalorder %s15, 0
    %p36 = por %p34, %p35
    %p37 = scmp.ne.s32.totalorder %s23, %s24
    %p38 = scmp.eq.s32.totalorder %s16, 1
    %p39 = por %p37, %p38
    %p41 = scmp.ne.s32.totalorder %s24, %s40
    %p42 = scmp.eq.s32.totalorder %s16, 0
    %p43 = por %p41, %p42
    %s45 = sadd.s32 %s44, 1
    %p48 = scmp.eq.s32.totalorder %s10, 1
    %p49 = scmp.ne.s32.totalorder %s44, %s46
    %p50 = scmp.eq.s32.totalorder %s10, 0
    %p51 = por %p49, %p50
    %p52 = scmp.ne.s32.totalorder %s44, %s46
    %p53 = scmp.eq.s32.totalorder %s15, 1
    %p54 = por %p52, %p53
    %p55 = scmp.ne.s32.totalorder %s46, %s47
    %p56 = scmp.eq.s32.totalorder %s15, 0
    %p57 = por %p55, %p56
    %p58 = scmp.ne.s32.totalorder %s46, %s47
    %p59 = scmp.eq.s32.totalorder %s16, 1
    %p60 = por %p58, %p59
    %p62 = scmp.ne.s32.totalorder %s47, %s61
    %p63 = scmp.eq.s32.totalorder %s16, 0
    %p64 = por %p62, %p63
    %s66 = sadd.s32 %s65, 1
    %p69 = scmp.eq.s32.totalorder %s10, 1
    %p70 = scmp.ne.s32.totalorder %s65, %s67
    %p71 = scmp.eq.s32.totalorder %s10, 0
    %p72 = por %p70, %p71
    %p73 = scmp.ne.s32.totalorder %s65, %s67
    %p74 = scmp.eq.s32.totalorder %s15, 1
    %p75 = por %p73, %p74
    %p76 = scmp.ne.s32.totalorder %s67, %s68
    %p77 = scmp.eq.s32.totalorder %s15, 0
    %p78 = por %p76, %p77
    %p79 = scmp.ne.s32.totalorder %s67, %s68
    %p80 = scmp.eq.s32.totalorder %s16, 1
    %p81 = por %p79, %p80
    %p83 = scmp.ne.s32.totalorder %s68, %s82
    %p84 = scmp.eq.s32.totalorder %s16, 0
    %p85 = por %p83, %p84
    %s87 = sadd.s32 %s86, 1
    %p90 = scmp.eq.s32.totalorder %s10, 1
    %p91 = scmp.ne.s32.totalorder %s86, %s88
    %p92 = scmp.eq.s32.totalorder %s10, 0
    %p93 = por %p91, %p92
    %p94 = scmp.ne.s32.totalorder %s86, %s88
    %p95 = scmp.eq.s32.totalorder %s15, 1
    %p96 = por %p94, %p95
    %p97 = scmp.ne.s32.totalorder %s88, %s89
    %p98 = scmp.eq.s32.totalorder %s15, 0
    %p99 = por %p97, %p98
    %p100 = scmp.ne.s32.totalorder %s88, %s89
    %p101 = scmp.eq.s32.totalorder %s16, 1
    %p102 = por %p100, %p101
    %p104 = scmp.ne.s32.totalorder %s89, %s103
    %p105 = scmp.eq.s32.totalorder %s16, 0
    %p106 = por %p104, %p105
    %s107 = ssub.s32 %s10, %s17
    %p108 = scmp.eq.s32.totalorder %s107, 0
    %s110 = sadd.s32 %s109, 1
    %s111 = scalar_select %p108, %s109, %s110
    %p114 = pneg %p108
    %p115 = scmp.eq.s32.totalorder %s10, 1
    %p116 = por %p114, %p115
    %p117 = scmp.ne.s32.totalorder %s109, %s112
    %p118 = scmp.eq.s32.totalorder %s10, 0
    %p119 = por %p117, %p118
    %p120 = scmp.ne.s32.totalorder %s109, %s112
    %p121 = scmp.eq.s32.totalorder %s15, 1
    %p122 = por %p120, %p121
    %p123 = scmp.ne.s32.totalorder %s112, %s113
    %p124 = scmp.eq.s32.totalorder %s15, 0
    %p125 = por %p123, %p124
    %p126 = scmp.ne.s32.totalorder %s112, %s113
    %p127 = scmp.eq.s32.totalorder %s16, 1
    %p128 = por %p126, %p127
    %p130 = scmp.ne.s32.totalorder %s113, %s129
    %p131 = scmp.eq.s32.totalorder %s16, 0
    %p132 = por %p130, %p131
    %p133 = scmp.le.s32.totalorder 1, %s10
    %p134 = scmp.lt.s32.totalorder %s10, 3
    %p135 = pnand %p133, %p134
    %p136 = pneg %p135
    // Predicated region
    $region9: #{collab_forward.9} parent=5 // pred_check
      _
    $region10: #{collab_forward.9} parent=5 // pred_check_branch
      %138 = sbr.rel (%p135) target = $region12
    $region11: #{collab_forward.9} parent=5 // pred_region
      %s139 = ssub.s32 %s10, 1
      // Predicated region
      $region13: #{collab_forward.9} parent=11 // pred_check
        %p140 = pneg %p57
      $region14: #{collab_forward.9} parent=11 // pred_check_branch
        %142 = sbr.rel (%p140) target = $region16
      $region15: #{collab_forward.9} parent=11 // pred_region
        _
      $region16: #{collab_forward.9} parent=11 // pred_fallthru
        _
      // Predicated region
      $region17: #{collab_forward.9} parent=11 // pred_check
        %p143 = pneg %p78
      $region18: #{collab_forward.9} parent=11 // pred_check_branch
        %145 = sbr.rel (%p143) target = $region20
      $region19: #{collab_forward.9} parent=11 // pred_region
        _
      $region20: #{collab_forward.9} parent=11 // pred_fallthru
        _
      // Predicated region
      $region21: #{collab_forward.9} parent=11 // pred_check
        %p146 = pneg %p99
      $region22: #{collab_forward.9} parent=11 // pred_check_branch
        %148 = sbr.rel (%p146) target = $region24
      $region23: #{collab_forward.9} parent=11 // pred_region
        _
      $region24: #{collab_forward.9} parent=11 // pred_fallthru
        _
    $region12: #{collab_forward.9} parent=5 // pred_fallthru
      _
    %p149 = scmp.lt.s32.totalorder %s10, 2
    // Predicated region
    $region25: #{collab_forward.9} parent=5 // pred_check
      %p150 = pneg %p149
    $region26: #{collab_forward.9} parent=5 // pred_check_branch
      %152 = sbr.rel (%p150) target = $region28
    $region27: #{collab_forward.9} parent=5 // pred_region
      // Predicated region
      $region29: #{collab_forward.9} parent=27 // pred_check
        %p153 = pneg %p30
      $region30: #{collab_forward.9} parent=27 // pred_check_branch
        %155 = sbr.rel (%p153) target = $region32
      $region31: #{collab_forward.9} parent=27 // pred_region
        %p156 = scmp.lt.s32.totalorder %s10, 1
        %s157 = scalar_select %p156, %s10, 1
        %s158 = smul.addr %s157, 20
        %s159 = smul.addr %s158, 8
        %s160 = scalar_lea.vmem %s0, %s159
      $region32: #{collab_forward.9} parent=27 // pred_fallthru
        _
    $region28: #{collab_forward.9} parent=5 // pred_fallthru
      _
    %p161 = scmp.le.s32.totalorder 1, %s10
    %p162 = scmp.lt.s32.totalorder %s10, 3
    %p163 = pnand %p161, %p162
    %p164 = pneg %p163
    // Predicated region
    $region33: #{collab_forward.9} parent=5 // pred_check
      _
    $region34: #{collab_forward.9} parent=5 // pred_check_branch
      %166 = sbr.rel (%p163) target = $region36
    $region35: #{collab_forward.9} parent=5 // pred_region
      %s167 = ssub.s32 %s10, 1
      %p168 = scmp.lt.s32.totalorder %s15, 1
      %s169 = scalar_select %p168, %s15, 1
      %s170 = smul.addr %s169, 20
      %s171 = smul.addr %s170, 8
      %s172 = scalar_lea.vmem %s0, %s171
      %p173 = pneg %p36
      %p174 = pneg %p33
      %p175 = pneg %p57
      %p176 = pneg %p54
      %p177 = pneg %p78
      %p178 = pneg %p75
      %p179 = pneg %p99
      %p180 = pneg %p96
      %p181 = pneg %p125
      %p182 = pneg %p122
      %p183 = scmp.lt.s32.totalorder %s15, 1
      %s184 = scalar_select %p183, %s15, 1
      %s185 = smul.addr %s184, 4
      %s186 = smul.addr %s185, 4
      %s187 = scalar_lea.vmem %s4, %s186
      %p188 = scmp.lt.s32.totalorder %s15, 1
      %s189 = scalar_select %p188, %s15, 1
      %s190 = smul.addr %s189, 20
      %s191 = smul.addr %s190, 8
      %s192 = scalar_lea.vmem %s0, %s191
      %p193 = scmp.lt.s32.totalorder %s15, 1
      %s194 = scalar_select %p193, %s15, 1
      %s195 = smul.addr %s194, 4
      %s196 = smul.addr %s195, 4
      %s197 = scalar_lea.vmem %s4, %s196
      %v199 = vld [vmem:[%s192] sm:$0xff]
      %v200 = vld [vmem:[%s192 + $0x8] sm:$0x3]
      %v201 = vld [vmem:[%s192 + $0x10] sm:$0xff]
      %v202 = vld [vmem:[%s192 + $0x18] sm:$0x3]
      %v203 = vld [vmem:[%s192 + $0x20] sm:$0xff]
      %v204 = vld [vmem:[%s192 + $0x28] sm:$0x3]
      %v205 = vld [vmem:[%s192 + $0x30] sm:$0xff]
      %v206 = vld [vmem:[%s192 + $0x38] sm:$0x3]
      %v207 = vld [vmem:[%s192 + $0x40] sm:$0xff]
      %v208 = vld [vmem:[%s192 + $0x48] sm:$0x3]
      %v209 = vld [vmem:[%s192 + $0x50] sm:$0xff]
      %v210 = vld [vmem:[%s192 + $0x58] sm:$0x3]
      %v211 = vld [vmem:[%s192 + $0x60] sm:$0xff]
      %v212 = vld [vmem:[%s192 + $0x68] sm:$0x3]
      %v213 = vld [vmem:[%s192 + $0x70] sm:$0xff]
      %v214 = vld [vmem:[%s192 + $0x78] sm:$0x3]
      %v215 = vld [vmem:[%s192 + $0x80] sm:$0xff]
      %v216 = vld [vmem:[%s192 + $0x88] sm:$0x3]
      %v217 = vld [vmem:[%s192 + $0x90] sm:$0xff]
      %v218 = vld [vmem:[%s192 + $0x98] sm:$0x3]
      %235 = vrot.lane.b32.xlu0 %v201, 64
      %v236 = vpop.permute.xlu0 %235
      %237 = vrot.lane.b32.xlu0 %v202, 64
      %v238 = vpop.permute.xlu0 %237
      %239 = vrot.lane.b32.xlu0 %v203, 64
      %v240 = vpop.permute.xlu0 %239
      %241 = vrot.lane.b32.xlu0 %v204, 64
      %v242 = vpop.permute.xlu0 %241
      %243 = vrot.lane.b32.xlu0 %v205, 64
      %v244 = vpop.permute.xlu0 %243
      %245 = vrot.lane.b32.xlu0 %v206, 64
      %v246 = vpop.permute.xlu0 %245
      %247 = vrot.lane.b32.xlu0 %v207, 64
      %v248 = vpop.permute.xlu0 %247
      %249 = vrot.lane.b32.xlu0 %v208, 64
      %v250 = vpop.permute.xlu0 %249
      %251 = vrot.lane.b32.xlu0 %v209, 64
      %v252 = vpop.permute.xlu0 %251
      %253 = vrot.lane.b32.xlu0 %v210, 64
      %v254 = vpop.permute.xlu0 %253
      %255 = vrot.lane.b32.xlu0 %v211, 64
      %v256 = vpop.permute.xlu0 %255
      %257 = vrot.lane.b32.xlu0 %v212, 64
      %v258 = vpop.permute.xlu0 %257
      %259 = vrot.lane.b32.xlu0 %v213, 64
      %v260 = vpop.permute.xlu0 %259
      %261 = vrot.lane.b32.xlu0 %v214, 64
      %v262 = vpop.permute.xlu0 %261
      %263 = vrot.lane.b32.xlu0 %v215, 64
      %v264 = vpop.permute.xlu0 %263
      %265 = vrot.lane.b32.xlu0 %v216, 64
      %v266 = vpop.permute.xlu0 %265
      %vm283 = vcmask 523264
      %v284 = vsel %vm283, %v199, %v236
      %v285 = vsel %vm283, %v200, %v238
      %v286 = vsel %vm283, %v201, %v240
      %v287 = vsel %vm283, %v202, %v242
      %v288 = vsel %vm283, %v203, %v244
      %v289 = vsel %vm283, %v204, %v246
      %v290 = vsel %vm283, %v205, %v248
      %v291 = vsel %vm283, %v206, %v250
      %v292 = vsel %vm283, %v207, %v252
      %v293 = vsel %vm283, %v208, %v254
      %v294 = vsel %vm283, %v209, %v256
      %v295 = vsel %vm283, %v210, %v258
      %v296 = vsel %vm283, %v211, %v260
      %v297 = vsel %vm283, %v212, %v262
      %v298 = vsel %vm283, %v213, %v264
      %v299 = vsel %vm283, %v214, %v266
      %vm318 = vcmask 1046528
      %v319 = vrot.slane %v284, 1
      %v320 = vrot.slane %v285, 1
      %v321 = vsel %vm318, %v319, %v320
      %v322 = vrot.slane %v203, 1
      %v323 = vrot.slane %v204, 1
      %v324 = vsel %vm318, %v322, %v323
      %v325 = vrot.slane %v286, 1
      %v326 = vrot.slane %v287, 1
      %v327 = vsel %vm318, %v325, %v326
      %v328 = vrot.slane %v205, 1
      %v329 = vrot.slane %v206, 1
      %v330 = vsel %vm318, %v328, %v329
      %v331 = vrot.slane %v288, 1
      %v332 = vrot.slane %v289, 1
      %v333 = vsel %vm318, %v331, %v332
      %v334 = vrot.slane %v207, 1
      %v335 = vrot.slane %v208, 1
      %v336 = vsel %vm318, %v334, %v335
      %v337 = vrot.slane %v290, 1
      %v338 = vrot.slane %v291, 1
      %v339 = vsel %vm318, %v337, %v338
      %v340 = vrot.slane %v209, 1
      %v341 = vrot.slane %v210, 1
      %v342 = vsel %vm318, %v340, %v341
      %v343 = vrot.slane %v292, 1
      %v344 = vrot.slane %v293, 1
      %v345 = vsel %vm318, %v343, %v344
      %v346 = vrot.slane %v211, 1
      %v347 = vrot.slane %v212, 1
      %v348 = vsel %vm318, %v346, %v347
      %v349 = vrot.slane %v294, 1
      %v350 = vrot.slane %v295, 1
      %v351 = vsel %vm318, %v349, %v350
      %v352 = vrot.slane %v213, 1
      %v353 = vrot.slane %v214, 1
      %v354 = vsel %vm318, %v352, %v353
      %v355 = vrot.slane %v296, 1
      %v356 = vrot.slane %v297, 1
      %v357 = vsel %vm318, %v355, %v356
      %v358 = vrot.slane %v215, 1
      %v359 = vrot.slane %v216, 1
      %v360 = vsel %vm318, %v358, %v359
      %v361 = vrot.slane %v298, 1
      %v362 = vrot.slane %v299, 1
      %v363 = vsel %vm318, %v361, %v362
      %v364 = vrot.slane %v217, 1
      %v365 = vrot.slane %v218, 1
      %v366 = vsel %vm318, %v364, %v365
      %367 = vrot.lane.b32.xlu0 %v321, 64
      %v368 = vpop.permute.xlu0 %367
      %369 = vrot.lane.b32.xlu0 %v324, 64
      %v370 = vpop.permute.xlu0 %369
      %371 = vrot.lane.b32.xlu0 %v327, 64
      %v372 = vpop.permute.xlu0 %371
      %373 = vrot.lane.b32.xlu0 %v330, 64
      %v374 = vpop.permute.xlu0 %373
      %375 = vrot.lane.b32.xlu0 %v333, 64
      %v376 = vpop.permute.xlu0 %375
      %377 = vrot.lane.b32.xlu0 %v336, 64
      %v378 = vpop.permute.xlu0 %377
      %379 = vrot.lane.b32.xlu0 %v339, 64
      %v380 = vpop.permute.xlu0 %379
      %381 = vrot.lane.b32.xlu0 %v342, 64
      %v382 = vpop.permute.xlu0 %381
      %383 = vrot.lane.b32.xlu0 %v345, 64
      %v384 = vpop.permute.xlu0 %383
      %385 = vrot.lane.b32.xlu0 %v348, 64
      %v386 = vpop.permute.xlu0 %385
      %387 = vrot.lane.b32.xlu0 %v351, 64
      %v388 = vpop.permute.xlu0 %387
      %389 = vrot.lane.b32.xlu0 %v354, 64
      %v390 = vpop.permute.xlu0 %389
      %391 = vrot.lane.b32.xlu0 %v357, 64
      %v392 = vpop.permute.xlu0 %391
      %393 = vrot.lane.b32.xlu0 %v360, 64
      %v394 = vpop.permute.xlu0 %393
      %395 = vrot.lane.b32.xlu0 %v363, 64
      %v396 = vpop.permute.xlu0 %395
      %397 = vrot.lane.b32.xlu0 %v366, 64
      %v398 = vpop.permute.xlu0 %397
      %v399 = vsel %vm283, %v368, %v370
      %v400 = vsel %vm283, %v372, %v374
      %v401 = vsel %vm283, %v376, %v378
      %v402 = vsel %vm283, %v380, %v382
      %v403 = vsel %vm283, %v384, %v386
      %v404 = vsel %vm283, %v388, %v390
      %v405 = vsel %vm283, %v392, %v394
      %v406 = vsel %vm283, %v396, %v398
      %vm423 = vcmask 1045504
      %v424 = vrot.slane %v284, 2
      %v425 = vrot.slane %v285, 2
      %v426 = vsel %vm423, %v424, %v425
      %v427 = vrot.slane %v203, 2
      %v428 = vrot.slane %v204, 2
      %v429 = vsel %vm423, %v427, %v428
      %v430 = vrot.slane %v286, 2
      %v431 = vrot.slane %v287, 2
      %v432 = vsel %vm423, %v430, %v431
      %v433 = vrot.slane %v205, 2
      %v434 = vrot.slane %v206, 2
      %v435 = vsel %vm423, %v433, %v434
      %v436 = vrot.slane %v288, 2
      %v437 = vrot.slane %v289, 2
      %v438 = vsel %vm423, %v436, %v437
      %v439 = vrot.slane %v207, 2
      %v440 = vrot.slane %v208, 2
      %v441 = vsel %vm423, %v439, %v440
      %v442 = vrot.slane %v290, 2
      %v443 = vrot.slane %v291, 2
      %v444 = vsel %vm423, %v442, %v443
      %v445 = vrot.slane %v209, 2
      %v446 = vrot.slane %v210, 2
      %v447 = vsel %vm423, %v445, %v446
      %v448 = vrot.slane %v292, 2
      %v449 = vrot.slane %v293, 2
      %v450 = vsel %vm423, %v448, %v449
      %v451 = vrot.slane %v211, 2
      %v452 = vrot.slane %v212, 2
      %v453 = vsel %vm423, %v451, %v452
      %v454 = vrot.slane %v294, 2
      %v455 = vrot.slane %v295, 2
      %v456 = vsel %vm423, %v454, %v455
      %v457 = vrot.slane %v213, 2
      %v458 = vrot.slane %v214, 2
      %v459 = vsel %vm423, %v457, %v458
      %v460 = vrot.slane %v296, 2
      %v461 = vrot.slane %v297, 2
      %v462 = vsel %vm423, %v460, %v461
      %v463 = vrot.slane %v215, 2
      %v464 = vrot.slane %v216, 2
      %v465 = vsel %vm423, %v463, %v464
      %v466 = vrot.slane %v298, 2
      %v467 = vrot.slane %v299, 2
      %v468 = vsel %vm423, %v466, %v467
      %v469 = vrot.slane %v217, 2
      %v470 = vrot.slane %v218, 2
      %v471 = vsel %vm423, %v469, %v470
      %v488 = vsel %vm283, %v203, %v368
      %v489 = vsel %vm283, %v205, %v372
      %v490 = vsel %vm283, %v207, %v376
      %v491 = vsel %vm283, %v209, %v380
      %v492 = vsel %vm283, %v211, %v384
      %v493 = vsel %vm283, %v213, %v388
      %v494 = vsel %vm283, %v215, %v392
      %v495 = vsel %vm283, %v217, %v396
      %v496 = vpack.c.bf16 %v286, %v284
      %v497 = vpack.c.bf16 %v489, %v488
      %v498 = vpack.c.bf16 %v400, %v399
      %v499 = vpack.c.bf16 %v432, %v426
      %v500 = vpack.c.bf16 %v435, %v429
      %v501 = vpack.c.bf16 %v290, %v288
      %v502 = vpack.c.bf16 %v491, %v490
      %v503 = vpack.c.bf16 %v402, %v401
      %v504 = vpack.c.bf16 %v444, %v438
      %v505 = vpack.c.bf16 %v447, %v441
      %v506 = vpack.c.bf16 %v294, %v292
      %v507 = vpack.c.bf16 %v493, %v492
      %v508 = vpack.c.bf16 %v404, %v403
      %v509 = vpack.c.bf16 %v456, %v450
      %v510 = vpack.c.bf16 %v459, %v453
      %v511 = vpack.c.bf16 %v298, %v296
      %v512 = vpack.c.bf16 %v495, %v494
      %v513 = vpack.c.bf16 %v406, %v405
      %v514 = vpack.c.bf16 %v468, %v462
      %v515 = vpack.c.bf16 %v471, %v465
      %v516 = vld [vmem:[%s1] sm:$0xf]
      %v517 = vld [vmem:[%s1 + $0x4] sm:$0xf]
      %v518 = vld [vmem:[%s1 + $0x8] sm:$0xf]
      %v519 = vld [vmem:[%s1 + $0xc] sm:$0xf]
      %v520 = vld [vmem:[%s1 + $0x10] sm:$0xf]
      %v521 = vld [vmem:[%s1 + $0x14] sm:$0xf]
      %v522 = vld [vmem:[%s1 + $0x18] sm:$0xf]
      %v523 = vld [vmem:[%s1 + $0x1c] sm:$0xf]
      %v524 = vld [vmem:[%s1 + $0x20] sm:$0xf]
      %v525 = vld [vmem:[%s1 + $0x24] sm:$0xf]
      %v526 = vld [vmem:[%s1 + $0x28] sm:$0xf]
      %v527 = vld [vmem:[%s1 + $0x2c] sm:$0xf]
      %v528 = vld [vmem:[%s1 + $0x30] sm:$0xf]
      %v529 = vld [vmem:[%s1 + $0x34] sm:$0xf]
      %v530 = vld [vmem:[%s1 + $0x38] sm:$0xf]
      %v531 = vld [vmem:[%s1 + $0x3c] sm:$0xf]
      %v532 = vld [vmem:[%s1 + $0x40] sm:$0xf]
      %v533 = vld [vmem:[%s1 + $0x44] sm:$0xf]
      %v534 = vld [vmem:[%s1 + $0x48] sm:$0xf]
      %v535 = vld [vmem:[%s1 + $0x4c] sm:$0xf]
      %v536 = vld [vmem:[%s1 + $0x50] sm:$0xf]
      %v537 = vld [vmem:[%s1 + $0x54] sm:$0xf]
      %v538 = vld [vmem:[%s1 + $0x58] sm:$0xf]
      %v539 = vld [vmem:[%s1 + $0x5c] sm:$0xf]
      %v540 = vld [vmem:[%s1 + $0x60] sm:$0xf]
      %v541 = vld [vmem:[%s1 + $0x64] sm:$0xf]
      %v542 = vld [vmem:[%s1 + $0x68] sm:$0xf]
      %v543 = vld [vmem:[%s1 + $0x6c] sm:$0xf]
      %v544 = vld [vmem:[%s1 + $0x70] sm:$0xf]
      %v545 = vld [vmem:[%s1 + $0x74] sm:$0xf]
      %v546 = vld [vmem:[%s1 + $0x78] sm:$0xf]
      %v547 = vld [vmem:[%s1 + $0x7c] sm:$0xf]
      %v548 = vld [vmem:[%s1 + $0x80] sm:$0xf]
      %v549 = vld [vmem:[%s1 + $0x84] sm:$0xf]
      %v550 = vld [vmem:[%s1 + $0x88] sm:$0xf]
      %v551 = vld [vmem:[%s1 + $0x8c] sm:$0xf]
      %v552 = vld [vmem:[%s1 + $0x90] sm:$0xf]
      %v553 = vld [vmem:[%s1 + $0x94] sm:$0xf]
      %v554 = vld [vmem:[%s1 + $0x98] sm:$0xf]
      %v555 = vld [vmem:[%s1 + $0x9c] sm:$0xf]
      %v556 = vld [vmem:[%s1 + $0xa0] sm:$0xf]
      %v557 = vld [vmem:[%s1 + $0xa4] sm:$0xf]
      %v558 = vld [vmem:[%s1 + $0xa8] sm:$0xf]
      %v559 = vld [vmem:[%s1 + $0xac] sm:$0xf]
      %v560 = vld [vmem:[%s1 + $0xb0] sm:$0xf]
      %v561 = vld [vmem:[%s1 + $0xb4] sm:$0xf]
      %v562 = vld [vmem:[%s1 + $0xb8] sm:$0xf]
      %v563 = vld [vmem:[%s1 + $0xbc] sm:$0xf]
      %v564 = vld [vmem:[%s1 + $0xc0] sm:$0xf]
      %v565 = vld [vmem:[%s1 + $0xc4] sm:$0xf]
      %v566 = vld [vmem:[%s1 + $0xc8] sm:$0xf]
      %v567 = vld [vmem:[%s1 + $0xcc] sm:$0xf]
      %v568 = vld [vmem:[%s1 + $0xd0] sm:$0xf]
      %v569 = vld [vmem:[%s1 + $0xd4] sm:$0xf]
      %v570 = vld [vmem:[%s1 + $0xd8] sm:$0xf]
      %v571 = vld [vmem:[%s1 + $0xdc] sm:$0xf]
      %v572 = vld [vmem:[%s1 + $0xe0] sm:$0xf]
      %v573 = vld [vmem:[%s1 + $0xe4] sm:$0xf]
      %v574 = vld [vmem:[%s1 + $0xe8] sm:$0xf]
      %v575 = vld [vmem:[%s1 + $0xec] sm:$0xf]
      %v576 = vld [vmem:[%s1 + $0xf0] sm:$0xf]
      %v577 = vld [vmem:[%s1 + $0xf4] sm:$0xf]
      %v578 = vld [vmem:[%s1 + $0xf8] sm:$0xf]
      %v579 = vld [vmem:[%s1 + $0xfc] sm:$0xf]
      %v580 = vld [vmem:[%s1 + $0x100] sm:$0xf]
      %v581 = vld [vmem:[%s1 + $0x104] sm:$0xf]
      %v582 = vld [vmem:[%s1 + $0x108] sm:$0xf]
      %v583 = vld [vmem:[%s1 + $0x10c] sm:$0xf]
      %v584 = vld [vmem:[%s1 + $0x110] sm:$0xf]
      %v585 = vld [vmem:[%s1 + $0x114] sm:$0xf]
      %v586 = vld [vmem:[%s1 + $0x118] sm:$0xf]
      %v587 = vld [vmem:[%s1 + $0x11c] sm:$0xf]
      %v660 = vunpack.c.l.b16 %v516
      %v661 = vunpack.c.l.b16 %v517
      %v662 = vunpack.c.l.b16 %v518
      %v663 = vunpack.c.l.b16 %v519
      %v664 = vunpack.c.l.b16 %v520
      %v665 = vunpack.c.l.b16 %v521
      %v666 = vunpack.c.l.b16 %v522
      %v667 = vunpack.c.l.b16 %v523
      %v668 = vunpack.c.l.b16 %v524
      %v669 = vunpack.c.l.b16 %v525
      %v670 = vunpack.c.l.b16 %v526
      %v671 = vunpack.c.l.b16 %v527
      %v672 = vunpack.c.l.b16 %v528
      %v673 = vunpack.c.l.b16 %v529
      %v674 = vunpack.c.l.b16 %v530
      %v675 = vunpack.c.l.b16 %v531
      %v676 = vunpack.c.l.b16 %v532
      %v677 = vunpack.c.l.b16 %v533
      %v678 = vunpack.c.l.b16 %v534
      %v679 = vunpack.c.l.b16 %v535
      %v680 = vunpack.c.l.b16 %v536
      %v681 = vunpack.c.l.b16 %v537
      %v682 = vunpack.c.l.b16 %v538
      %v683 = vunpack.c.l.b16 %v539
      %v684 = vunpack.c.l.b16 %v540
      %v685 = vunpack.c.l.b16 %v541
      %v686 = vunpack.c.l.b16 %v542
      %v687 = vunpack.c.l.b16 %v543
      %v688 = vunpack.c.l.b16 %v544
      %v689 = vunpack.c.l.b16 %v545
      %v690 = vunpack.c.l.b16 %v546
      %v691 = vunpack.c.l.b16 %v547
      %v692 = vunpack.c.l.b16 %v548
      %v693 = vunpack.c.l.b16 %v549
      %v694 = vunpack.c.l.b16 %v550
      %v695 = vunpack.c.l.b16 %v551
      %v696 = vunpack.c.l.b16 %v552
      %v697 = vunpack.c.l.b16 %v553
      %v698 = vunpack.c.l.b16 %v554
      %v699 = vunpack.c.l.b16 %v555
      %v700 = vunpack.c.l.b16 %v556
      %v701 = vunpack.c.l.b16 %v557
      %v702 = vunpack.c.l.b16 %v558
      %v703 = vunpack.c.l.b16 %v559
      %v704 = vunpack.c.l.b16 %v560
      %v705 = vunpack.c.l.b16 %v561
      %v706 = vunpack.c.l.b16 %v562
      %v707 = vunpack.c.l.b16 %v563
      %v708 = vunpack.c.l.b16 %v564
      %v709 = vunpack.c.l.b16 %v565
      %v710 = vunpack.c.l.b16 %v566
      %v711 = vunpack.c.l.b16 %v567
      %v712 = vunpack.c.l.b16 %v568
      %v713 = vunpack.c.l.b16 %v569
      %v714 = vunpack.c.l.b16 %v570
      %v715 = vunpack.c.l.b16 %v571
      %v716 = vunpack.c.l.b16 %v572
      %v717 = vunpack.c.l.b16 %v573
      %v718 = vunpack.c.l.b16 %v574
      %v719 = vunpack.c.l.b16 %v575
      %v720 = vunpack.c.l.b16 %v576
      %v721 = vunpack.c.l.b16 %v577
      %v722 = vunpack.c.l.b16 %v578
      %v723 = vunpack.c.l.b16 %v579
      %v724 = vunpack.c.l.b16 %v580
      %v725 = vunpack.c.l.b16 %v581
      %v726 = vunpack.c.l.b16 %v582
      %v727 = vunpack.c.l.b16 %v583
      %v728 = vunpack.c.l.b16 %v584
      %v729 = vunpack.c.l.b16 %v585
      %v730 = vunpack.c.l.b16 %v586
      %v731 = vunpack.c.l.b16 %v587
      %v732 = vpack.c.b16 %v661, %v660
      %v733 = vpack.c.b16 %v663, %v662
      %v734 = vpack.c.b16 %v665, %v664
      %v735 = vpack.c.b16 %v667, %v666
      %v736 = vpack.c.b16 %v669, %v668
      %v737 = vpack.c.b16 %v671, %v670
      %v738 = vpack.c.b16 %v673, %v672
      %v739 = vpack.c.b16 %v675, %v674
      %v740 = vpack.c.b16 %v677, %v676
      %v741 = vpack.c.b16 %v679, %v678
      %v742 = vpack.c.b16 %v681, %v680
      %v743 = vpack.c.b16 %v683, %v682
      %v744 = vpack.c.b16 %v685, %v684
      %v745 = vpack.c.b16 %v687, %v686
      %v746 = vpack.c.b16 %v689, %v688
      %v747 = vpack.c.b16 %v691, %v690
      %v748 = vpack.c.b16 %v693, %v692
      %v749 = vpack.c.b16 %v695, %v694
      %v750 = vpack.c.b16 %v697, %v696
      %v751 = vpack.c.b16 %v699, %v698
      %v752 = vpack.c.b16 %v701, %v700
      %v753 = vpack.c.b16 %v703, %v702
      %v754 = vpack.c.b16 %v705, %v704
      %v755 = vpack.c.b16 %v707, %v706
      %v756 = vpack.c.b16 %v709, %v708
      %v757 = vpack.c.b16 %v711, %v710
      %v758 = vpack.c.b16 %v713, %v712
      %v759 = vpack.c.b16 %v715, %v714
      %v760 = vpack.c.b16 %v717, %v716
      %v761 = vpack.c.b16 %v719, %v718
      %v762 = vpack.c.b16 %v721, %v720
      %v763 = vpack.c.b16 %v723, %v722
      %v764 = vpack.c.b16 %v725, %v724
      %v765 = vpack.c.b16 %v727, %v726
      %v766 = vpack.c.b16 %v729, %v728
      %v767 = vpack.c.b16 %v731, %v730
      %v805 = vsel %vm283, %v500, 0
      %v808 = vsel %vm283, %v505, 0
      %v811 = vsel %vm283, %v510, 0
      %v814 = vsel %vm283, %v515, 0
      %816 = vmatprep.subr.bf16.mxu0 0
      %817 = vmatpush1.bf16.msra.mxu0 %v732
      %818 = vmatprep.subr.bf16.mxu0 0
      %819 = vmatpush1.bf16.msra.mxu0 %v733
      %820 = vmatprep.subr.bf16.mxu0 0
      %821 = vmatpush1.bf16.msra.mxu0 %v734
      %822 = vmatprep.subr.bf16.mxu0 0
      %823 = vmatpush1.bf16.msra.mxu0 %v735
      %824 = vmatprep.subr.bf16.mxu0 0
      %825 = vmatpush1.bf16.msra.mxu0 %v736
      %826 = vmatprep.subr.bf16.mxu0 0
      %827 = vmatpush1.bf16.msra.mxu0 %v737
      %828 = vmatprep.subr.bf16.mxu0 0
      %829 = vmatpush1.bf16.msra.mxu0 %v738
      %830 = vmatprep.subr.bf16.mxu0 0
      %831 = vmatpush1.bf16.msra.mxu0 %v739
      %832 = vmatprep.subr.bf16.mxu0 0
      %833 = vmatpush1.bf16.msra.mxu0 %v740
      %834 = vmatprep.subr.bf16.mxu0 0
      %835 = vmatpush1.bf16.msra.mxu0 %v741
      %836 = vmatprep.subr.bf16.mxu0 0
      %837 = vmatpush1.bf16.msra.mxu0 %v742
      %838 = vmatprep.subr.bf16.mxu0 0
      %839 = vmatpush1.bf16.msra.mxu0 %v743
      %840 = vmatprep.subr.bf16.mxu0 0
      %841 = vmatpush1.bf16.msra.mxu0 %v744
      %842 = vmatprep.subr.bf16.mxu0 0
      %843 = vmatpush1.bf16.msra.mxu0 %v745
      %844 = vmatprep.subr.bf16.mxu0 0
      %845 = vmatpush1.bf16.msra.mxu0 %v746
      %846 = vmatprep.subr.bf16.mxu0 0
      %847 = vmatpush1.bf16.msra.mxu0 %v747
      %848 = vmatprep.mubr.bf16.mxu0 %v497
      %849 = vmatmul.mubr.bf16.gmra.mrb[0].mxu0 %v496
      %v850 = vpop.f32.mrb[0].mxu0
      %v851 = vadd.f32 0.0, %v850
      %v852 = vpop.f32.mrb[0].mxu0
      %v853 = vpop.f32.mrb[0].mxu0
      %v854 = vadd.f32 0.0, %v853
      %v855 = vpop.f32.mrb[0].mxu0
      %856 = vmatprep.mubr.bf16.mxu0 %v502
      %857 = vmatmul.mubr.bf16.gmra.mrb[0].mxu0 %v501
      %v858 = vpop.f32.mrb[0].mxu0
      %v859 = vadd.f32 0.0, %v858
      %v860 = vpop.f32.mrb[0].mxu0
      %v861 = vpop.f32.mrb[0].mxu0
      %v862 = vadd.f32 0.0, %v861
      %v863 = vpop.f32.mrb[0].mxu0
      %864 = vmatprep.mubr.bf16.mxu0 %v507
      %865 = vmatmul.mubr.bf16.gmra.mrb[0].mxu0 %v506
      %v866 = vpop.f32.mrb[0].mxu0
      %v867 = vadd.f32 0.0, %v866
      %v868 = vpop.f32.mrb[0].mxu0
      %v869 = vpop.f32.mrb[0].mxu0
      %v870 = vadd.f32 0.0, %v869
      %v871 = vpop.f32.mrb[0].mxu0
      %872 = vmatprep.mubr.bf16.mxu0 %v512
      %873 = vmatmul.mubr.bf16.gmra.mrb[0].mxu0 %v511
      %v874 = vpop.f32.mrb[0].mxu0
      %v875 = vadd.f32 0.0, %v874
      %v876 = vpop.f32.mrb[0].mxu0
      %v877 = vpop.f32.mrb[0].mxu0
      %v878 = vadd.f32 0.0, %v877
      %v879 = vpop.f32.mrb[0].mxu0
      %880 = vdwg.mxu0
      %881 = vmatprep.subr.bf16.mxu0 0
      %882 = vmatpush1.bf16.msra.mxu0 %v748
      %883 = vmatprep.subr.bf16.mxu0 0
      %884 = vmatpush1.bf16.msra.mxu0 %v749
      %885 = vmatprep.subr.bf16.mxu0 0
      %886 = vmatpush1.bf16.msra.mxu0 %v750
      %887 = vmatprep.subr.bf16.mxu0 0
      %888 = vmatpush1.bf16.msra.mxu0 %v751
      %889 = vmatprep.subr.bf16.mxu0 0
      %890 = vmatpush1.bf16.msra.mxu0 %v752
      %891 = vmatprep.subr.bf16.mxu0 0
      %892 = vmatpush1.bf16.msra.mxu0 %v753
      %893 = vmatprep.subr.bf16.mxu0 0
      %894 = vmatpush1.bf16.msra.mxu0 %v754
      %895 = vmatprep.subr.bf16.mxu0 0
      %896 = vmatpush1.bf16.msra.mxu0 %v755
      %897 = vmatprep.subr.bf16.mxu0 0
      %898 = vmatpush1.bf16.msra.mxu0 %v756
      %899 = vmatprep.subr.bf16.mxu0 0
      %900 = vmatpush1.bf16.msra.mxu0 %v757
      %901 = vmatprep.subr.bf16.mxu0 0
      %902 = vmatpush1.bf16.msra.mxu0 %v758
      %903 = vmatprep.subr.bf16.mxu0 0
      %904 = vmatpush1.bf16.msra.mxu0 %v759
      %905 = vmatprep.subr.bf16.mxu0 0
      %906 = vmatpush1.bf16.msra.mxu0 %v760
      %907 = vmatprep.subr.bf16.mxu0 0
      %908 = vmatpush1.bf16.msra.mxu0 %v761
      %909 = vmatprep.subr.bf16.mxu0 0
      %910 = vmatpush1.bf16.msra.mxu0 %v762
      %911 = vmatprep.subr.bf16.mxu0 0
      %912 = vmatpush1.bf16.msra.mxu0 %v763
      %913 = vmatprep.mubr.bf16.mxu0 %v499
      %914 = vmatmul.mubr.bf16.gmra.mrb[0].mxu0 %v498
      %v915 = vpop.f32.mrb[0].mxu0
      %v916 = vadd.f32 %v851, %v915
      %v917 = vpop.f32.mrb[0].mxu0
      %v918 = vpop.f32.mrb[0].mxu0
      %v919 = vadd.f32 %v854, %v918
      %v920 = vpop.f32.mrb[0].mxu0
      %921 = vmatprep.mubr.bf16.mxu0 %v504
      %922 = vmatmul.mubr.bf16.gmra.mrb[0].mxu0 %v503
      %v923 = vpop.f32.mrb[0].mxu0
      %v924 = vadd.f32 %v859, %v923
      %v925 = vpop.f32.mrb[0].mxu0
      %v926 = vpop.f32.mrb[0].mxu0
      %v927 = vadd.f32 %v862, %v926
      %v928 = vpop.f32.mrb[0].mxu0
      %929 = vmatprep.mubr.bf16.mxu0 %v509
      %930 = vmatmul.mubr.bf16.gmra.mrb[0].mxu0 %v508
      %v931 = vpop.f32.mrb[0].mxu0
      %v932 = vadd.f32 %v867, %v931
      %v933 = vpop.f32.mrb[0].mxu0
      %v934 = vpop.f32.mrb[0].mxu0
      %v935 = vadd.f32 %v870, %v934
      %v936 = vpop.f32.mrb[0].mxu0
      %937 = vmatprep.mubr.bf16.mxu0 %v514
      %938 = vmatmul.mubr.bf16.gmra.mrb[0].mxu0 %v513
      %v939 = vpop.f32.mrb[0].mxu0
      %v940 = vadd.f32 %v875, %v939
      %v941 = vpop.f32.mrb[0].mxu0
      %v942 = vpop.f32.mrb[0].mxu0
      %v943 = vadd.f32 %v878, %v942
      %v944 = vpop.f32.mrb[0].mxu0
      %945 = vdwg.mxu0
      %946 = vmatprep.subr.bf16.mxu0 0
      %947 = vmatpush1.bf16.msra.mxu0 %v764
      %948 = vmatprep.subr.bf16.mxu0 0
      %949 = vmatpush1.bf16.msra.mxu0 %v765
      %950 = vmatprep.subr.bf16.mxu0 0
      %951 = vmatpush1.bf16.msra.mxu0 %v766
      %952 = vmatprep.subr.bf16.mxu0 0
      %953 = vmatpush1.bf16.msra.mxu0 %v767
      %954 = vmatprep.subr.bf16.mxu0 0
      %955 = vmatpush1.bf16.msra.mxu0 0
      %956 = vmatprep.subr.bf16.mxu0 0
      %957 = vmatpush1.bf16.msra.mxu0 0
      %958 = vmatprep.subr.bf16.mxu0 0
      %959 = vmatpush1.bf16.msra.mxu0 0
      %960 = vmatprep.subr.bf16.mxu0 0
      %961 = vmatpush1.bf16.msra.mxu0 0
      %962 = vmatprep.subr.bf16.mxu0 0
      %963 = vmatpush1.bf16.msra.mxu0 0
      %964 = vmatprep.subr.bf16.mxu0 0
      %965 = vmatpush1.bf16.msra.mxu0 0
      %966 = vmatprep.subr.bf16.mxu0 0
      %967 = vmatpush1.bf16.msra.mxu0 0
      %968 = vmatprep.subr.bf16.mxu0 0
      %969 = vmatpush1.bf16.msra.mxu0 0
      %970 = vmatprep.subr.bf16.mxu0 0
      %971 = vmatpush1.bf16.msra.mxu0 0
      %972 = vmatprep.subr.bf16.mxu0 0
      %973 = vmatpush1.bf16.msra.mxu0 0
      %974 = vmatprep.subr.bf16.mxu0 0
      %975 = vmatpush1.bf16.msra.mxu0 0
      %976 = vmatprep.subr.bf16.mxu0 0
      %977 = vmatpush1.bf16.msra.mxu0 0
      %978 = vmatprep.mubr.bf16.mxu0 0
      %979 = vmatmul.mubr.bf16.gmra.mrb[0].mxu0 %v805
      %v980 = vpop.f32.mrb[0].mxu0
      %v981 = vadd.f32 %v916, %v980
      %v982 = vpop.f32.mrb[0].mxu0
      %v983 = vpop.f32.mrb[0].mxu0
      %v984 = vadd.f32 %v919, %v983
      %v985 = vpop.f32.mrb[0].mxu0
      %986 = vmatprep.mubr.bf16.mxu0 0
      %987 = vmatmul.mubr.bf16.gmra.mrb[0].mxu0 %v808
      %v988 = vpop.f32.mrb[0].mxu0
      %v989 = vadd.f32 %v924, %v988
      %v990 = vpop.f32.mrb[0].mxu0
      %v991 = vpop.f32.mrb[0].mxu0
      %v992 = vadd.f32 %v927, %v991
      %v993 = vpop.f32.mrb[0].mxu0
      %994 = vmatprep.mubr.bf16.mxu0 0
      %995 = vmatmul.mubr.bf16.gmra.mrb[0].mxu0 %v811
      %v996 = vpop.f32.mrb[0].mxu0
      %v997 = vadd.f32 %v932, %v996
      %v998 = vpop.f32.mrb[0].mxu0
      %v999 = vpop.f32.mrb[0].mxu0
      %v1000 = vadd.f32 %v935, %v999
      %v1001 = vpop.f32.mrb[0].mxu0
      %1002 = vmatprep.mubr.bf16.mxu0 0
      %1003 = vmatmul.mubr.bf16.gmra.mrb[0].mxu0 %v814
      %v1004 = vpop.f32.mrb[0].mxu0
      %v1005 = vadd.f32 %v940, %v1004
      %v1006 = vpop.f32.mrb[0].mxu0
      %v1007 = vpop.f32.mrb[0].mxu0
      %v1008 = vadd.f32 %v943, %v1007
      %v1009 = vpop.f32.mrb[0].mxu0
      %1010 = vdwg.mxu0
      %v1011 = vld [vmem:[%s2] sm:$0x1]
      %v1013 = vlaneseq
      %v1014 = vshrl.u32 %v1013, 7
      %v1015 = vsub.s32 0, %v1014
      %v1016 = vrot.slane %v1011, %v1015
      %v1018 = vmul.f32 %v981, %v1016
      %v1019 = vmul.f32 %v984, %v1016
      %v1020 = vmul.f32 %v989, %v1016
      %v1021 = vmul.f32 %v992, %v1016
      %v1022 = vmul.f32 %v997, %v1016
      %v1023 = vmul.f32 %v1000, %v1016
      %v1024 = vmul.f32 %v1005, %v1016
      %v1025 = vmul.f32 %v1008, %v1016
      %v1026 = vld [vmem:[%s3] sm:$0x1]
      %v1028 = vlaneseq
      %v1029 = vshrl.u32 %v1028, 7
      %v1030 = vsub.s32 0, %v1029
      %v1031 = vrot.slane %v1026, %v1030
      %v1033 = vadd.f32 %v1018, %v1031
      %v1034 = vadd.f32 %v1019, %v1031
      %v1035 = vadd.f32 %v1020, %v1031
      %v1036 = vadd.f32 %v1021, %v1031
      %v1037 = vadd.f32 %v1022, %v1031
      %v1038 = vadd.f32 %v1023, %v1031
      %v1039 = vadd.f32 %v1024, %v1031
      %v1040 = vadd.f32 %v1025, %v1031
      %v1041 = vmax.f32 %v1033, 0.0
      %v1042 = vmax.f32 %v1034, 0.0
      %v1043 = vmax.f32 %v1035, 0.0
      %v1044 = vmax.f32 %v1036, 0.0
      %v1045 = vmax.f32 %v1037, 0.0
      %v1046 = vmax.f32 %v1038, 0.0
      %v1047 = vmax.f32 %v1039, 0.0
      %v1048 = vmax.f32 %v1040, 0.0
      %v1057 = vcombine.high %v1041, %v1041
      %v1059 = vunpack.c.l.s4 1983009808
      %v1060 = vunpack.c.0.s8 %v1059
      %v1061 = vlaneseq
      %v1062 = vshrl.u32 %v1061, 7
      %v1063 = vsub.s32 %v1060, %v1062
      %v1064 = vrot.slane %v1041, %v1063
      %v1066 = vunpack.c.l.s4 1983009808
      %v1067 = vunpack.c.0.s8 %v1066
      %v1068 = vlaneseq
      %v1069 = vshrl.u32 %v1068, 7
      %v1070 = vsub.s32 %v1067, %v1069
      %v1071 = vrot.slane %v1057, %v1070
      %v1072 = vcombine.high %v1064, %v1064
      %v1073 = vcombine.high %v1071, %v1071
      %v1074 = vcombine.high %v1042, %v1042
      %v1076 = vunpack.c.l.s4 1983009808
      %v1077 = vunpack.c.0.s8 %v1076
      %v1078 = vlaneseq
      %v1079 = vshrl.u32 %v1078, 7
      %v1080 = vsub.s32 %v1077, %v1079
      %v1081 = vrot.slane %v1042, %v1080
      %v1083 = vunpack.c.l.s4 1983009808
      %v1084 = vunpack.c.0.s8 %v1083
      %v1085 = vlaneseq
      %v1086 = vshrl.u32 %v1085, 7
      %v1087 = vsub.s32 %v1084, %v1086
      %v1088 = vrot.slane %v1074, %v1087
      %v1089 = vcombine.high %v1081, %v1081
      %v1090 = vcombine.high %v1088, %v1088
      %v1091 = vcombine.high %v1043, %v1043
      %v1093 = vunpack.c.l.s4 1983009808
      %v1094 = vunpack.c.0.s8 %v1093
      %v1095 = vlaneseq
      %v1096 = vshrl.u32 %v1095, 7
      %v1097 = vsub.s32 %v1094, %v1096
      %v1098 = vrot.slane %v1043, %v1097
      %v1100 = vunpack.c.l.s4 1983009808
      %v1101 = vunpack.c.0.s8 %v1100
      %v1102 = vlaneseq
      %v1103 = vshrl.u32 %v1102, 7
      %v1104 = vsub.s32 %v1101, %v1103
      %v1105 = vrot.slane %v1091, %v1104
      %v1106 = vcombine.high %v1098, %v1098
      %v1107 = vcombine.high %v1105, %v1105
      %v1108 = vcombine.high %v1044, %v1044
      %v1110 = vunpack.c.l.s4 1983009808
      %v1111 = vunpack.c.0.s8 %v1110
      %v1112 = vlaneseq
      %v1113 = vshrl.u32 %v1112, 7
      %v1114 = vsub.s32 %v1111, %v1113
      %v1115 = vrot.slane %v1044, %v1114
      %v1117 = vunpack.c.l.s4 1983009808
      %v1118 = vunpack.c.0.s8 %v1117
      %v1119 = vlaneseq
      %v1120 = vshrl.u32 %v1119, 7
      %v1121 = vsub.s32 %v1118, %v1120
      %v1122 = vrot.slane %v1108, %v1121
      %v1123 = vcombine.high %v1115, %v1115
      %v1124 = vcombine.high %v1122, %v1122
      %v1125 = vcombine.high %v1045, %v1045
      %v1127 = vunpack.c.l.s4 1983009808
      %v1128 = vunpack.c.0.s8 %v1127
      %v1129 = vlaneseq
      %v1130 = vshrl.u32 %v1129, 7
      %v1131 = vsub.s32 %v1128, %v1130
      %v1132 = vrot.slane %v1045, %v1131
      %v1134 = vunpack.c.l.s4 1983009808
      %v1135 = vunpack.c.0.s8 %v1134
      %v1136 = vlaneseq
      %v1137 = vshrl.u32 %v1136, 7
      %v1138 = vsub.s32 %v1135, %v1137
      %v1139 = vrot.slane %v1125, %v1138
      %v1140 = vcombine.high %v1132, %v1132
      %v1141 = vcombine.high %v1139, %v1139
      %v1142 = vcombine.high %v1046, %v1046
      %v1144 = vunpack.c.l.s4 1983009808
      %v1145 = vunpack.c.0.s8 %v1144
      %v1146 = vlaneseq
      %v1147 = vshrl.u32 %v1146, 7
      %v1148 = vsub.s32 %v1145, %v1147
      %v1149 = vrot.slane %v1046, %v1148
      %v1151 = vunpack.c.l.s4 1983009808
      %v1152 = vunpack.c.0.s8 %v1151
      %v1153 = vlaneseq
      %v1154 = vshrl.u32 %v1153, 7
      %v1155 = vsub.s32 %v1152, %v1154
      %v1156 = vrot.slane %v1142, %v1155
      %v1157 = vcombine.high %v1149, %v1149
      %v1158 = vcombine.high %v1156, %v1156
      %v1159 = vcombine.high %v1047, %v1047
      %v1161 = vunpack.c.l.s4 1983009808
      %v1162 = vunpack.c.0.s8 %v1161
      %v1163 = vlaneseq
      %v1164 = vshrl.u32 %v1163, 7
      %v1165 = vsub.s32 %v1162, %v1164
      %v1166 = vrot.slane %v1047, %v1165
      %v1168 = vunpack.c.l.s4 1983009808
      %v1169 = vunpack.c.0.s8 %v1168
      %v1170 = vlaneseq
      %v1171 = vshrl.u32 %v1170, 7
      %v1172 = vsub.s32 %v1169, %v1171
      %v1173 = vrot.slane %v1159, %v1172
      %v1174 = vcombine.high %v1166, %v1166
      %v1175 = vcombine.high %v1173, %v1173
      %v1176 = vcombine.high %v1048, %v1048
      %v1178 = vunpack.c.l.s4 1983009808
      %v1179 = vunpack.c.0.s8 %v1178
      %v1180 = vlaneseq
      %v1181 = vshrl.u32 %v1180, 7
      %v1182 = vsub.s32 %v1179, %v1181
      %v1183 = vrot.slane %v1048, %v1182
      %v1185 = vunpack.c.l.s4 1983009808
      %v1186 = vunpack.c.0.s8 %v1185
      %v1187 = vlaneseq
      %v1188 = vshrl.u32 %v1187, 7
      %v1189 = vsub.s32 %v1186, %v1188
      %v1190 = vrot.slane %v1176, %v1189
      %v1191 = vcombine.high %v1183, %v1183
      %v1192 = vcombine.high %v1190, %v1190
      %vm1225 = vcmask 517120
      %v1226 = vsel %vm1225, %v1064, -inf
      %v1227 = vrot.slane %v1226, 4
      %v1228 = vmax.f32 %v1226, %v1227
      %v1229 = vrot.slane %v1228, 2
      %v1230 = vmax.f32 %v1228, %v1229
      %v1231 = vrot.slane %v1230, 1
      %v1232 = vmax.f32 %v1230, %v1231
      %v1233 = vsel %vm1225, %v1072, -inf
      %v1234 = vrot.slane %v1233, 4
      %v1235 = vmax.f32 %v1233, %v1234
      %v1236 = vrot.slane %v1235, 2
      %v1237 = vmax.f32 %v1235, %v1236
      %v1238 = vrot.slane %v1237, 1
      %v1239 = vmax.f32 %v1237, %v1238
      %v1240 = vsel %vm1225, %v1071, -inf
      %v1241 = vrot.slane %v1240, 4
      %v1242 = vmax.f32 %v1240, %v1241
      %v1243 = vrot.slane %v1242, 2
      %v1244 = vmax.f32 %v1242, %v1243
      %v1245 = vrot.slane %v1244, 1
      %v1246 = vmax.f32 %v1244, %v1245
      %v1247 = vsel %vm1225, %v1073, -inf
      %v1248 = vrot.slane %v1247, 4
      %v1249 = vmax.f32 %v1247, %v1248
      %v1250 = vrot.slane %v1249, 2
      %v1251 = vmax.f32 %v1249, %v1250
      %v1252 = vrot.slane %v1251, 1
      %v1253 = vmax.f32 %v1251, %v1252
      %v1254 = vsel %vm1225, %v1081, -inf
      %v1255 = vrot.slane %v1254, 4
      %v1256 = vmax.f32 %v1254, %v1255
      %v1257 = vrot.slane %v1256, 2
      %v1258 = vmax.f32 %v1256, %v1257
      %v1259 = vrot.slane %v1258, 1
      %v1260 = vmax.f32 %v1258, %v1259
      %v1261 = vsel %vm1225, %v1089, -inf
      %v1262 = vrot.slane %v1261, 4
      %v1263 = vmax.f32 %v1261, %v1262
      %v1264 = vrot.slane %v1263, 2
      %v1265 = vmax.f32 %v1263, %v1264
      %v1266 = vrot.slane %v1265, 1
      %v1267 = vmax.f32 %v1265, %v1266
      %v1268 = vsel %vm1225, %v1088, -inf
      %v1269 = vrot.slane %v1268, 4
      %v1270 = vmax.f32 %v1268, %v1269
      %v1271 = vrot.slane %v1270, 2
      %v1272 = vmax.f32 %v1270, %v1271
      %v1273 = vrot.slane %v1272, 1
      %v1274 = vmax.f32 %v1272, %v1273
      %v1275 = vsel %vm1225, %v1090, -inf
      %v1276 = vrot.slane %v1275, 4
      %v1277 = vmax.f32 %v1275, %v1276
      %v1278 = vrot.slane %v1277, 2
      %v1279 = vmax.f32 %v1277, %v1278
      %v1280 = vrot.slane %v1279, 1
      %v1281 = vmax.f32 %v1279, %v1280
      %v1282 = vsel %vm1225, %v1098, -inf
      %v1283 = vrot.slane %v1282, 4
      %v1284 = vmax.f32 %v1282, %v1283
      %v1285 = vrot.slane %v1284, 2
      %v1286 = vmax.f32 %v1284, %v1285
      %v1287 = vrot.slane %v1286, 1
      %v1288 = vmax.f32 %v1286, %v1287
      %v1289 = vsel %vm1225, %v1106, -inf
      %v1290 = vrot.slane %v1289, 4
      %v1291 = vmax.f32 %v1289, %v1290
      %v1292 = vrot.slane %v1291, 2
      %v1293 = vmax.f32 %v1291, %v1292
      %v1294 = vrot.slane %v1293, 1
      %v1295 = vmax.f32 %v1293, %v1294
      %v1296 = vsel %vm1225, %v1105, -inf
      %v1297 = vrot.slane %v1296, 4
      %v1298 = vmax.f32 %v1296, %v1297
      %v1299 = vrot.slane %v1298, 2
      %v1300 = vmax.f32 %v1298, %v1299
      %v1301 = vrot.slane %v1300, 1
      %v1302 = vmax.f32 %v1300, %v1301
      %v1303 = vsel %vm1225, %v1107, -inf
      %v1304 = vrot.slane %v1303, 4
      %v1305 = vmax.f32 %v1303, %v1304
      %v1306 = vrot.slane %v1305, 2
      %v1307 = vmax.f32 %v1305, %v1306
      %v1308 = vrot.slane %v1307, 1
      %v1309 = vmax.f32 %v1307, %v1308
      %v1310 = vsel %vm1225, %v1115, -inf
      %v1311 = vrot.slane %v1310, 4
      %v1312 = vmax.f32 %v1310, %v1311
      %v1313 = vrot.slane %v1312, 2
      %v1314 = vmax.f32 %v1312, %v1313
      %v1315 = vrot.slane %v1314, 1
      %v1316 = vmax.f32 %v1314, %v1315
      %v1317 = vsel %vm1225, %v1123, -inf
      %v1318 = vrot.slane %v1317, 4
      %v1319 = vmax.f32 %v1317, %v1318
      %v1320 = vrot.slane %v1319, 2
      %v1321 = vmax.f32 %v1319, %v1320
      %v1322 = vrot.slane %v1321, 1
      %v1323 = vmax.f32 %v1321, %v1322
      %v1324 = vsel %vm1225, %v1122, -inf
      %v1325 = vrot.slane %v1324, 4
      %v1326 = vmax.f32 %v1324, %v1325
      %v1327 = vrot.slane %v1326, 2
      %v1328 = vmax.f32 %v1326, %v1327
      %v1329 = vrot.slane %v1328, 1
      %v1330 = vmax.f32 %v1328, %v1329
      %v1331 = vsel %vm1225, %v1124, -inf
      %v1332 = vrot.slane %v1331, 4
      %v1333 = vmax.f32 %v1331, %v1332
      %v1334 = vrot.slane %v1333, 2
      %v1335 = vmax.f32 %v1333, %v1334
      %v1336 = vrot.slane %v1335, 1
      %v1337 = vmax.f32 %v1335, %v1336
      %v1338 = vsel %vm1225, %v1132, -inf
      %v1339 = vrot.slane %v1338, 4
      %v1340 = vmax.f32 %v1338, %v1339
      %v1341 = vrot.slane %v1340, 2
      %v1342 = vmax.f32 %v1340, %v1341
      %v1343 = vrot.slane %v1342, 1
      %v1344 = vmax.f32 %v1342, %v1343
      %v1345 = vsel %vm1225, %v1140, -inf
      %v1346 = vrot.slane %v1345, 4
      %v1347 = vmax.f32 %v1345, %v1346
      %v1348 = vrot.slane %v1347, 2
      %v1349 = vmax.f32 %v1347, %v1348
      %v1350 = vrot.slane %v1349, 1
      %v1351 = vmax.f32 %v1349, %v1350
      %v1352 = vsel %vm1225, %v1139, -inf
      %v1353 = vrot.slane %v1352, 4
      %v1354 = vmax.f32 %v1352, %v1353
      %v1355 = vrot.slane %v1354, 2
      %v1356 = vmax.f32 %v1354, %v1355
      %v1357 = vrot.slane %v1356, 1
      %v1358 = vmax.f32 %v1356, %v1357
      %v1359 = vsel %vm1225, %v1141, -inf
      %v1360 = vrot.slane %v1359, 4
      %v1361 = vmax.f32 %v1359, %v1360
      %v1362 = vrot.slane %v1361, 2
      %v1363 = vmax.f32 %v1361, %v1362
      %v1364 = vrot.slane %v1363, 1
      %v1365 = vmax.f32 %v1363, %v1364
      %v1366 = vsel %vm1225, %v1149, -inf
      %v1367 = vrot.slane %v1366, 4
      %v1368 = vmax.f32 %v1366, %v1367
      %v1369 = vrot.slane %v1368, 2
      %v1370 = vmax.f32 %v1368, %v1369
      %v1371 = vrot.slane %v1370, 1
      %v1372 = vmax.f32 %v1370, %v1371
      %v1373 = vsel %vm1225, %v1157, -inf
      %v1374 = vrot.slane %v1373, 4
      %v1375 = vmax.f32 %v1373, %v1374
      %v1376 = vrot.slane %v1375, 2
      %v1377 = vmax.f32 %v1375, %v1376
      %v1378 = vrot.slane %v1377, 1
      %v1379 = vmax.f32 %v1377, %v1378
      %v1380 = vsel %vm1225, %v1156, -inf
      %v1381 = vrot.slane %v1380, 4
      %v1382 = vmax.f32 %v1380, %v1381
      %v1383 = vrot.slane %v1382, 2
      %v1384 = vmax.f32 %v1382, %v1383
      %v1385 = vrot.slane %v1384, 1
      %v1386 = vmax.f32 %v1384, %v1385
      %v1387 = vsel %vm1225, %v1158, -inf
      %v1388 = vrot.slane %v1387, 4
      %v1389 = vmax.f32 %v1387, %v1388
      %v1390 = vrot.slane %v1389, 2
      %v1391 = vmax.f32 %v1389, %v1390
      %v1392 = vrot.slane %v1391, 1
      %v1393 = vmax.f32 %v1391, %v1392
      %v1394 = vsel %vm1225, %v1166, -inf
      %v1395 = vrot.slane %v1394, 4
      %v1396 = vmax.f32 %v1394, %v1395
      %v1397 = vrot.slane %v1396, 2
      %v1398 = vmax.f32 %v1396, %v1397
      %v1399 = vrot.slane %v1398, 1
      %v1400 = vmax.f32 %v1398, %v1399
      %v1401 = vsel %vm1225, %v1174, -inf
      %v1402 = vrot.slane %v1401, 4
      %v1403 = vmax.f32 %v1401, %v1402
      %v1404 = vrot.slane %v1403, 2
      %v1405 = vmax.f32 %v1403, %v1404
      %v1406 = vrot.slane %v1405, 1
      %v1407 = vmax.f32 %v1405, %v1406
      %v1408 = vsel %vm1225, %v1173, -inf
      %v1409 = vrot.slane %v1408, 4
      %v1410 = vmax.f32 %v1408, %v1409
      %v1411 = vrot.slane %v1410, 2
      %v1412 = vmax.f32 %v1410, %v1411
      %v1413 = vrot.slane %v1412, 1
      %v1414 = vmax.f32 %v1412, %v1413
      %v1415 = vsel %vm1225, %v1175, -inf
      %v1416 = vrot.slane %v1415, 4
      %v1417 = vmax.f32 %v1415, %v1416
      %v1418 = vrot.slane %v1417, 2
      %v1419 = vmax.f32 %v1417, %v1418
      %v1420 = vrot.slane %v1419, 1
      %v1421 = vmax.f32 %v1419, %v1420
      %v1422 = vsel %vm1225, %v1183, -inf
      %v1423 = vrot.slane %v1422, 4
      %v1424 = vmax.f32 %v1422, %v1423
      %v1425 = vrot.slane %v1424, 2
      %v1426 = vmax.f32 %v1424, %v1425
      %v1427 = vrot.slane %v1426, 1
      %v1428 = vmax.f32 %v1426, %v1427
      %v1429 = vsel %vm1225, %v1191, -inf
      %v1430 = vrot.slane %v1429, 4
      %v1431 = vmax.f32 %v1429, %v1430
      %v1432 = vrot.slane %v1431, 2
      %v1433 = vmax.f32 %v1431, %v1432
      %v1434 = vrot.slane %v1433, 1
      %v1435 = vmax.f32 %v1433, %v1434
      %v1436 = vsel %vm1225, %v1190, -inf
      %v1437 = vrot.slane %v1436, 4
      %v1438 = vmax.f32 %v1436, %v1437
      %v1439 = vrot.slane %v1438, 2
      %v1440 = vmax.f32 %v1438, %v1439
      %v1441 = vrot.slane %v1440, 1
      %v1442 = vmax.f32 %v1440, %v1441
      %v1443 = vsel %vm1225, %v1192, -inf
      %v1444 = vrot.slane %v1443, 4
      %v1445 = vmax.f32 %v1443, %v1444
      %v1446 = vrot.slane %v1445, 2
      %v1447 = vmax.f32 %v1445, %v1446
      %v1448 = vrot.slane %v1447, 1
      %v1449 = vmax.f32 %v1447, %v1448
      %v1450 = vmax.f32 %v1232, %v1260
      %v1451 = vmax.f32 %v1239, %v1267
      %v1452 = vmax.f32 %v1246, %v1274
      %v1453 = vmax.f32 %v1253, %v1281
      %v1454 = vmax.f32 %v1288, %v1316
      %v1455 = vmax.f32 %v1295, %v1323
      %v1456 = vmax.f32 %v1302, %v1330
      %v1457 = vmax.f32 %v1309, %v1337
      %v1458 = vmax.f32 %v1344, %v1372
      %v1459 = vmax.f32 %v1351, %v1379
      %v1460 = vmax.f32 %v1358, %v1386
      %v1461 = vmax.f32 %v1365, %v1393
      %v1462 = vmax.f32 %v1400, %v1428
      %v1463 = vmax.f32 %v1407, %v1435
      %v1464 = vmax.f32 %v1414, %v1442
      %v1465 = vmax.f32 %v1421, %v1449
      %vm1482 = vcmask 1041409
      %v1483 = vsel %vm1482, %v1451, %v1450
      %vm1484 = vcmask 1042434
      %v1485 = vsel %vm1484, %v1452, %v1483
      %vm1486 = vcmask 1043459
      %v1487 = vsel %vm1486, %v1453, %v1485
      %v1488 = vsel %vm1482, %v1455, %v1454
      %v1489 = vsel %vm1484, %v1456, %v1488
      %v1490 = vsel %vm1486, %v1457, %v1489
      %v1491 = vsel %vm1482, %v1459, %v1458
      %v1492 = vsel %vm1484, %v1460, %v1491
      %v1493 = vsel %vm1486, %v1461, %v1492
      %v1494 = vsel %vm1482, %v1463, %v1462
      %v1495 = vsel %vm1484, %v1464, %v1494
      %v1496 = vsel %vm1486, %v1465, %v1495
      %vm1501 = vcmask 519168
      %1502 = vst.msk [vmem:[%s197] sm:$0xf] %vm1501, %v1487
      %1503 = vst.msk [vmem:[%s197 + $0x4] sm:$0xf] %vm1501, %v1490
      %1504 = vst.msk [vmem:[%s197 + $0x8] sm:$0xf] %vm1501, %v1493
      %1505 = vst.msk [vmem:[%s197 + $0xc] sm:$0xf] %vm1501, %v1496
      %p1506 = scmp.lt.s32.totalorder %s15, 1
      %s1507 = scalar_select %p1506, %s15, 1
      %s1508 = smul.addr %s1507, 4
      %s1509 = smul.addr %s1508, 4
      %s1510 = scalar_lea.vmem %s4, %s1509
      // Predicated region
      $region37: #{collab_forward.9} parent=35 // pred_check
        %p1511 = pneg %p122
      $region38: #{collab_forward.9} parent=35 // pred_check_branch
        %1513 = sbr.rel (%p1511) target = $region40
      $region39: #{collab_forward.9} parent=35 // pred_region
        _
      $region40: #{collab_forward.9} parent=35 // pred_fallthru
        _
    $region36: #{collab_forward.9} parent=5 // pred_fallthru
      _
    %p1514 = scmp.le.s32.totalorder 2, %s10
    // Predicated region
    $region41: #{collab_forward.9} parent=5 // pred_check
      %p1515 = pneg %p1514
    $region42: #{collab_forward.9} parent=5 // pred_check_branch
      %1517 = sbr.rel (%p1515) target = $region44
    $region43: #{collab_forward.9} parent=5 // pred_region
      %s1518 = ssub.s32 %s10, 2
      // Predicated region
      $region45: #{collab_forward.9} parent=43 // pred_check
        %p1519 = pneg %p128
      $region46: #{collab_forward.9} parent=43 // pred_check_branch
        %1521 = sbr.rel (%p1519) target = $region48
      $region47: #{collab_forward.9} parent=43 // pred_region
        %p1522 = scmp.lt.s32.totalorder %s16, 1
        %s1523 = scalar_select %p1522, %s16, 1
        %s1524 = smul.addr %s1523, 4
        %s1525 = smul.addr %s1524, 4
        %s1526 = scalar_lea.vmem %s4, %s1525
      $region48: #{collab_forward.9} parent=43 // pred_fallthru
        _
    $region44: #{collab_forward.9} parent=5 // pred_fallthru
      _
  $region6: #{collab_forward.9} parent=0 // loop_footer
    %s14 = sadd.s32 1, %s10
  $region7: #{collab_forward.9} parent=0 // loop_footer_branch
    %9 = sbr.rel target = $region3
  $region8: #{collab_forward.9} parent=0 // loop_exit
    _

// kernel: collab_forward.11
$region0: #{collab_forward.11}
  #allocation0 [shape = 'u32[]', space=smem, size = 0x4, offset = 0x4, fixed_abs, tag = 'smem constant byte address 0x4 - core index']
  #allocation1 [shape = 'u32[144,128]{1,0:T(1,128)}', space=vmem, size = 0x12000, scoped, tag = 'internal scratch']
  %s0 = inlined_call_operand.vmem [shape: f32[2,4,4,64], index: 0, kind: input, shape index: {}]
  %s1 = inlined_call_operand.vmem [shape: f32[64,16], index: 1, kind: input, shape index: {}]
  %s2 = inlined_call_operand.vmem [shape: f32[2,8,8,64], index: 2, kind: output, shape index: {}]
  %s3 = sld [smem:[#allocation0]]
  $region41: #{collab_forward.11} parent=0
    _
  %s5 = ssub.s32 1, %s3
  %s6 = scalar_select 0, %s5, %s3
  loop: start=0, step=1, limit=4
  $region2: #{collab_forward.11} parent=0 // loop_pre_header
    _
  $region3: #{collab_forward.11} parent=0 // loop_header
    %s8 = sphi 0, %s12
    %p9 = scmp.ge.s32.totalorder %s8, 4
    %s18 = sphi 0, %s20
    %s21 = sphi 0, %s18
    %s22 = sphi 0, %s21
    %s38 = sphi 0, %s22
    %s42 = sphi 0, %s42
    %s44 = sphi 0, %s42
    %s45 = sphi 0, %s44
    %s59 = sphi 0, %s45
    %s65 = sphi 0, %s67
    %s68 = sphi 0, %s65
    %s69 = sphi 0, %s68
    %s85 = sphi 0, %s69
  $region4: #{collab_forward.11} parent=0 // loop_header_branch
    %11 = sbr.rel (%p9) target = $region8
  $region5: #{collab_forward.11} parent=0 // loop_body
    %s13 = ssub.s32 %s8, 1
    %s14 = ssub.s32 %s8, 2
    %s15 = sadd.s32 %s8, 1
    %s16 = ssub.s32 %s8, %s15
    %p17 = scmp.eq.s32.totalorder %s16, 0
    %s19 = sadd.s32 %s18, 1
    %s20 = scalar_select %p17, %s18, %s19
    %p23 = pneg %p17
    %p24 = scmp.eq.s32.totalorder %s8, 1
    %p25 = por %p23, %p24
    %p26 = scmp.ne.s32.totalorder %s18, %s21
    %p27 = scmp.eq.s32.totalorder %s8, 0
    %p28 = por %p26, %p27
    %p29 = scmp.ne.s32.totalorder %s18, %s21
    %p30 = scmp.eq.s32.totalorder %s13, 1
    %p31 = por %p29, %p30
    %p32 = scmp.ne.s32.totalorder %s21, %s22
    %p33 = scmp.eq.s32.totalorder %s13, 0
    %p34 = por %p32, %p33
    %p35 = scmp.ne.s32.totalorder %s21, %s22
    %p36 = scmp.eq.s32.totalorder %s14, 1
    %p37 = por %p35, %p36
    %p39 = scmp.ne.s32.totalorder %s22, %s38
    %p40 = scmp.eq.s32.totalorder %s14, 0
    %p41 = por %p39, %p40
    %s43 = sadd.s32 %s42, 1
    %p46 = scmp.eq.s32.totalorder %s8, 1
    %p47 = scmp.ne.s32.totalorder %s42, %s44
    %p48 = scmp.eq.s32.totalorder %s8, 0
    %p49 = por %p47, %p48
    %p50 = scmp.ne.s32.totalorder %s42, %s44
    %p51 = scmp.eq.s32.totalorder %s13, 1
    %p52 = por %p50, %p51
    %p53 = scmp.ne.s32.totalorder %s44, %s45
    %p54 = scmp.eq.s32.totalorder %s13, 0
    %p55 = por %p53, %p54
    %p56 = scmp.ne.s32.totalorder %s44, %s45
    %p57 = scmp.eq.s32.totalorder %s14, 1
    %p58 = por %p56, %p57
    %p60 = scmp.ne.s32.totalorder %s45, %s59
    %p61 = scmp.eq.s32.totalorder %s14, 0
    %p62 = por %p60, %p61
    %s63 = ssub.s32 %s8, %s15
    %p64 = scmp.eq.s32.totalorder %s63, 0
    %s66 = sadd.s32 %s65, 1
    %s67 = scalar_select %p64, %s65, %s66
    %p70 = pneg %p64
    %p71 = scmp.eq.s32.totalorder %s8, 1
    %p72 = por %p70, %p71
    %p73 = scmp.ne.s32.totalorder %s65, %s68
    %p74 = scmp.eq.s32.totalorder %s8, 0
    %p75 = por %p73, %p74
    %p76 = scmp.ne.s32.totalorder %s65, %s68
    %p77 = scmp.eq.s32.totalorder %s13, 1
    %p78 = por %p76, %p77
    %p79 = scmp.ne.s32.totalorder %s68, %s69
    %p80 = scmp.eq.s32.totalorder %s13, 0
    %p81 = por %p79, %p80
    %p82 = scmp.ne.s32.totalorder %s68, %s69
    %p83 = scmp.eq.s32.totalorder %s14, 1
    %p84 = por %p82, %p83
    %p86 = scmp.ne.s32.totalorder %s69, %s85
    %p87 = scmp.eq.s32.totalorder %s14, 0
    %p88 = por %p86, %p87
    %p89 = scmp.le.s32.totalorder 1, %s8
    %p90 = scmp.lt.s32.totalorder %s8, 3
    %p91 = pnand %p89, %p90
    %p92 = pneg %p91
    // Predicated region
    $region9: #{collab_forward.11} parent=5 // pred_check
      _
    $region10: #{collab_forward.11} parent=5 // pred_check_branch
      %94 = sbr.rel (%p91) target = $region12
    $region11: #{collab_forward.11} parent=5 // pred_region
      %s95 = ssub.s32 %s8, 1
      // Predicated region
      $region13: #{collab_forward.11} parent=11 // pred_check
        %p96 = pneg %p55
      $region14: #{collab_forward.11} parent=11 // pred_check_branch
        %98 = sbr.rel (%p96) target = $region16
      $region15: #{collab_forward.11} parent=11 // pred_region
        _
      $region16: #{collab_forward.11} parent=11 // pred_fallthru
        _
    $region12: #{collab_forward.11} parent=5 // pred_fallthru
      _
    %p99 = scmp.lt.s32.totalorder %s8, 2
    // Predicated region
    $region17: #{collab_forward.11} parent=5 // pred_check
      %p100 = pneg %p99
    $region18: #{collab_forward.11} parent=5 // pred_check_branch
      %102 = sbr.rel (%p100) target = $region20
    $region19: #{collab_forward.11} parent=5 // pred_region
      // Predicated region
      $region21: #{collab_forward.11} parent=19 // pred_check
        %p103 = pneg %p28
      $region22: #{collab_forward.11} parent=19 // pred_check_branch
        %105 = sbr.rel (%p103) target = $region24
      $region23: #{collab_forward.11} parent=19 // pred_region
        %p106 = scmp.lt.s32.totalorder %s8, 1
        %s107 = scalar_select %p106, %s8, 1
        %s108 = smul.addr %s107, 4
        %s109 = smul.addr %s108, 4
        %s110 = scalar_lea.vmem %s0, %s109
      $region24: #{collab_forward.11} parent=19 // pred_fallthru
        _
    $region20: #{collab_forward.11} parent=5 // pred_fallthru
      _
    %p111 = scmp.le.s32.totalorder 1, %s8
    %p112 = scmp.lt.s32.totalorder %s8, 3
    %p113 = pnand %p111, %p112
    %p114 = pneg %p113
    // Predicated region
    $region25: #{collab_forward.11} parent=5 // pred_check
      _
    $region26: #{collab_forward.11} parent=5 // pred_check_branch
      %116 = sbr.rel (%p113) target = $region28
    $region27: #{collab_forward.11} parent=5 // pred_region
      %s117 = ssub.s32 %s8, 1
      %p118 = scmp.lt.s32.totalorder %s13, 1
      %s119 = scalar_select %p118, %s13, 1
      %s120 = smul.addr %s119, 4
      %s121 = smul.addr %s120, 4
      %s122 = scalar_lea.vmem %s0, %s121
      %p123 = pneg %p34
      %p124 = pneg %p31
      %p125 = pneg %p55
      %p126 = pneg %p52
      %p127 = pneg %p81
      %p128 = pneg %p78
      %p129 = scmp.lt.s32.totalorder %s13, 1
      %s130 = scalar_select %p129, %s13, 1
      %s131 = smul.addr %s130, 8
      %s132 = smul.addr %s131, 8
      %s133 = scalar_lea.vmem %s2, %s132
      %p134 = scmp.lt.s32.totalorder %s13, 1
      %s135 = scalar_select %p134, %s13, 1
      %s136 = smul.addr %s135, 4
      %s137 = smul.addr %s136, 4
      %s138 = scalar_lea.vmem %s0, %s137
      %p139 = scmp.lt.s32.totalorder %s13, 1
      %s140 = scalar_select %p139, %s13, 1
      %s141 = smul.addr %s140, 8
      %s142 = smul.addr %s141, 8
      %s143 = scalar_lea.vmem %s2, %s142
      %v144 = vld [vmem:[%s138] sm:$0xf]
      %v145 = vld [vmem:[%s138 + $0x4] sm:$0xf]
      %v146 = vld [vmem:[%s138 + $0x8] sm:$0xf]
      %v147 = vld [vmem:[%s138 + $0xc] sm:$0xf]
      %v148 = vld [vmem:[%s1] sm:$0xff]
      %v149 = vld [vmem:[%s1 + $0x8] sm:$0xff]
      %v150 = vld [vmem:[%s1 + $0x10] sm:$0xff]
      %v151 = vld [vmem:[%s1 + $0x18] sm:$0xff]
      %v152 = vld [vmem:[%s1 + $0x20] sm:$0xff]
      %v153 = vld [vmem:[%s1 + $0x28] sm:$0xff]
      %v154 = vld [vmem:[%s1 + $0x30] sm:$0xff]
      %v155 = vld [vmem:[%s1 + $0x38] sm:$0xff]
      %v160 = vcombine.low %v144, %v145
      %v161 = vcombine.low %v146, %v147
      %vm164 = vcmask 130048
      %v166 = vsel %vm164, %v148, 0
      %v169 = vsel %vm164, %v149, 0
      %v172 = vsel %vm164, %v150, 0
      %v175 = vsel %vm164, %v151, 0
      %v178 = vsel %vm164, %v152, 0
      %v181 = vsel %vm164, %v153, 0
      %v184 = vsel %vm164, %v154, 0
      %v187 = vsel %vm164, %v155, 0
      %189 = vmatprep.subr.mxu0 0.0
      %190 = vmatpush1.msra.mxu0 %v160
      %191 = vmatprep.subr.mxu0 0.0
      %192 = vmatpush1.msra.mxu0 %v161
      %193 = vmatprep.subr.mxu0 0.0
      %194 = vmatpush1.msra.mxu0 0.0
      %195 = vmatprep.subr.mxu0 0.0
      %196 = vmatpush1.msra.mxu0 0.0
      %197 = vmatprep.subr.mxu0 0.0
      %198 = vmatpush1.msra.mxu0 0.0
      %199 = vmatprep.subr.mxu0 0.0
      %200 = vmatpush1.msra.mxu0 0.0
      %201 = vmatprep.subr.mxu0 0.0
      %202 = vmatpush1.msra.mxu0 0.0
      %203 = vmatprep.subr.mxu0 0.0
      %204 = vmatpush1.msra.mxu0 0.0
      %205 = vmatprep.subr.mxu0 0.0
      %206 = vmatpush1.msra.mxu0 0.0
      %207 = vmatprep.subr.mxu0 0.0
      %208 = vmatpush1.msra.mxu0 0.0
      %209 = vmatprep.subr.mxu0 0.0
      %210 = vmatpush1.msra.mxu0 0.0
      %211 = vmatprep.subr.mxu0 0.0
      %212 = vmatpush1.msra.mxu0 0.0
      %213 = vmatprep.subr.mxu0 0.0
      %214 = vmatpush1.msra.mxu0 0.0
      %215 = vmatprep.subr.mxu0 0.0
      %216 = vmatpush1.msra.mxu0 0.0
      %217 = vmatprep.subr.mxu0 0.0
      %218 = vmatpush1.msra.mxu0 0.0
      %219 = vmatprep.subr.mxu0 0.0
      %220 = vmatpush1.msra.mxu0 0.0
      %221 = vmatprep.subr.mxu0 0.0
      %222 = vmatpush1.msra.mxu0 0.0
      %223 = vmatprep.subr.mxu0 0.0
      %224 = vmatpush1.msra.mxu0 0.0
      %225 = vmatprep.subr.mxu0 0.0
      %226 = vmatpush1.msra.mxu0 0.0
      %227 = vmatprep.subr.mxu0 0.0
      %228 = vmatpush1.msra.mxu0 0.0
      %229 = vmatprep.subr.mxu0 0.0
      %230 = vmatpush1.msra.mxu0 0.0
      %231 = vmatprep.subr.mxu0 0.0
      %232 = vmatpush1.msra.mxu0 0.0
      %233 = vmatprep.subr.mxu0 0.0
      %234 = vmatpush1.msra.mxu0 0.0
      %235 = vmatprep.subr.mxu0 0.0
      %236 = vmatpush1.msra.mxu0 0.0
      %237 = vmatprep.subr.mxu0 0.0
      %238 = vmatpush1.msra.mxu0 0.0
      %239 = vmatprep.subr.mxu0 0.0
      %240 = vmatpush1.msra.mxu0 0.0
      %241 = vmatprep.subr.mxu0 0.0
      %242 = vmatpush1.msra.mxu0 0.0
      %243 = vmatprep.subr.mxu0 0.0
      %244 = vmatpush1.msra.mxu0 0.0
      %245 = vmatprep.subr.mxu0 0.0
      %246 = vmatpush1.msra.mxu0 0.0
      %247 = vmatprep.subr.mxu0 0.0
      %248 = vmatpush1.msra.mxu0 0.0
      %249 = vmatprep.subr.mxu0 0.0
      %250 = vmatpush1.msra.mxu0 0.0
      %251 = vmatprep.subr.mxu0 0.0
      %252 = vmatpush1.msra.mxu0 0.0
      %253 = vmatprep.mubr.f32.mxu0 0.0
      %254 = vmatmul.mubr.f32.gmra.mrb[0].mxu0 %v166
      %v255 = vpop.f32.mrb[0].mxu0
      %v256 = vadd.f32 0.0, %v255
      %v257 = vpop.f32.mrb[0].mxu0
      %258 = vmatprep.mubr.f32.mxu0 0.0
      %259 = vmatmul.mubr.f32.gmra.mrb[0].mxu0 %v169
      %v260 = vpop.f32.mrb[0].mxu0
      %v261 = vadd.f32 0.0, %v260
      %v262 = vpop.f32.mrb[0].mxu0
      %263 = vmatprep.mubr.f32.mxu0 0.0
      %264 = vmatmul.mubr.f32.gmra.mrb[0].mxu0 %v172
      %v265 = vpop.f32.mrb[0].mxu0
      %v266 = vadd.f32 0.0, %v265
      %v267 = vpop.f32.mrb[0].mxu0
      %268 = vmatprep.mubr.f32.mxu0 0.0
      %269 = vmatmul.mubr.f32.gmra.mrb[0].mxu0 %v175
      %v270 = vpop.f32.mrb[0].mxu0
      %v271 = vadd.f32 0.0, %v270
      %v272 = vpop.f32.mrb[0].mxu0
      %273 = vmatprep.mubr.f32.mxu0 0.0
      %274 = vmatmul.mubr.f32.gmra.mrb[0].mxu0 %v178
      %v275 = vpop.f32.mrb[0].mxu0
      %v276 = vadd.f32 0.0, %v275
      %v277 = vpop.f32.mrb[0].mxu0
      %278 = vmatprep.mubr.f32.mxu0 0.0
      %279 = vmatmul.mubr.f32.gmra.mrb[0].mxu0 %v181
      %v280 = vpop.f32.mrb[0].mxu0
      %v281 = vadd.f32 0.0, %v280
      %v282 = vpop.f32.mrb[0].mxu0
      %283 = vmatprep.mubr.f32.mxu0 0.0
      %284 = vmatmul.mubr.f32.gmra.mrb[0].mxu0 %v184
      %v285 = vpop.f32.mrb[0].mxu0
      %v286 = vadd.f32 0.0, %v285
      %v287 = vpop.f32.mrb[0].mxu0
      %288 = vmatprep.mubr.f32.mxu0 0.0
      %289 = vmatmul.mubr.f32.gmra.mrb[0].mxu0 %v187
      %v290 = vpop.f32.mrb[0].mxu0
      %v291 = vadd.f32 0.0, %v290
      %v292 = vpop.f32.mrb[0].mxu0
      %293 = vdwg.mxu0
      %vm294 = vcmask 523264
      %295 = vst.msk [vmem:[%s143] sm:$0xff] %vm294, %v256
      %296 = vst.msk [vmem:[%s143 + $0x8] sm:$0xff] %vm294, %v261
      %297 = vst.msk [vmem:[%s143 + $0x10] sm:$0xff] %vm294, %v266
      %298 = vst.msk [vmem:[%s143 + $0x18] sm:$0xff] %vm294, %v271
      %299 = vst.msk [vmem:[%s143 + $0x20] sm:$0xff] %vm294, %v276
      %300 = vst.msk [vmem:[%s143 + $0x28] sm:$0xff] %vm294, %v281
      %301 = vst.msk [vmem:[%s143 + $0x30] sm:$0xff] %vm294, %v286
      %302 = vst.msk [vmem:[%s143 + $0x38] sm:$0xff] %vm294, %v291
      %p303 = scmp.lt.s32.totalorder %s13, 1
      %s304 = scalar_select %p303, %s13, 1
      %s305 = smul.addr %s304, 8
      %s306 = smul.addr %s305, 8
      %s307 = scalar_lea.vmem %s2, %s306
      // Predicated region
      $region29: #{collab_forward.11} parent=27 // pred_check
        %p308 = pneg %p78
      $region30: #{collab_forward.11} parent=27 // pred_check_branch
        %310 = sbr.rel (%p308) target = $region32
      $region31: #{collab_forward.11} parent=27 // pred_region
        _
      $region32: #{collab_forward.11} parent=27 // pred_fallthru
        _
    $region28: #{collab_forward.11} parent=5 // pred_fallthru
      _
    %p311 = scmp.le.s32.totalorder 2, %s8
    // Predicated region
    $region33: #{collab_forward.11} parent=5 // pred_check
      %p312 = pneg %p311
    $region34: #{collab_forward.11} parent=5 // pred_check_branch
      %314 = sbr.rel (%p312) target = $region36
    $region35: #{collab_forward.11} parent=5 // pred_region
      %s315 = ssub.s32 %s8, 2
      // Predicated region
      $region37: #{collab_forward.11} parent=35 // pred_check
        %p316 = pneg %p84
      $region38: #{collab_forward.11} parent=35 // pred_check_branch
        %318 = sbr.rel (%p316) target = $region40
      $region39: #{collab_forward.11} parent=35 // pred_region
        %p319 = scmp.lt.s32.totalorder %s14, 1
        %s320 = scalar_select %p319, %s14, 1
        %s321 = smul.addr %s320, 8
        %s322 = smul.addr %s321, 8
        %s323 = scalar_lea.vmem %s2, %s322
      $region40: #{collab_forward.11} parent=35 // pred_fallthru
        _
    $region36: #{collab_forward.11} parent=5 // pred_fallthru
      _
  $region6: #{collab_forward.11} parent=0 // loop_footer
    %s12 = sadd.s32 1, %s8
  $region7: #{collab_forward.11} parent=0 // loop_footer_branch
    %7 = sbr.rel target = $region3
  $region8: #{collab_forward.11} parent=0 // loop_exit
    _

// kernel: collab_forward.12
$region0: #{collab_forward.12}
  #allocation0 [shape = 'u32[]', space=smem, size = 0x4, offset = 0x4, fixed_abs, tag = 'smem constant byte address 0x4 - core index']
  #allocation1 [shape = 'u32[144,128]{1,0:T(1,128)}', space=vmem, size = 0x12000, scoped, tag = 'internal scratch']
  %s0 = inlined_call_operand.vmem [shape: f32[2,10,10,64], index: 0, kind: input, shape index: {}]
  %s1 = inlined_call_operand.vmem [shape: bf16[576,32], index: 1, kind: input, shape index: {}]
  %s2 = inlined_call_operand.vmem [shape: f32[1,32], index: 2, kind: input, shape index: {}]
  %s3 = inlined_call_operand.vmem [shape: f32[1,32], index: 3, kind: input, shape index: {}]
  %s4 = inlined_call_operand.vmem [shape: f32[2,8,8,32], index: 4, kind: output, shape index: {}]
  %s5 = sld [smem:[#allocation0]]
  $region49: #{collab_forward.12} parent=0
    _
  %s7 = ssub.s32 1, %s5
  %s8 = scalar_select 0, %s7, %s5
  loop: start=0, step=1, limit=4
  $region2: #{collab_forward.12} parent=0 // loop_pre_header
    _
  $region3: #{collab_forward.12} parent=0 // loop_header
    %s10 = sphi 0, %s14
    %p11 = scmp.ge.s32.totalorder %s10, 4
    %s20 = sphi 0, %s22
    %s23 = sphi 0, %s20
    %s24 = sphi 0, %s23
    %s40 = sphi 0, %s24
    %s44 = sphi 0, %s44
    %s46 = sphi 0, %s44
    %s47 = sphi 0, %s46
    %s61 = sphi 0, %s47
    %s65 = sphi 0, %s65
    %s67 = sphi 0, %s65
    %s68 = sphi 0, %s67
    %s82 = sphi 0, %s68
    %s86 = sphi 0, %s86
    %s88 = sphi 0, %s86
    %s89 = sphi 0, %s88
    %s103 = sphi 0, %s89
    %s109 = sphi 0, %s111
    %s112 = sphi 0, %s109
    %s113 = sphi 0, %s112
    %s129 = sphi 0, %s113
  $region4: #{collab_forward.12} parent=0 // loop_header_branch
    %13 = sbr.rel (%p11) target = $region8
  $region5: #{collab_forward.12} parent=0 // loop_body
    %s15 = ssub.s32 %s10, 1
    %s16 = ssub.s32 %s10, 2
    %s17 = sadd.s32 %s10, 1
    %s18 = ssub.s32 %s10, %s17
    %p19 = scmp.eq.s32.totalorder %s18, 0
    %s21 = sadd.s32 %s20, 1
    %s22 = scalar_select %p19, %s20, %s21
    %p25 = pneg %p19
    %p26 = scmp.eq.s32.totalorder %s10, 1
    %p27 = por %p25, %p26
    %p28 = scmp.ne.s32.totalorder %s20, %s23
    %p29 = scmp.eq.s32.totalorder %s10, 0
    %p30 = por %p28, %p29
    %p31 = scmp.ne.s32.totalorder %s20, %s23
    %p32 = scmp.eq.s32.totalorder %s15, 1
    %p33 = por %p31, %p32
    %p34 = scmp.ne.s32.totalorder %s23, %s24
    %p35 = scmp.eq.s32.totalorder %s15, 0
    %p36 = por %p34, %p35
    %p37 = scmp.ne.s32.totalorder %s23, %s24
    %p38 = scmp.eq.s32.totalorder %s16, 1
    %p39 = por %p37, %p38
    %p41 = scmp.ne.s32.totalorder %s24, %s40
    %p42 = scmp.eq.s32.totalorder %s16, 0
    %p43 = por %p41, %p42
    %s45 = sadd.s32 %s44, 1
    %p48 = scmp.eq.s32.totalorder %s10, 1
    %p49 = scmp.ne.s32.totalorder %s44, %s46
    %p50 = scmp.eq.s32.totalorder %s10, 0
    %p51 = por %p49, %p50
    %p52 = scmp.ne.s32.totalorder %s44, %s46
    %p53 = scmp.eq.s32.totalorder %s15, 1
    %p54 = por %p52, %p53
    %p55 = scmp.ne.s32.totalorder %s46, %s47
    %p56 = scmp.eq.s32.totalorder %s15, 0
    %p57 = por %p55, %p56
    %p58 = scmp.ne.s32.totalorder %s46, %s47
    %p59 = scmp.eq.s32.totalorder %s16, 1
    %p60 = por %p58, %p59
    %p62 = scmp.ne.s32.totalorder %s47, %s61
    %p63 = scmp.eq.s32.totalorder %s16, 0
    %p64 = por %p62, %p63
    %s66 = sadd.s32 %s65, 1
    %p69 = scmp.eq.s32.totalorder %s10, 1
    %p70 = scmp.ne.s32.totalorder %s65, %s67
    %p71 = scmp.eq.s32.totalorder %s10, 0
    %p72 = por %p70, %p71
    %p73 = scmp.ne.s32.totalorder %s65, %s67
    %p74 = scmp.eq.s32.totalorder %s15, 1
    %p75 = por %p73, %p74
    %p76 = scmp.ne.s32.totalorder %s67, %s68
    %p77 = scmp.eq.s32.totalorder %s15, 0
    %p78 = por %p76, %p77
    %p79 = scmp.ne.s32.totalorder %s67, %s68
    %p80 = scmp.eq.s32.totalorder %s16, 1
    %p81 = por %p79, %p80
    %p83 = scmp.ne.s32.totalorder %s68, %s82
    %p84 = scmp.eq.s32.totalorder %s16, 0
    %p85 = por %p83, %p84
    %s87 = sadd.s32 %s86, 1
    %p90 = scmp.eq.s32.totalorder %s10, 1
    %p91 = scmp.ne.s32.totalorder %s86, %s88
    %p92 = scmp.eq.s32.totalorder %s10, 0
    %p93 = por %p91, %p92
    %p94 = scmp.ne.s32.totalorder %s86, %s88
    %p95 = scmp.eq.s32.totalorder %s15, 1
    %p96 = por %p94, %p95
    %p97 = scmp.ne.s32.totalorder %s88, %s89
    %p98 = scmp.eq.s32.totalorder %s15, 0
    %p99 = por %p97, %p98
    %p100 = scmp.ne.s32.totalorder %s88, %s89
    %p101 = scmp.eq.s32.totalorder %s16, 1
    %p102 = por %p100, %p101
    %p104 = scmp.ne.s32.totalorder %s89, %s103
    %p105 = scmp.eq.s32.totalorder %s16, 0
    %p106 = por %p104, %p105
    %s107 = ssub.s32 %s10, %s17
    %p108 = scmp.eq.s32.totalorder %s107, 0
    %s110 = sadd.s32 %s109, 1
    %s111 = scalar_select %p108, %s109, %s110
    %p114 = pneg %p108
    %p115 = scmp.eq.s32.totalorder %s10, 1
    %p116 = por %p114, %p115
    %p117 = scmp.ne.s32.totalorder %s109, %s112
    %p118 = scmp.eq.s32.totalorder %s10, 0
    %p119 = por %p117, %p118
    %p120 = scmp.ne.s32.totalorder %s109, %s112
    %p121 = scmp.eq.s32.totalorder %s15, 1
    %p122 = por %p120, %p121
    %p123 = scmp.ne.s32.totalorder %s112, %s113
    %p124 = scmp.eq.s32.totalorder %s15, 0
    %p125 = por %p123, %p124
    %p126 = scmp.ne.s32.totalorder %s112, %s113
    %p127 = scmp.eq.s32.totalorder %s16, 1
    %p128 = por %p126, %p127
    %p130 = scmp.ne.s32.totalorder %s113, %s129
    %p131 = scmp.eq.s32.totalorder %s16, 0
    %p132 = por %p130, %p131
    %p133 = scmp.le.s32.totalorder 1, %s10
    %p134 = scmp.lt.s32.totalorder %s10, 3
    %p135 = pnand %p133, %p134
    %p136 = pneg %p135
    // Predicated region
    $region9: #{collab_forward.12} parent=5 // pred_check
      _
    $region10: #{collab_forward.12} parent=5 // pred_check_branch
      %138 = sbr.rel (%p135) target = $region12
    $region11: #{collab_forward.12} parent=5 // pred_region
      %s139 = ssub.s32 %s10, 1
      // Predicated region
      $region13: #{collab_forward.12} parent=11 // pred_check
        %p140 = pneg %p57
      $region14: #{collab_forward.12} parent=11 // pred_check_branch
        %142 = sbr.rel (%p140) target = $region16
      $region15: #{collab_forward.12} parent=11 // pred_region
        _
      $region16: #{collab_forward.12} parent=11 // pred_fallthru
        _
      // Predicated region
      $region17: #{collab_forward.12} parent=11 // pred_check
        %p143 = pneg %p78
      $region18: #{collab_forward.12} parent=11 // pred_check_branch
        %145 = sbr.rel (%p143) target = $region20
      $region19: #{collab_forward.12} parent=11 // pred_region
        _
      $region20: #{collab_forward.12} parent=11 // pred_fallthru
        _
      // Predicated region
      $region21: #{collab_forward.12} parent=11 // pred_check
        %p146 = pneg %p99
      $region22: #{collab_forward.12} parent=11 // pred_check_branch
        %148 = sbr.rel (%p146) target = $region24
      $region23: #{collab_forward.12} parent=11 // pred_region
        _
      $region24: #{collab_forward.12} parent=11 // pred_fallthru
        _
    $region12: #{collab_forward.12} parent=5 // pred_fallthru
      _
    %p149 = scmp.lt.s32.totalorder %s10, 2
    // Predicated region
    $region25: #{collab_forward.12} parent=5 // pred_check
      %p150 = pneg %p149
    $region26: #{collab_forward.12} parent=5 // pred_check_branch
      %152 = sbr.rel (%p150) target = $region28
    $region27: #{collab_forward.12} parent=5 // pred_region
      // Predicated region
      $region29: #{collab_forward.12} parent=27 // pred_check
        %p153 = pneg %p30
      $region30: #{collab_forward.12} parent=27 // pred_check_branch
        %155 = sbr.rel (%p153) target = $region32
      $region31: #{collab_forward.12} parent=27 // pred_region
        %p156 = scmp.lt.s32.totalorder %s10, 1
        %s157 = scalar_select %p156, %s10, 1
        %s158 = smul.addr %s157, 20
        %s159 = smul.addr %s158, 8
        %s160 = scalar_lea.vmem %s0, %s159
      $region32: #{collab_forward.12} parent=27 // pred_fallthru
        _
    $region28: #{collab_forward.12} parent=5 // pred_fallthru
      _
    %p161 = scmp.le.s32.totalorder 1, %s10
    %p162 = scmp.lt.s32.totalorder %s10, 3
    %p163 = pnand %p161, %p162
    %p164 = pneg %p163
    // Predicated region
    $region33: #{collab_forward.12} parent=5 // pred_check
      _
    $region34: #{collab_forward.12} parent=5 // pred_check_branch
      %166 = sbr.rel (%p163) target = $region36
    $region35: #{collab_forward.12} parent=5 // pred_region
      %s167 = ssub.s32 %s10, 1
      %p168 = scmp.lt.s32.totalorder %s15, 1
      %s169 = scalar_select %p168, %s15, 1
      %s170 = smul.addr %s169, 20
      %s171 = smul.addr %s170, 8
      %s172 = scalar_lea.vmem %s0, %s171
      %p173 = pneg %p36
      %p174 = pneg %p33
      %p175 = pneg %p57
      %p176 = pneg %p54
      %p177 = pneg %p78
      %p178 = pneg %p75
      %p179 = pneg %p99
      %p180 = pneg %p96
      %p181 = pneg %p125
      %p182 = pneg %p122
      %p183 = scmp.lt.s32.totalorder %s15, 1
      %s184 = scalar_select %p183, %s15, 1
      %s185 = smul.addr %s184, 8
      %s186 = smul.addr %s185, 8
      %s187 = scalar_lea.vmem %s4, %s186
      %p188 = scmp.lt.s32.totalorder %s15, 1
      %s189 = scalar_select %p188, %s15, 1
      %s190 = smul.addr %s189, 20
      %s191 = smul.addr %s190, 8
      %s192 = scalar_lea.vmem %s0, %s191
      %p193 = scmp.lt.s32.totalorder %s15, 1
      %s194 = scalar_select %p193, %s15, 1
      %s195 = smul.addr %s194, 8
      %s196 = smul.addr %s195, 8
      %s197 = scalar_lea.vmem %s4, %s196
      %v199 = vld [vmem:[%s192] sm:$0xff]
      %v200 = vld [vmem:[%s192 + $0x8] sm:$0x3]
      %v201 = vld [vmem:[%s192 + $0x10] sm:$0xff]
      %v202 = vld [vmem:[%s192 + $0x18] sm:$0x3]
      %v203 = vld [vmem:[%s192 + $0x20] sm:$0xff]
      %v204 = vld [vmem:[%s192 + $0x28] sm:$0x3]
      %v205 = vld [vmem:[%s192 + $0x30] sm:$0xff]
      %v206 = vld [vmem:[%s192 + $0x38] sm:$0x3]
      %v207 = vld [vmem:[%s192 + $0x40] sm:$0xff]
      %v208 = vld [vmem:[%s192 + $0x48] sm:$0x3]
      %v209 = vld [vmem:[%s192 + $0x50] sm:$0xff]
      %v210 = vld [vmem:[%s192 + $0x58] sm:$0x3]
      %v211 = vld [vmem:[%s192 + $0x60] sm:$0xff]
      %v212 = vld [vmem:[%s192 + $0x68] sm:$0x3]
      %v213 = vld [vmem:[%s192 + $0x70] sm:$0xff]
      %v214 = vld [vmem:[%s192 + $0x78] sm:$0x3]
      %v215 = vld [vmem:[%s192 + $0x80] sm:$0xff]
      %v216 = vld [vmem:[%s192 + $0x88] sm:$0x3]
      %v217 = vld [vmem:[%s192 + $0x90] sm:$0xff]
      %v218 = vld [vmem:[%s192 + $0x98] sm:$0x3]
      %235 = vrot.lane.b32.xlu0 %v201, 64
      %v236 = vpop.permute.xlu0 %235
      %237 = vrot.lane.b32.xlu0 %v202, 64
      %v238 = vpop.permute.xlu0 %237
      %239 = vrot.lane.b32.xlu0 %v203, 64
      %v240 = vpop.permute.xlu0 %239
      %241 = vrot.lane.b32.xlu0 %v204, 64
      %v242 = vpop.permute.xlu0 %241
      %243 = vrot.lane.b32.xlu0 %v205, 64
      %v244 = vpop.permute.xlu0 %243
      %245 = vrot.lane.b32.xlu0 %v206, 64
      %v246 = vpop.permute.xlu0 %245
      %247 = vrot.lane.b32.xlu0 %v207, 64
      %v248 = vpop.permute.xlu0 %247
      %249 = vrot.lane.b32.xlu0 %v208, 64
      %v250 = vpop.permute.xlu0 %249
      %251 = vrot.lane.b32.xlu0 %v209, 64
      %v252 = vpop.permute.xlu0 %251
      %253 = vrot.lane.b32.xlu0 %v210, 64
      %v254 = vpop.permute.xlu0 %253
      %255 = vrot.lane.b32.xlu0 %v211, 64
      %v256 = vpop.permute.xlu0 %255
      %257 = vrot.lane.b32.xlu0 %v212, 64
      %v258 = vpop.permute.xlu0 %257
      %259 = vrot.lane.b32.xlu0 %v213, 64
      %v260 = vpop.permute.xlu0 %259
      %261 = vrot.lane.b32.xlu0 %v214, 64
      %v262 = vpop.permute.xlu0 %261
      %263 = vrot.lane.b32.xlu0 %v215, 64
      %v264 = vpop.permute.xlu0 %263
      %265 = vrot.lane.b32.xlu0 %v216, 64
      %v266 = vpop.permute.xlu0 %265
      %vm283 = vcmask 523264
      %v284 = vsel %vm283, %v199, %v236
      %v285 = vsel %vm283, %v200, %v238
      %v286 = vsel %vm283, %v201, %v240
      %v287 = vsel %vm283, %v202, %v242
      %v288 = vsel %vm283, %v203, %v244
      %v289 = vsel %vm283, %v204, %v246
      %v290 = vsel %vm283, %v205, %v248
      %v291 = vsel %vm283, %v206, %v250
      %v292 = vsel %vm283, %v207, %v252
      %v293 = vsel %vm283, %v208, %v254
      %v294 = vsel %vm283, %v209, %v256
      %v295 = vsel %vm283, %v210, %v258
      %v296 = vsel %vm283, %v211, %v260
      %v297 = vsel %vm283, %v212, %v262
      %v298 = vsel %vm283, %v213, %v264
      %v299 = vsel %vm283, %v214, %v266
      %vm318 = vcmask 1046528
      %v319 = vrot.slane %v284, 1
      %v320 = vrot.slane %v285, 1
      %v321 = vsel %vm318, %v319, %v320
      %v322 = vrot.slane %v203, 1
      %v323 = vrot.slane %v204, 1
      %v324 = vsel %vm318, %v322, %v323
      %v325 = vrot.slane %v286, 1
      %v326 = vrot.slane %v287, 1
      %v327 = vsel %vm318, %v325, %v326
      %v328 = vrot.slane %v205, 1
      %v329 = vrot.slane %v206, 1
      %v330 = vsel %vm318, %v328, %v329
      %v331 = vrot.slane %v288, 1
      %v332 = vrot.slane %v289, 1
      %v333 = vsel %vm318, %v331, %v332
      %v334 = vrot.slane %v207, 1
      %v335 = vrot.slane %v208, 1
      %v336 = vsel %vm318, %v334, %v335
      %v337 = vrot.slane %v290, 1
      %v338 = vrot.slane %v291, 1
      %v339 = vsel %vm318, %v337, %v338
      %v340 = vrot.slane %v209, 1
      %v341 = vrot.slane %v210, 1
      %v342 = vsel %vm318, %v340, %v341
      %v343 = vrot.slane %v292, 1
      %v344 = vrot.slane %v293, 1
      %v345 = vsel %vm318, %v343, %v344
      %v346 = vrot.slane %v211, 1
      %v347 = vrot.slane %v212, 1
      %v348 = vsel %vm318, %v346, %v347
      %v349 = vrot.slane %v294, 1
      %v350 = vrot.slane %v295, 1
      %v351 = vsel %vm318, %v349, %v350
      %v352 = vrot.slane %v213, 1
      %v353 = vrot.slane %v214, 1
      %v354 = vsel %vm318, %v352, %v353
      %v355 = vrot.slane %v296, 1
      %v356 = vrot.slane %v297, 1
      %v357 = vsel %vm318, %v355, %v356
      %v358 = vrot.slane %v215, 1
      %v359 = vrot.slane %v216, 1
      %v360 = vsel %vm318, %v358, %v359
      %v361 = vrot.slane %v298, 1
      %v362 = vrot.slane %v299, 1
      %v363 = vsel %vm318, %v361, %v362
      %v364 = vrot.slane %v217, 1
      %v365 = vrot.slane %v218, 1
      %v366 = vsel %vm318, %v364, %v365
      %367 = vrot.lane.b32.xlu0 %v321, 64
      %v368 = vpop.permute.xlu0 %367
      %369 = vrot.lane.b32.xlu0 %v324, 64
      %v370 = vpop.permute.xlu0 %369
      %371 = vrot.lane.b32.xlu0 %v327, 64
      %v372 = vpop.permute.xlu0 %371
      %373 = vrot.lane.b32.xlu0 %v330, 64
      %v374 = vpop.permute.xlu0 %373
      %375 = vrot.lane.b32.xlu0 %v333, 64
      %v376 = vpop.permute.xlu0 %375
      %377 = vrot.lane.b32.xlu0 %v336, 64
      %v378 = vpop.permute.xlu0 %377
      %379 = vrot.lane.b32.xlu0 %v339, 64
      %v380 = vpop.permute.xlu0 %379
      %381 = vrot.lane.b32.xlu0 %v342, 64
      %v382 = vpop.permute.xlu0 %381
      %383 = vrot.lane.b32.xlu0 %v345, 64
      %v384 = vpop.permute.xlu0 %383
      %385 = vrot.lane.b32.xlu0 %v348, 64
      %v386 = vpop.permute.xlu0 %385
      %387 = vrot.lane.b32.xlu0 %v351, 64
      %v388 = vpop.permute.xlu0 %387
      %389 = vrot.lane.b32.xlu0 %v354, 64
      %v390 = vpop.permute.xlu0 %389
      %391 = vrot.lane.b32.xlu0 %v357, 64
      %v392 = vpop.permute.xlu0 %391
      %393 = vrot.lane.b32.xlu0 %v360, 64
      %v394 = vpop.permute.xlu0 %393
      %395 = vrot.lane.b32.xlu0 %v363, 64
      %v396 = vpop.permute.xlu0 %395
      %397 = vrot.lane.b32.xlu0 %v366, 64
      %v398 = vpop.permute.xlu0 %397
      %v399 = vsel %vm283, %v368, %v370
      %v400 = vsel %vm283, %v372, %v374
      %v401 = vsel %vm283, %v376, %v378
      %v402 = vsel %vm283, %v380, %v382
      %v403 = vsel %vm283, %v384, %v386
      %v404 = vsel %vm283, %v388, %v390
      %v405 = vsel %vm283, %v392, %v394
      %v406 = vsel %vm283, %v396, %v398
      %vm423 = vcmask 1045504
      %v424 = vrot.slane %v284, 2
      %v425 = vrot.slane %v285, 2
      %v426 = vsel %vm423, %v424, %v425
      %v427 = vrot.slane %v203, 2
      %v428 = vrot.slane %v204, 2
      %v429 = vsel %vm423, %v427, %v428
      %v430 = vrot.slane %v286, 2
      %v431 = vrot.slane %v287, 2
      %v432 = vsel %vm423, %v430, %v431
      %v433 = vrot.slane %v205, 2
      %v434 = vrot.slane %v206, 2
      %v435 = vsel %vm423, %v433, %v434
      %v436 = vrot.slane %v288, 2
      %v437 = vrot.slane %v289, 2
      %v438 = vsel %vm423, %v436, %v437
      %v439 = vrot.slane %v207, 2
      %v440 = vrot.slane %v208, 2
      %v441 = vsel %vm423, %v439, %v440
      %v442 = vrot.slane %v290, 2
      %v443 = vrot.slane %v291, 2
      %v444 = vsel %vm423, %v442, %v443
      %v445 = vrot.slane %v209, 2
      %v446 = vrot.slane %v210, 2
      %v447 = vsel %vm423, %v445, %v446
      %v448 = vrot.slane %v292, 2
      %v449 = vrot.slane %v293, 2
      %v450 = vsel %vm423, %v448, %v449
      %v451 = vrot.slane %v211, 2
      %v452 = vrot.slane %v212, 2
      %v453 = vsel %vm423, %v451, %v452
      %v454 = vrot.slane %v294, 2
      %v455 = vrot.slane %v295, 2
      %v456 = vsel %vm423, %v454, %v455
      %v457 = vrot.slane %v213, 2
      %v458 = vrot.slane %v214, 2
      %v459 = vsel %vm423, %v457, %v458
      %v460 = vrot.slane %v296, 2
      %v461 = vrot.slane %v297, 2
      %v462 = vsel %vm423, %v460, %v461
      %v463 = vrot.slane %v215, 2
      %v464 = vrot.slane %v216, 2
      %v465 = vsel %vm423, %v463, %v464
      %v466 = vrot.slane %v298, 2
      %v467 = vrot.slane %v299, 2
      %v468 = vsel %vm423, %v466, %v467
      %v469 = vrot.slane %v217, 2
      %v470 = vrot.slane %v218, 2
      %v471 = vsel %vm423, %v469, %v470
      %v488 = vsel %vm283, %v203, %v368
      %v489 = vsel %vm283, %v205, %v372
      %v490 = vsel %vm283, %v207, %v376
      %v491 = vsel %vm283, %v209, %v380
      %v492 = vsel %vm283, %v211, %v384
      %v493 = vsel %vm283, %v213, %v388
      %v494 = vsel %vm283, %v215, %v392
      %v495 = vsel %vm283, %v217, %v396
      %v496 = vpack.c.bf16 %v286, %v284
      %v497 = vpack.c.bf16 %v489, %v488
      %v498 = vpack.c.bf16 %v400, %v399
      %v499 = vpack.c.bf16 %v432, %v426
      %v500 = vpack.c.bf16 %v435, %v429
      %v501 = vpack.c.bf16 %v290, %v288
      %v502 = vpack.c.bf16 %v491, %v490
      %v503 = vpack.c.bf16 %v402, %v401
      %v504 = vpack.c.bf16 %v444, %v438
      %v505 = vpack.c.bf16 %v447, %v441
      %v506 = vpack.c.bf16 %v294, %v292
      %v507 = vpack.c.bf16 %v493, %v492
      %v508 = vpack.c.bf16 %v404, %v403
      %v509 = vpack.c.bf16 %v456, %v450
      %v510 = vpack.c.bf16 %v459, %v453
      %v511 = vpack.c.bf16 %v298, %v296
      %v512 = vpack.c.bf16 %v495, %v494
      %v513 = vpack.c.bf16 %v406, %v405
      %v514 = vpack.c.bf16 %v468, %v462
      %v515 = vpack.c.bf16 %v471, %v465
      %v516 = vld [vmem:[%s1] sm:$0xf]
      %v517 = vld [vmem:[%s1 + $0x4] sm:$0xf]
      %v518 = vld [vmem:[%s1 + $0x8] sm:$0xf]
      %v519 = vld [vmem:[%s1 + $0xc] sm:$0xf]
      %v520 = vld [vmem:[%s1 + $0x10] sm:$0xf]
      %v521 = vld [vmem:[%s1 + $0x14] sm:$0xf]
      %v522 = vld [vmem:[%s1 + $0x18] sm:$0xf]
      %v523 = vld [vmem:[%s1 + $0x1c] sm:$0xf]
      %v524 = vld [vmem:[%s1 + $0x20] sm:$0xf]
      %v525 = vld [vmem:[%s1 + $0x24] sm:$0xf]
      %v526 = vld [vmem:[%s1 + $0x28] sm:$0xf]
      %v527 = vld [vmem:[%s1 + $0x2c] sm:$0xf]
      %v528 = vld [vmem:[%s1 + $0x30] sm:$0xf]
      %v529 = vld [vmem:[%s1 + $0x34] sm:$0xf]
      %v530 = vld [vmem:[%s1 + $0x38] sm:$0xf]
      %v531 = vld [vmem:[%s1 + $0x3c] sm:$0xf]
      %v532 = vld [vmem:[%s1 + $0x40] sm:$0xf]
      %v533 = vld [vmem:[%s1 + $0x44] sm:$0xf]
      %v534 = vld [vmem:[%s1 + $0x48] sm:$0xf]
      %v535 = vld [vmem:[%s1 + $0x4c] sm:$0xf]
      %v536 = vld [vmem:[%s1 + $0x50] sm:$0xf]
      %v537 = vld [vmem:[%s1 + $0x54] sm:$0xf]
      %v538 = vld [vmem:[%s1 + $0x58] sm:$0xf]
      %v539 = vld [vmem:[%s1 + $0x5c] sm:$0xf]
      %v540 = vld [vmem:[%s1 + $0x60] sm:$0xf]
      %v541 = vld [vmem:[%s1 + $0x64] sm:$0xf]
      %v542 = vld [vmem:[%s1 + $0x68] sm:$0xf]
      %v543 = vld [vmem:[%s1 + $0x6c] sm:$0xf]
      %v544 = vld [vmem:[%s1 + $0x70] sm:$0xf]
      %v545 = vld [vmem:[%s1 + $0x74] sm:$0xf]
      %v546 = vld [vmem:[%s1 + $0x78] sm:$0xf]
      %v547 = vld [vmem:[%s1 + $0x7c] sm:$0xf]
      %v548 = vld [vmem:[%s1 + $0x80] sm:$0xf]
      %v549 = vld [vmem:[%s1 + $0x84] sm:$0xf]
      %v550 = vld [vmem:[%s1 + $0x88] sm:$0xf]
      %v551 = vld [vmem:[%s1 + $0x8c] sm:$0xf]
      %v552 = vld [vmem:[%s1 + $0x90] sm:$0xf]
      %v553 = vld [vmem:[%s1 + $0x94] sm:$0xf]
      %v554 = vld [vmem:[%s1 + $0x98] sm:$0xf]
      %v555 = vld [vmem:[%s1 + $0x9c] sm:$0xf]
      %v556 = vld [vmem:[%s1 + $0xa0] sm:$0xf]
      %v557 = vld [vmem:[%s1 + $0xa4] sm:$0xf]
      %v558 = vld [vmem:[%s1 + $0xa8] sm:$0xf]
      %v559 = vld [vmem:[%s1 + $0xac] sm:$0xf]
      %v560 = vld [vmem:[%s1 + $0xb0] sm:$0xf]
      %v561 = vld [vmem:[%s1 + $0xb4] sm:$0xf]
      %v562 = vld [vmem:[%s1 + $0xb8] sm:$0xf]
      %v563 = vld [vmem:[%s1 + $0xbc] sm:$0xf]
      %v564 = vld [vmem:[%s1 + $0xc0] sm:$0xf]
      %v565 = vld [vmem:[%s1 + $0xc4] sm:$0xf]
      %v566 = vld [vmem:[%s1 + $0xc8] sm:$0xf]
      %v567 = vld [vmem:[%s1 + $0xcc] sm:$0xf]
      %v568 = vld [vmem:[%s1 + $0xd0] sm:$0xf]
      %v569 = vld [vmem:[%s1 + $0xd4] sm:$0xf]
      %v570 = vld [vmem:[%s1 + $0xd8] sm:$0xf]
      %v571 = vld [vmem:[%s1 + $0xdc] sm:$0xf]
      %v572 = vld [vmem:[%s1 + $0xe0] sm:$0xf]
      %v573 = vld [vmem:[%s1 + $0xe4] sm:$0xf]
      %v574 = vld [vmem:[%s1 + $0xe8] sm:$0xf]
      %v575 = vld [vmem:[%s1 + $0xec] sm:$0xf]
      %v576 = vld [vmem:[%s1 + $0xf0] sm:$0xf]
      %v577 = vld [vmem:[%s1 + $0xf4] sm:$0xf]
      %v578 = vld [vmem:[%s1 + $0xf8] sm:$0xf]
      %v579 = vld [vmem:[%s1 + $0xfc] sm:$0xf]
      %v580 = vld [vmem:[%s1 + $0x100] sm:$0xf]
      %v581 = vld [vmem:[%s1 + $0x104] sm:$0xf]
      %v582 = vld [vmem:[%s1 + $0x108] sm:$0xf]
      %v583 = vld [vmem:[%s1 + $0x10c] sm:$0xf]
      %v584 = vld [vmem:[%s1 + $0x110] sm:$0xf]
      %v585 = vld [vmem:[%s1 + $0x114] sm:$0xf]
      %v586 = vld [vmem:[%s1 + $0x118] sm:$0xf]
      %v587 = vld [vmem:[%s1 + $0x11c] sm:$0xf]
      %v660 = vunpack.c.l.b16 %v516
      %v661 = vunpack.c.l.b16 %v517
      %v662 = vunpack.c.l.b16 %v518
      %v663 = vunpack.c.l.b16 %v519
      %v664 = vunpack.c.l.b16 %v520
      %v665 = vunpack.c.l.b16 %v521
      %v666 = vunpack.c.l.b16 %v522
      %v667 = vunpack.c.l.b16 %v523
      %v668 = vunpack.c.l.b16 %v524
      %v669 = vunpack.c.l.b16 %v525
      %v670 = vunpack.c.l.b16 %v526
      %v671 = vunpack.c.l.b16 %v527
      %v672 = vunpack.c.l.b16 %v528
      %v673 = vunpack.c.l.b16 %v529
      %v674 = vunpack.c.l.b16 %v530
      %v675 = vunpack.c.l.b16 %v531
      %v676 = vunpack.c.l.b16 %v532
      %v677 = vunpack.c.l.b16 %v533
      %v678 = vunpack.c.l.b16 %v534
      %v679 = vunpack.c.l.b16 %v535
      %v680 = vunpack.c.l.b16 %v536
      %v681 = vunpack.c.l.b16 %v537
      %v682 = vunpack.c.l.b16 %v538
      %v683 = vunpack.c.l.b16 %v539
      %v684 = vunpack.c.l.b16 %v540
      %v685 = vunpack.c.l.b16 %v541
      %v686 = vunpack.c.l.b16 %v542
      %v687 = vunpack.c.l.b16 %v543
      %v688 = vunpack.c.l.b16 %v544
      %v689 = vunpack.c.l.b16 %v545
      %v690 = vunpack.c.l.b16 %v546
      %v691 = vunpack.c.l.b16 %v547
      %v692 = vunpack.c.l.b16 %v548
      %v693 = vunpack.c.l.b16 %v549
      %v694 = vunpack.c.l.b16 %v550
      %v695 = vunpack.c.l.b16 %v551
      %v696 = vunpack.c.l.b16 %v552
      %v697 = vunpack.c.l.b16 %v553
      %v698 = vunpack.c.l.b16 %v554
      %v699 = vunpack.c.l.b16 %v555
      %v700 = vunpack.c.l.b16 %v556
      %v701 = vunpack.c.l.b16 %v557
      %v702 = vunpack.c.l.b16 %v558
      %v703 = vunpack.c.l.b16 %v559
      %v704 = vunpack.c.l.b16 %v560
      %v705 = vunpack.c.l.b16 %v561
      %v706 = vunpack.c.l.b16 %v562
      %v707 = vunpack.c.l.b16 %v563
      %v708 = vunpack.c.l.b16 %v564
      %v709 = vunpack.c.l.b16 %v565
      %v710 = vunpack.c.l.b16 %v566
      %v711 = vunpack.c.l.b16 %v567
      %v712 = vunpack.c.l.b16 %v568
      %v713 = vunpack.c.l.b16 %v569
      %v714 = vunpack.c.l.b16 %v570
      %v715 = vunpack.c.l.b16 %v571
      %v716 = vunpack.c.l.b16 %v572
      %v717 = vunpack.c.l.b16 %v573
      %v718 = vunpack.c.l.b16 %v574
      %v719 = vunpack.c.l.b16 %v575
      %v720 = vunpack.c.l.b16 %v576
      %v721 = vunpack.c.l.b16 %v577
      %v722 = vunpack.c.l.b16 %v578
      %v723 = vunpack.c.l.b16 %v579
      %v724 = vunpack.c.l.b16 %v580
      %v725 = vunpack.c.l.b16 %v581
      %v726 = vunpack.c.l.b16 %v582
      %v727 = vunpack.c.l.b16 %v583
      %v728 = vunpack.c.l.b16 %v584
      %v729 = vunpack.c.l.b16 %v585
      %v730 = vunpack.c.l.b16 %v586
      %v731 = vunpack.c.l.b16 %v587
      %v732 = vpack.c.b16 %v661, %v660
      %v733 = vpack.c.b16 %v663, %v662
      %v734 = vpack.c.b16 %v665, %v664
      %v735 = vpack.c.b16 %v667, %v666
      %v736 = vpack.c.b16 %v669, %v668
      %v737 = vpack.c.b16 %v671, %v670
      %v738 = vpack.c.b16 %v673, %v672
      %v739 = vpack.c.b16 %v675, %v674
      %v740 = vpack.c.b16 %v677, %v676
      %v741 = vpack.c.b16 %v679, %v678
      %v742 = vpack.c.b16 %v681, %v680
      %v743 = vpack.c.b16 %v683, %v682
      %v744 = vpack.c.b16 %v685, %v684
      %v745 = vpack.c.b16 %v687, %v686
      %v746 = vpack.c.b16 %v689, %v688
      %v747 = vpack.c.b16 %v691, %v690
      %v748 = vpack.c.b16 %v693, %v692
      %v749 = vpack.c.b16 %v695, %v694
      %v750 = vpack.c.b16 %v697, %v696
      %v751 = vpack.c.b16 %v699, %v698
      %v752 = vpack.c.b16 %v701, %v700
      %v753 = vpack.c.b16 %v703, %v702
      %v754 = vpack.c.b16 %v705, %v704
      %v755 = vpack.c.b16 %v707, %v706
      %v756 = vpack.c.b16 %v709, %v708
      %v757 = vpack.c.b16 %v711, %v710
      %v758 = vpack.c.b16 %v713, %v712
      %v759 = vpack.c.b16 %v715, %v714
      %v760 = vpack.c.b16 %v717, %v716
      %v761 = vpack.c.b16 %v719, %v718
      %v762 = vpack.c.b16 %v721, %v720
      %v763 = vpack.c.b16 %v723, %v722
      %v764 = vpack.c.b16 %v725, %v724
      %v765 = vpack.c.b16 %v727, %v726
      %v766 = vpack.c.b16 %v729, %v728
      %v767 = vpack.c.b16 %v731, %v730
      %v805 = vsel %vm283, %v500, 0
      %v808 = vsel %vm283, %v505, 0
      %v811 = vsel %vm283, %v510, 0
      %v814 = vsel %vm283, %v515, 0
      %816 = vmatprep.subr.bf16.mxu0 0
      %817 = vmatpush1.bf16.msra.mxu0 %v732
      %818 = vmatprep.subr.bf16.mxu0 0
      %819 = vmatpush1.bf16.msra.mxu0 %v733
      %820 = vmatprep.subr.bf16.mxu0 0
      %821 = vmatpush1.bf16.msra.mxu0 %v734
      %822 = vmatprep.subr.bf16.mxu0 0
      %823 = vmatpush1.bf16.msra.mxu0 %v735
      %824 = vmatprep.subr.bf16.mxu0 0
      %825 = vmatpush1.bf16.msra.mxu0 %v736
      %826 = vmatprep.subr.bf16.mxu0 0
      %827 = vmatpush1.bf16.msra.mxu0 %v737
      %828 = vmatprep.subr.bf16.mxu0 0
      %829 = vmatpush1.bf16.msra.mxu0 %v738
      %830 = vmatprep.subr.bf16.mxu0 0
      %831 = vmatpush1.bf16.msra.mxu0 %v739
      %832 = vmatprep.subr.bf16.mxu0 0
      %833 = vmatpush1.bf16.msra.mxu0 %v740
      %834 = vmatprep.subr.bf16.mxu0 0
      %835 = vmatpush1.bf16.msra.mxu0 %v741
      %836 = vmatprep.subr.bf16.mxu0 0
      %837 = vmatpush1.bf16.msra.mxu0 %v742
      %838 = vmatprep.subr.bf16.mxu0 0
      %839 = vmatpush1.bf16.msra.mxu0 %v743
      %840 = vmatprep.subr.bf16.mxu0 0
      %841 = vmatpush1.bf16.msra.mxu0 %v744
      %842 = vmatprep.subr.bf16.mxu0 0
      %843 = vmatpush1.bf16.msra.mxu0 %v745
      %844 = vmatprep.subr.bf16.mxu0 0
      %845 = vmatpush1.bf16.msra.mxu0 %v746
      %846 = vmatprep.subr.bf16.mxu0 0
      %847 = vmatpush1.bf16.msra.mxu0 %v747
      %848 = vmatprep.mubr.bf16.mxu0 %v497
      %849 = vmatmul.mubr.bf16.gmra.mrb[0].mxu0 %v496
      %v850 = vpop.f32.mrb[0].mxu0
      %v851 = vadd.f32 0.0, %v850
      %v852 = vpop.f32.mrb[0].mxu0
      %v853 = vpop.f32.mrb[0].mxu0
      %v854 = vadd.f32 0.0, %v853
      %v855 = vpop.f32.mrb[0].mxu0
      %856 = vmatprep.mubr.bf16.mxu0 %v502
      %857 = vmatmul.mubr.bf16.gmra.mrb[0].mxu0 %v501
      %v858 = vpop.f32.mrb[0].mxu0
      %v859 = vadd.f32 0.0, %v858
      %v860 = vpop.f32.mrb[0].mxu0
      %v861 = vpop.f32.mrb[0].mxu0
      %v862 = vadd.f32 0.0, %v861
      %v863 = vpop.f32.mrb[0].mxu0
      %864 = vmatprep.mubr.bf16.mxu0 %v507
      %865 = vmatmul.mubr.bf16.gmra.mrb[0].mxu0 %v506
      %v866 = vpop.f32.mrb[0].mxu0
      %v867 = vadd.f32 0.0, %v866
      %v868 = vpop.f32.mrb[0].mxu0
      %v869 = vpop.f32.mrb[0].mxu0
      %v870 = vadd.f32 0.0, %v869
      %v871 = vpop.f32.mrb[0].mxu0
      %872 = vmatprep.mubr.bf16.mxu0 %v512
      %873 = vmatmul.mubr.bf16.gmra.mrb[0].mxu0 %v511
      %v874 = vpop.f32.mrb[0].mxu0
      %v875 = vadd.f32 0.0, %v874
      %v876 = vpop.f32.mrb[0].mxu0
      %v877 = vpop.f32.mrb[0].mxu0
      %v878 = vadd.f32 0.0, %v877
      %v879 = vpop.f32.mrb[0].mxu0
      %880 = vdwg.mxu0
      %881 = vmatprep.subr.bf16.mxu0 0
      %882 = vmatpush1.bf16.msra.mxu0 %v748
      %883 = vmatprep.subr.bf16.mxu0 0
      %884 = vmatpush1.bf16.msra.mxu0 %v749
      %885 = vmatprep.subr.bf16.mxu0 0
      %886 = vmatpush1.bf16.msra.mxu0 %v750
      %887 = vmatprep.subr.bf16.mxu0 0
      %888 = vmatpush1.bf16.msra.mxu0 %v751
      %889 = vmatprep.subr.bf16.mxu0 0
      %890 = vmatpush1.bf16.msra.mxu0 %v752
      %891 = vmatprep.subr.bf16.mxu0 0
      %892 = vmatpush1.bf16.msra.mxu0 %v753
      %893 = vmatprep.subr.bf16.mxu0 0
      %894 = vmatpush1.bf16.msra.mxu0 %v754
      %895 = vmatprep.subr.bf16.mxu0 0
      %896 = vmatpush1.bf16.msra.mxu0 %v755
      %897 = vmatprep.subr.bf16.mxu0 0
      %898 = vmatpush1.bf16.msra.mxu0 %v756
      %899 = vmatprep.subr.bf16.mxu0 0
      %900 = vmatpush1.bf16.msra.mxu0 %v757
      %901 = vmatprep.subr.bf16.mxu0 0
      %902 = vmatpush1.bf16.msra.mxu0 %v758
      %903 = vmatprep.subr.bf16.mxu0 0
      %904 = vmatpush1.bf16.msra.mxu0 %v759
      %905 = vmatprep.subr.bf16.mxu0 0
      %906 = vmatpush1.bf16.msra.mxu0 %v760
      %907 = vmatprep.subr.bf16.mxu0 0
      %908 = vmatpush1.bf16.msra.mxu0 %v761
      %909 = vmatprep.subr.bf16.mxu0 0
      %910 = vmatpush1.bf16.msra.mxu0 %v762
      %911 = vmatprep.subr.bf16.mxu0 0
      %912 = vmatpush1.bf16.msra.mxu0 %v763
      %913 = vmatprep.mubr.bf16.mxu0 %v499
      %914 = vmatmul.mubr.bf16.gmra.mrb[0].mxu0 %v498
      %v915 = vpop.f32.mrb[0].mxu0
      %v916 = vadd.f32 %v851, %v915
      %v917 = vpop.f32.mrb[0].mxu0
      %v918 = vpop.f32.mrb[0].mxu0
      %v919 = vadd.f32 %v854, %v918
      %v920 = vpop.f32.mrb[0].mxu0
      %921 = vmatprep.mubr.bf16.mxu0 %v504
      %922 = vmatmul.mubr.bf16.gmra.mrb[0].mxu0 %v503
      %v923 = vpop.f32.mrb[0].mxu0
      %v924 = vadd.f32 %v859, %v923
      %v925 = vpop.f32.mrb[0].mxu0
      %v926 = vpop.f32.mrb[0].mxu0
      %v927 = vadd.f32 %v862, %v926
      %v928 = vpop.f32.mrb[0].mxu0
      %929 = vmatprep.mubr.bf16.mxu0 %v509
      %930 = vmatmul.mubr.bf16.gmra.mrb[0].mxu0 %v508
      %v931 = vpop.f32.mrb[0].mxu0
      %v932 = vadd.f32 %v867, %v931
      %v933 = vpop.f32.mrb[0].mxu0
      %v934 = vpop.f32.mrb[0].mxu0
      %v935 = vadd.f32 %v870, %v934
      %v936 = vpop.f32.mrb[0].mxu0
      %937 = vmatprep.mubr.bf16.mxu0 %v514
      %938 = vmatmul.mubr.bf16.gmra.mrb[0].mxu0 %v513
      %v939 = vpop.f32.mrb[0].mxu0
      %v940 = vadd.f32 %v875, %v939
      %v941 = vpop.f32.mrb[0].mxu0
      %v942 = vpop.f32.mrb[0].mxu0
      %v943 = vadd.f32 %v878, %v942
      %v944 = vpop.f32.mrb[0].mxu0
      %945 = vdwg.mxu0
      %946 = vmatprep.subr.bf16.mxu0 0
      %947 = vmatpush1.bf16.msra.mxu0 %v764
      %948 = vmatprep.subr.bf16.mxu0 0
      %949 = vmatpush1.bf16.msra.mxu0 %v765
      %950 = vmatprep.subr.bf16.mxu0 0
      %951 = vmatpush1.bf16.msra.mxu0 %v766
      %952 = vmatprep.subr.bf16.mxu0 0
      %953 = vmatpush1.bf16.msra.mxu0 %v767
      %954 = vmatprep.subr.bf16.mxu0 0
      %955 = vmatpush1.bf16.msra.mxu0 0
      %956 = vmatprep.subr.bf16.mxu0 0
      %957 = vmatpush1.bf16.msra.mxu0 0
      %958 = vmatprep.subr.bf16.mxu0 0
      %959 = vmatpush1.bf16.msra.mxu0 0
      %960 = vmatprep.subr.bf16.mxu0 0
      %961 = vmatpush1.bf16.msra.mxu0 0
      %962 = vmatprep.subr.bf16.mxu0 0
      %963 = vmatpush1.bf16.msra.mxu0 0
      %964 = vmatprep.subr.bf16.mxu0 0
      %965 = vmatpush1.bf16.msra.mxu0 0
      %966 = vmatprep.subr.bf16.mxu0 0
      %967 = vmatpush1.bf16.msra.mxu0 0
      %968 = vmatprep.subr.bf16.mxu0 0
      %969 = vmatpush1.bf16.msra.mxu0 0
      %970 = vmatprep.subr.bf16.mxu0 0
      %971 = vmatpush1.bf16.msra.mxu0 0
      %972 = vmatprep.subr.bf16.mxu0 0
      %973 = vmatpush1.bf16.msra.mxu0 0
      %974 = vmatprep.subr.bf16.mxu0 0
      %975 = vmatpush1.bf16.msra.mxu0 0
      %976 = vmatprep.subr.bf16.mxu0 0
      %977 = vmatpush1.bf16.msra.mxu0 0
      %978 = vmatprep.mubr.bf16.mxu0 0
      %979 = vmatmul.mubr.bf16.gmra.mrb[0].mxu0 %v805
      %v980 = vpop.f32.mrb[0].mxu0
      %v981 = vadd.f32 %v916, %v980
      %v982 = vpop.f32.mrb[0].mxu0
      %v983 = vpop.f32.mrb[0].mxu0
      %v984 = vadd.f32 %v919, %v983
      %v985 = vpop.f32.mrb[0].mxu0
      %986 = vmatprep.mubr.bf16.mxu0 0
      %987 = vmatmul.mubr.bf16.gmra.mrb[0].mxu0 %v808
      %v988 = vpop.f32.mrb[0].mxu0
      %v989 = vadd.f32 %v924, %v988
      %v990 = vpop.f32.mrb[0].mxu0
      %v991 = vpop.f32.mrb[0].mxu0
      %v992 = vadd.f32 %v927, %v991
      %v993 = vpop.f32.mrb[0].mxu0
      %994 = vmatprep.mubr.bf16.mxu0 0
      %995 = vmatmul.mubr.bf16.gmra.mrb[0].mxu0 %v811
      %v996 = vpop.f32.mrb[0].mxu0
      %v997 = vadd.f32 %v932, %v996
      %v998 = vpop.f32.mrb[0].mxu0
      %v999 = vpop.f32.mrb[0].mxu0
      %v1000 = vadd.f32 %v935, %v999
      %v1001 = vpop.f32.mrb[0].mxu0
      %1002 = vmatprep.mubr.bf16.mxu0 0
      %1003 = vmatmul.mubr.bf16.gmra.mrb[0].mxu0 %v814
      %v1004 = vpop.f32.mrb[0].mxu0
      %v1005 = vadd.f32 %v940, %v1004
      %v1006 = vpop.f32.mrb[0].mxu0
      %v1007 = vpop.f32.mrb[0].mxu0
      %v1008 = vadd.f32 %v943, %v1007
      %v1009 = vpop.f32.mrb[0].mxu0
      %1010 = vdwg.mxu0
      %v1011 = vld [vmem:[%s2] sm:$0x1]
      %v1013 = vlaneseq
      %v1014 = vshrl.u32 %v1013, 7
      %v1015 = vsub.s32 0, %v1014
      %v1016 = vrot.slane %v1011, %v1015
      %v1018 = vmul.f32 %v981, %v1016
      %v1019 = vmul.f32 %v984, %v1016
      %v1020 = vmul.f32 %v989, %v1016
      %v1021 = vmul.f32 %v992, %v1016
      %v1022 = vmul.f32 %v997, %v1016
      %v1023 = vmul.f32 %v1000, %v1016
      %v1024 = vmul.f32 %v1005, %v1016
      %v1025 = vmul.f32 %v1008, %v1016
      %v1026 = vld [vmem:[%s3] sm:$0x1]
      %v1028 = vlaneseq
      %v1029 = vshrl.u32 %v1028, 7
      %v1030 = vsub.s32 0, %v1029
      %v1031 = vrot.slane %v1026, %v1030
      %v1033 = vadd.f32 %v1018, %v1031
      %v1034 = vadd.f32 %v1019, %v1031
      %v1035 = vadd.f32 %v1020, %v1031
      %v1036 = vadd.f32 %v1021, %v1031
      %v1037 = vadd.f32 %v1022, %v1031
      %v1038 = vadd.f32 %v1023, %v1031
      %v1039 = vadd.f32 %v1024, %v1031
      %v1040 = vadd.f32 %v1025, %v1031
      %v1041 = vmax.f32 %v1033, 0.0
      %v1042 = vmax.f32 %v1034, 0.0
      %v1043 = vmax.f32 %v1035, 0.0
      %v1044 = vmax.f32 %v1036, 0.0
      %v1045 = vmax.f32 %v1037, 0.0
      %v1046 = vmax.f32 %v1038, 0.0
      %v1047 = vmax.f32 %v1039, 0.0
      %v1048 = vmax.f32 %v1040, 0.0
      %vm1049 = vcmask 261120
      %1050 = vst.msk [vmem:[%s197] sm:$0xff] %vm1049, %v1041
      %1051 = vst.msk [vmem:[%s197 + $0x8] sm:$0xff] %vm1049, %v1042
      %1052 = vst.msk [vmem:[%s197 + $0x10] sm:$0xff] %vm1049, %v1043
      %1053 = vst.msk [vmem:[%s197 + $0x18] sm:$0xff] %vm1049, %v1044
      %1054 = vst.msk [vmem:[%s197 + $0x20] sm:$0xff] %vm1049, %v1045
      %1055 = vst.msk [vmem:[%s197 + $0x28] sm:$0xff] %vm1049, %v1046
      %1056 = vst.msk [vmem:[%s197 + $0x30] sm:$0xff] %vm1049, %v1047
      %1057 = vst.msk [vmem:[%s197 + $0x38] sm:$0xff] %vm1049, %v1048
      %p1058 = scmp.lt.s32.totalorder %s15, 1
      %s1059 = scalar_select %p1058, %s15, 1
      %s1060 = smul.addr %s1059, 8
      %s1061 = smul.addr %s1060, 8
      %s1062 = scalar_lea.vmem %s4, %s1061
      // Predicated region
      $region37: #{collab_forward.12} parent=35 // pred_check
        %p1063 = pneg %p122
      $region38: #{collab_forward.12} parent=35 // pred_check_branch
        %1065 = sbr.rel (%p1063) target = $region40
      $region39: #{collab_forward.12} parent=35 // pred_region
        _
      $region40: #{collab_forward.12} parent=35 // pred_fallthru
        _
    $region36: #{collab_forward.12} parent=5 // pred_fallthru
      _
    %p1066 = scmp.le.s32.totalorder 2, %s10
    // Predicated region
    $region41: #{collab_forward.12} parent=5 // pred_check
      %p1067 = pneg %p1066
    $region42: #{collab_forward.12} parent=5 // pred_check_branch
      %1069 = sbr.rel (%p1067) target = $region44
    $region43: #{collab_forward.12} parent=5 // pred_region
      %s1070 = ssub.s32 %s10, 2
      // Predicated region
      $region45: #{collab_forward.12} parent=43 // pred_check
        %p1071 = pneg %p128
      $region46: #{collab_forward.12} parent=43 // pred_check_branch
        %1073 = sbr.rel (%p1071) target = $region48
      $region47: #{collab_forward.12} parent=43 // pred_region
        %p1074 = scmp.lt.s32.totalorder %s16, 1
        %s1075 = scalar_select %p1074, %s16, 1
        %s1076 = smul.addr %s1075, 8
        %s1077 = smul.addr %s1076, 8
        %s1078 = scalar_lea.vmem %s4, %s1077
      $region48: #{collab_forward.12} parent=43 // pred_fallthru
        _
    $region44: #{collab_forward.12} parent=5 // pred_fallthru
      _
  $region6: #{collab_forward.12} parent=0 // loop_footer
    %s14 = sadd.s32 1, %s10
  $region7: #{collab_forward.12} parent=0 // loop_footer_branch
    %9 = sbr.rel target = $region3
  $region8: #{collab_forward.12} parent=0 // loop_exit
    _

// kernel: collab_forward.10
$region0: #{collab_forward.10}
  #allocation0 [shape = 'u32[]', space=smem, size = 0x4, offset = 0x4, fixed_abs, tag = 'smem constant byte address 0x4 - core index']
  #allocation1 [shape = 'u32[144,128]{1,0:T(1,128)}', space=vmem, size = 0x12000, scoped, tag = 'internal scratch']
  %s0 = inlined_call_operand.vmem [shape: f32[2,1024], index: 0, kind: input, shape index: {}]
  %s1 = inlined_call_operand.vmem [shape: bf16[1024,128], index: 1, kind: input, shape index: {}]
  %s2 = inlined_call_operand.vmem [shape: f32[1,128], index: 2, kind: input, shape index: {}]
  %s3 = inlined_call_operand.vmem [shape: f32[1,128], index: 3, kind: input, shape index: {}]
  %s4 = inlined_call_operand.vmem [shape: bf16[128,128], index: 4, kind: input, shape index: {}]
  %s5 = inlined_call_operand.vmem [shape: f32[1,128], index: 5, kind: input, shape index: {}]
  %s6 = inlined_call_operand.hbm [shape: f32[2,128], index: 6, kind: output, shape index: {}]
  %s7 = sld [smem:[#allocation0]]
  $region34: #{collab_forward.10} parent=0
    _
  %s9 = ssub.s32 1, %s7
  %s10 = scalar_select 0, %s9, %s7
  $region1: #{collab_forward.10} parent=0
    #allocation2 [shape = 'u8[1024]{0}', space=vmem, size = 0x400, scoped, tag = 'output window, operand 0, single buffered']
    #allocation3 [shape = 's32[1]{0}', space=sflag, size = 0x4, scoped, tag = 'scoped memory for collab_forward.10']
    %11 = vsyncpa [#allocation3], 0
    // Predicated region
    $region2: #{collab_forward.10} parent=1 // pred_check
      _
    $region3: #{collab_forward.10} parent=1 // pred_check_branch
      %13 = sbr.rel (0) target = $region5
    $region4: #{collab_forward.10} parent=1 // pred_region
      _
    $region5: #{collab_forward.10} parent=1 // pred_fallthru
      _
    // Predicated region
    $region6: #{collab_forward.10} parent=1 // pred_check
      _
    $region7: #{collab_forward.10} parent=1 // pred_check_branch
      %15 = sbr.rel (0) target = $region9
    $region8: #{collab_forward.10} parent=1 // pred_region
      _
    $region9: #{collab_forward.10} parent=1 // pred_fallthru
      _
    // Predicated region
    $region10: #{collab_forward.10} parent=1 // pred_check
      _
    $region11: #{collab_forward.10} parent=1 // pred_check_branch
      %17 = sbr.rel (0) target = $region13
    $region12: #{collab_forward.10} parent=1 // pred_region
      _
    $region13: #{collab_forward.10} parent=1 // pred_fallthru
      _
    // Predicated region
    $region14: #{collab_forward.10} parent=1 // pred_check
      _
    $region15: #{collab_forward.10} parent=1 // pred_check_branch
      %19 = sbr.rel (0) target = $region17
    $region16: #{collab_forward.10} parent=1 // pred_region
      _
    $region17: #{collab_forward.10} parent=1 // pred_fallthru
      _
    // Predicated region
    $region18: #{collab_forward.10} parent=1 // pred_check
      _
    $region19: #{collab_forward.10} parent=1 // pred_check_branch
      %21 = sbr.rel (0) target = $region21
    $region20: #{collab_forward.10} parent=1 // pred_region
      _
    $region21: #{collab_forward.10} parent=1 // pred_fallthru
      _
    // Predicated region
    $region22: #{collab_forward.10} parent=1 // pred_check
      _
    $region23: #{collab_forward.10} parent=1 // pred_check_branch
      %23 = sbr.rel (0) target = $region25
    $region24: #{collab_forward.10} parent=1 // pred_region
      _
    $region25: #{collab_forward.10} parent=1 // pred_fallthru
      _
    %v25 = vld [vmem:[%s0] sm:$0xff]
    %v26 = vld [vmem:[%s0 + $0x8] sm:$0xff]
    %v29 = vcombine.high %v25, %v25
    %v31 = vunpack.c.l.s4 1983009808
    %v32 = vunpack.c.0.s8 %v31
    %v33 = vlaneseq
    %v34 = vshrl.u32 %v33, 7
    %v35 = vsub.s32 %v32, %v34
    %v36 = vrot.slane %v25, %v35
    %v38 = vunpack.c.l.s4 1983009808
    %v39 = vunpack.c.0.s8 %v38
    %v40 = vlaneseq
    %v41 = vshrl.u32 %v40, 7
    %v42 = vsub.s32 %v39, %v41
    %v43 = vrot.slane %v29, %v42
    %v44 = vcombine.high %v36, %v36
    %v45 = vcombine.high %v43, %v43
    %v46 = vcombine.high %v26, %v26
    %v48 = vunpack.c.l.s4 1983009808
    %v49 = vunpack.c.0.s8 %v48
    %v50 = vlaneseq
    %v51 = vshrl.u32 %v50, 7
    %v52 = vsub.s32 %v49, %v51
    %v53 = vrot.slane %v26, %v52
    %v55 = vunpack.c.l.s4 1983009808
    %v56 = vunpack.c.0.s8 %v55
    %v57 = vlaneseq
    %v58 = vshrl.u32 %v57, 7
    %v59 = vsub.s32 %v56, %v58
    %v60 = vrot.slane %v46, %v59
    %v61 = vcombine.high %v53, %v53
    %v62 = vcombine.high %v60, %v60
    %v71 = vpack.c.bf16 %v36, %v36
    %v72 = vpack.c.bf16 %v44, %v44
    %v73 = vpack.c.bf16 %v43, %v43
    %v74 = vpack.c.bf16 %v45, %v45
    %v75 = vpack.c.bf16 %v53, %v53
    %v76 = vpack.c.bf16 %v61, %v61
    %v77 = vpack.c.bf16 %v60, %v60
    %v78 = vpack.c.bf16 %v62, %v62
    %v79 = vld [vmem:[%s1] sm:$0xf]
    %v80 = vld [vmem:[%s1 + $0x4] sm:$0xf]
    %v81 = vld [vmem:[%s1 + $0x8] sm:$0xf]
    %v82 = vld [vmem:[%s1 + $0xc] sm:$0xf]
    %v83 = vld [vmem:[%s1 + $0x10] sm:$0xf]
    %v84 = vld [vmem:[%s1 + $0x14] sm:$0xf]
    %v85 = vld [vmem:[%s1 + $0x18] sm:$0xf]
    %v86 = vld [vmem:[%s1 + $0x1c] sm:$0xf]
    %v87 = vld [vmem:[%s1 + $0x20] sm:$0xf]
    %v88 = vld [vmem:[%s1 + $0x24] sm:$0xf]
    %v89 = vld [vmem:[%s1 + $0x28] sm:$0xf]
    %v90 = vld [vmem:[%s1 + $0x2c] sm:$0xf]
    %v91 = vld [vmem:[%s1 + $0x30] sm:$0xf]
    %v92 = vld [vmem:[%s1 + $0x34] sm:$0xf]
    %v93 = vld [vmem:[%s1 + $0x38] sm:$0xf]
    %v94 = vld [vmem:[%s1 + $0x3c] sm:$0xf]
    %v95 = vld [vmem:[%s1 + $0x40] sm:$0xf]
    %v96 = vld [vmem:[%s1 + $0x44] sm:$0xf]
    %v97 = vld [vmem:[%s1 + $0x48] sm:$0xf]
    %v98 = vld [vmem:[%s1 + $0x4c] sm:$0xf]
    %v99 = vld [vmem:[%s1 + $0x50] sm:$0xf]
    %v100 = vld [vmem:[%s1 + $0x54] sm:$0xf]
    %v101 = vld [vmem:[%s1 + $0x58] sm:$0xf]
    %v102 = vld [vmem:[%s1 + $0x5c] sm:$0xf]
    %v103 = vld [vmem:[%s1 + $0x60] sm:$0xf]
    %v104 = vld [vmem:[%s1 + $0x64] sm:$0xf]
    %v105 = vld [vmem:[%s1 + $0x68] sm:$0xf]
    %v106 = vld [vmem:[%s1 + $0x6c] sm:$0xf]
    %v107 = vld [vmem:[%s1 + $0x70] sm:$0xf]
    %v108 = vld [vmem:[%s1 + $0x74] sm:$0xf]
    %v109 = vld [vmem:[%s1 + $0x78] sm:$0xf]
    %v110 = vld [vmem:[%s1 + $0x7c] sm:$0xf]
    %v111 = vld [vmem:[%s1 + $0x80] sm:$0xf]
    %v112 = vld [vmem:[%s1 + $0x84] sm:$0xf]
    %v113 = vld [vmem:[%s1 + $0x88] sm:$0xf]
    %v114 = vld [vmem:[%s1 + $0x8c] sm:$0xf]
    %v115 = vld [vmem:[%s1 + $0x90] sm:$0xf]
    %v116 = vld [vmem:[%s1 + $0x94] sm:$0xf]
    %v117 = vld [vmem:[%s1 + $0x98] sm:$0xf]
    %v118 = vld [vmem:[%s1 + $0x9c] sm:$0xf]
    %v119 = vld [vmem:[%s1 + $0xa0] sm:$0xf]
    %v120 = vld [vmem:[%s1 + $0xa4] sm:$0xf]
    %v121 = vld [vmem:[%s1 + $0xa8] sm:$0xf]
    %v122 = vld [vmem:[%s1 + $0xac] sm:$0xf]
    %v123 = vld [vmem:[%s1 + $0xb0] sm:$0xf]
    %v124 = vld [vmem:[%s1 + $0xb4] sm:$0xf]
    %v125 = vld [vmem:[%s1 + $0xb8] sm:$0xf]
    %v126 = vld [vmem:[%s1 + $0xbc] sm:$0xf]
    %v127 = vld [vmem:[%s1 + $0xc0] sm:$0xf]
    %v128 = vld [vmem:[%s1 + $0xc4] sm:$0xf]
    %v129 = vld [vmem:[%s1 + $0xc8] sm:$0xf]
    %v130 = vld [vmem:[%s1 + $0xcc] sm:$0xf]
    %v131 = vld [vmem:[%s1 + $0xd0] sm:$0xf]
    %v132 = vld [vmem:[%s1 + $0xd4] sm:$0xf]
    %v133 = vld [vmem:[%s1 + $0xd8] sm:$0xf]
    %v134 = vld [vmem:[%s1 + $0xdc] sm:$0xf]
    %v135 = vld [vmem:[%s1 + $0xe0] sm:$0xf]
    %v136 = vld [vmem:[%s1 + $0xe4] sm:$0xf]
    %v137 = vld [vmem:[%s1 + $0xe8] sm:$0xf]
    %v138 = vld [vmem:[%s1 + $0xec] sm:$0xf]
    %v139 = vld [vmem:[%s1 + $0xf0] sm:$0xf]
    %v140 = vld [vmem:[%s1 + $0xf4] sm:$0xf]
    %v141 = vld [vmem:[%s1 + $0xf8] sm:$0xf]
    %v142 = vld [vmem:[%s1 + $0xfc] sm:$0xf]
    %v143 = vld [vmem:[%s1 + $0x100] sm:$0xf]
    %v144 = vld [vmem:[%s1 + $0x104] sm:$0xf]
    %v145 = vld [vmem:[%s1 + $0x108] sm:$0xf]
    %v146 = vld [vmem:[%s1 + $0x10c] sm:$0xf]
    %v147 = vld [vmem:[%s1 + $0x110] sm:$0xf]
    %v148 = vld [vmem:[%s1 + $0x114] sm:$0xf]
    %v149 = vld [vmem:[%s1 + $0x118] sm:$0xf]
    %v150 = vld [vmem:[%s1 + $0x11c] sm:$0xf]
    %v151 = vld [vmem:[%s1 + $0x120] sm:$0xf]
    %v152 = vld [vmem:[%s1 + $0x124] sm:$0xf]
    %v153 = vld [vmem:[%s1 + $0x128] sm:$0xf]
    %v154 = vld [vmem:[%s1 + $0x12c] sm:$0xf]
    %v155 = vld [vmem:[%s1 + $0x130] sm:$0xf]
    %v156 = vld [vmem:[%s1 + $0x134] sm:$0xf]
    %v157 = vld [vmem:[%s1 + $0x138] sm:$0xf]
    %v158 = vld [vmem:[%s1 + $0x13c] sm:$0xf]
    %v159 = vld [vmem:[%s1 + $0x140] sm:$0xf]
    %v160 = vld [vmem:[%s1 + $0x144] sm:$0xf]
    %v161 = vld [vmem:[%s1 + $0x148] sm:$0xf]
    %v162 = vld [vmem:[%s1 + $0x14c] sm:$0xf]
    %v163 = vld [vmem:[%s1 + $0x150] sm:$0xf]
    %v164 = vld [vmem:[%s1 + $0x154] sm:$0xf]
    %v165 = vld [vmem:[%s1 + $0x158] sm:$0xf]
    %v166 = vld [vmem:[%s1 + $0x15c] sm:$0xf]
    %v167 = vld [vmem:[%s1 + $0x160] sm:$0xf]
    %v168 = vld [vmem:[%s1 + $0x164] sm:$0xf]
    %v169 = vld [vmem:[%s1 + $0x168] sm:$0xf]
    %v170 = vld [vmem:[%s1 + $0x16c] sm:$0xf]
    %v171 = vld [vmem:[%s1 + $0x170] sm:$0xf]
    %v172 = vld [vmem:[%s1 + $0x174] sm:$0xf]
    %v173 = vld [vmem:[%s1 + $0x178] sm:$0xf]
    %v174 = vld [vmem:[%s1 + $0x17c] sm:$0xf]
    %v175 = vld [vmem:[%s1 + $0x180] sm:$0xf]
    %v176 = vld [vmem:[%s1 + $0x184] sm:$0xf]
    %v177 = vld [vmem:[%s1 + $0x188] sm:$0xf]
    %v178 = vld [vmem:[%s1 + $0x18c] sm:$0xf]
    %v179 = vld [vmem:[%s1 + $0x190] sm:$0xf]
    %v180 = vld [vmem:[%s1 + $0x194] sm:$0xf]
    %v181 = vld [vmem:[%s1 + $0x198] sm:$0xf]
    %v182 = vld [vmem:[%s1 + $0x19c] sm:$0xf]
    %v183 = vld [vmem:[%s1 + $0x1a0] sm:$0xf]
    %v184 = vld [vmem:[%s1 + $0x1a4] sm:$0xf]
    %v185 = vld [vmem:[%s1 + $0x1a8] sm:$0xf]
    %v186 = vld [vmem:[%s1 + $0x1ac] sm:$0xf]
    %v187 = vld [vmem:[%s1 + $0x1b0] sm:$0xf]
    %v188 = vld [vmem:[%s1 + $0x1b4] sm:$0xf]
    %v189 = vld [vmem:[%s1 + $0x1b8] sm:$0xf]
    %v190 = vld [vmem:[%s1 + $0x1bc] sm:$0xf]
    %v191 = vld [vmem:[%s1 + $0x1c0] sm:$0xf]
    %v192 = vld [vmem:[%s1 + $0x1c4] sm:$0xf]
    %v193 = vld [vmem:[%s1 + $0x1c8] sm:$0xf]
    %v194 = vld [vmem:[%s1 + $0x1cc] sm:$0xf]
    %v195 = vld [vmem:[%s1 + $0x1d0] sm:$0xf]
    %v196 = vld [vmem:[%s1 + $0x1d4] sm:$0xf]
    %v197 = vld [vmem:[%s1 + $0x1d8] sm:$0xf]
    %v198 = vld [vmem:[%s1 + $0x1dc] sm:$0xf]
    %v199 = vld [vmem:[%s1 + $0x1e0] sm:$0xf]
    %v200 = vld [vmem:[%s1 + $0x1e4] sm:$0xf]
    %v201 = vld [vmem:[%s1 + $0x1e8] sm:$0xf]
    %v202 = vld [vmem:[%s1 + $0x1ec] sm:$0xf]
    %v203 = vld [vmem:[%s1 + $0x1f0] sm:$0xf]
    %v204 = vld [vmem:[%s1 + $0x1f4] sm:$0xf]
    %v205 = vld [vmem:[%s1 + $0x1f8] sm:$0xf]
    %v206 = vld [vmem:[%s1 + $0x1fc] sm:$0xf]
    %v335 = vunpack.c.l.b16 %v79
    %v336 = vunpack.c.l.b16 %v80
    %v337 = vunpack.c.l.b16 %v81
    %v338 = vunpack.c.l.b16 %v82
    %v339 = vunpack.c.l.b16 %v83
    %v340 = vunpack.c.l.b16 %v84
    %v341 = vunpack.c.l.b16 %v85
    %v342 = vunpack.c.l.b16 %v86
    %v343 = vunpack.c.l.b16 %v87
    %v344 = vunpack.c.l.b16 %v88
    %v345 = vunpack.c.l.b16 %v89
    %v346 = vunpack.c.l.b16 %v90
    %v347 = vunpack.c.l.b16 %v91
    %v348 = vunpack.c.l.b16 %v92
    %v349 = vunpack.c.l.b16 %v93
    %v350 = vunpack.c.l.b16 %v94
    %v351 = vunpack.c.l.b16 %v95
    %v352 = vunpack.c.l.b16 %v96
    %v353 = vunpack.c.l.b16 %v97
    %v354 = vunpack.c.l.b16 %v98
    %v355 = vunpack.c.l.b16 %v99
    %v356 = vunpack.c.l.b16 %v100
    %v357 = vunpack.c.l.b16 %v101
    %v358 = vunpack.c.l.b16 %v102
    %v359 = vunpack.c.l.b16 %v103
    %v360 = vunpack.c.l.b16 %v104
    %v361 = vunpack.c.l.b16 %v105
    %v362 = vunpack.c.l.b16 %v106
    %v363 = vunpack.c.l.b16 %v107
    %v364 = vunpack.c.l.b16 %v108
    %v365 = vunpack.c.l.b16 %v109
    %v366 = vunpack.c.l.b16 %v110
    %v367 = vunpack.c.l.b16 %v111
    %v368 = vunpack.c.l.b16 %v112
    %v369 = vunpack.c.l.b16 %v113
    %v370 = vunpack.c.l.b16 %v114
    %v371 = vunpack.c.l.b16 %v115
    %v372 = vunpack.c.l.b16 %v116
    %v373 = vunpack.c.l.b16 %v117
    %v374 = vunpack.c.l.b16 %v118
    %v375 = vunpack.c.l.b16 %v119
    %v376 = vunpack.c.l.b16 %v120
    %v377 = vunpack.c.l.b16 %v121
    %v378 = vunpack.c.l.b16 %v122
    %v379 = vunpack.c.l.b16 %v123
    %v380 = vunpack.c.l.b16 %v124
    %v381 = vunpack.c.l.b16 %v125
    %v382 = vunpack.c.l.b16 %v126
    %v383 = vunpack.c.l.b16 %v127
    %v384 = vunpack.c.l.b16 %v128
    %v385 = vunpack.c.l.b16 %v129
    %v386 = vunpack.c.l.b16 %v130
    %v387 = vunpack.c.l.b16 %v131
    %v388 = vunpack.c.l.b16 %v132
    %v389 = vunpack.c.l.b16 %v133
    %v390 = vunpack.c.l.b16 %v134
    %v391 = vunpack.c.l.b16 %v135
    %v392 = vunpack.c.l.b16 %v136
    %v393 = vunpack.c.l.b16 %v137
    %v394 = vunpack.c.l.b16 %v138
    %v395 = vunpack.c.l.b16 %v139
    %v396 = vunpack.c.l.b16 %v140
    %v397 = vunpack.c.l.b16 %v141
    %v398 = vunpack.c.l.b16 %v142
    %v399 = vunpack.c.l.b16 %v143
    %v400 = vunpack.c.l.b16 %v144
    %v401 = vunpack.c.l.b16 %v145
    %v402 = vunpack.c.l.b16 %v146
    %v403 = vunpack.c.l.b16 %v147
    %v404 = vunpack.c.l.b16 %v148
    %v405 = vunpack.c.l.b16 %v149
    %v406 = vunpack.c.l.b16 %v150
    %v407 = vunpack.c.l.b16 %v151
    %v408 = vunpack.c.l.b16 %v152
    %v409 = vunpack.c.l.b16 %v153
    %v410 = vunpack.c.l.b16 %v154
    %v411 = vunpack.c.l.b16 %v155
    %v412 = vunpack.c.l.b16 %v156
    %v413 = vunpack.c.l.b16 %v157
    %v414 = vunpack.c.l.b16 %v158
    %v415 = vunpack.c.l.b16 %v159
    %v416 = vunpack.c.l.b16 %v160
    %v417 = vunpack.c.l.b16 %v161
    %v418 = vunpack.c.l.b16 %v162
    %v419 = vunpack.c.l.b16 %v163
    %v420 = vunpack.c.l.b16 %v164
    %v421 = vunpack.c.l.b16 %v165
    %v422 = vunpack.c.l.b16 %v166
    %v423 = vunpack.c.l.b16 %v167
    %v424 = vunpack.c.l.b16 %v168
    %v425 = vunpack.c.l.b16 %v169
    %v426 = vunpack.c.l.b16 %v170
    %v427 = vunpack.c.l.b16 %v171
    %v428 = vunpack.c.l.b16 %v172
    %v429 = vunpack.c.l.b16 %v173
    %v430 = vunpack.c.l.b16 %v174
    %v431 = vunpack.c.l.b16 %v175
    %v432 = vunpack.c.l.b16 %v176
    %v433 = vunpack.c.l.b16 %v177
    %v434 = vunpack.c.l.b16 %v178
    %v435 = vunpack.c.l.b16 %v179
    %v436 = vunpack.c.l.b16 %v180
    %v437 = vunpack.c.l.b16 %v181
    %v438 = vunpack.c.l.b16 %v182
    %v439 = vunpack.c.l.b16 %v183
    %v440 = vunpack.c.l.b16 %v184
    %v441 = vunpack.c.l.b16 %v185
    %v442 = vunpack.c.l.b16 %v186
    %v443 = vunpack.c.l.b16 %v187
    %v444 = vunpack.c.l.b16 %v188
    %v445 = vunpack.c.l.b16 %v189
    %v446 = vunpack.c.l.b16 %v190
    %v447 = vunpack.c.l.b16 %v191
    %v448 = vunpack.c.l.b16 %v192
    %v449 = vunpack.c.l.b16 %v193
    %v450 = vunpack.c.l.b16 %v194
    %v451 = vunpack.c.l.b16 %v195
    %v452 = vunpack.c.l.b16 %v196
    %v453 = vunpack.c.l.b16 %v197
    %v454 = vunpack.c.l.b16 %v198
    %v455 = vunpack.c.l.b16 %v199
    %v456 = vunpack.c.l.b16 %v200
    %v457 = vunpack.c.l.b16 %v201
    %v458 = vunpack.c.l.b16 %v202
    %v459 = vunpack.c.l.b16 %v203
    %v460 = vunpack.c.l.b16 %v204
    %v461 = vunpack.c.l.b16 %v205
    %v462 = vunpack.c.l.b16 %v206
    %v463 = vpack.c.b16 %v336, %v335
    %v464 = vpack.c.b16 %v338, %v337
    %v465 = vpack.c.b16 %v340, %v339
    %v466 = vpack.c.b16 %v342, %v341
    %v467 = vpack.c.b16 %v344, %v343
    %v468 = vpack.c.b16 %v346, %v345
    %v469 = vpack.c.b16 %v348, %v347
    %v470 = vpack.c.b16 %v350, %v349
    %v471 = vpack.c.b16 %v352, %v351
    %v472 = vpack.c.b16 %v354, %v353
    %v473 = vpack.c.b16 %v356, %v355
    %v474 = vpack.c.b16 %v358, %v357
    %v475 = vpack.c.b16 %v360, %v359
    %v476 = vpack.c.b16 %v362, %v361
    %v477 = vpack.c.b16 %v364, %v363
    %v478 = vpack.c.b16 %v366, %v365
    %v479 = vpack.c.b16 %v368, %v367
    %v480 = vpack.c.b16 %v370, %v369
    %v481 = vpack.c.b16 %v372, %v371
    %v482 = vpack.c.b16 %v374, %v373
    %v483 = vpack.c.b16 %v376, %v375
    %v484 = vpack.c.b16 %v378, %v377
    %v485 = vpack.c.b16 %v380, %v379
    %v486 = vpack.c.b16 %v382, %v381
    %v487 = vpack.c.b16 %v384, %v383
    %v488 = vpack.c.b16 %v386, %v385
    %v489 = vpack.c.b16 %v388, %v387
    %v490 = vpack.c.b16 %v390, %v389
    %v491 = vpack.c.b16 %v392, %v391
    %v492 = vpack.c.b16 %v394, %v393
    %v493 = vpack.c.b16 %v396, %v395
    %v494 = vpack.c.b16 %v398, %v397
    %v495 = vpack.c.b16 %v400, %v399
    %v496 = vpack.c.b16 %v402, %v401
    %v497 = vpack.c.b16 %v404, %v403
    %v498 = vpack.c.b16 %v406, %v405
    %v499 = vpack.c.b16 %v408, %v407
    %v500 = vpack.c.b16 %v410, %v409
    %v501 = vpack.c.b16 %v412, %v411
    %v502 = vpack.c.b16 %v414, %v413
    %v503 = vpack.c.b16 %v416, %v415
    %v504 = vpack.c.b16 %v418, %v417
    %v505 = vpack.c.b16 %v420, %v419
    %v506 = vpack.c.b16 %v422, %v421
    %v507 = vpack.c.b16 %v424, %v423
    %v508 = vpack.c.b16 %v426, %v425
    %v509 = vpack.c.b16 %v428, %v427
    %v510 = vpack.c.b16 %v430, %v429
    %v511 = vpack.c.b16 %v432, %v431
    %v512 = vpack.c.b16 %v434, %v433
    %v513 = vpack.c.b16 %v436, %v435
    %v514 = vpack.c.b16 %v438, %v437
    %v515 = vpack.c.b16 %v440, %v439
    %v516 = vpack.c.b16 %v442, %v441
    %v517 = vpack.c.b16 %v444, %v443
    %v518 = vpack.c.b16 %v446, %v445
    %v519 = vpack.c.b16 %v448, %v447
    %v520 = vpack.c.b16 %v450, %v449
    %v521 = vpack.c.b16 %v452, %v451
    %v522 = vpack.c.b16 %v454, %v453
    %v523 = vpack.c.b16 %v456, %v455
    %v524 = vpack.c.b16 %v458, %v457
    %v525 = vpack.c.b16 %v460, %v459
    %v526 = vpack.c.b16 %v462, %v461
    %591 = vmatprep.subr.bf16.mxu0 0
    %592 = vmatpush1.bf16.msra.mxu0 %v463
    %593 = vmatprep.subr.bf16.mxu0 0
    %594 = vmatpush1.bf16.msra.mxu0 %v464
    %595 = vmatprep.subr.bf16.mxu0 0
    %596 = vmatpush1.bf16.msra.mxu0 %v465
    %597 = vmatprep.subr.bf16.mxu0 0
    %598 = vmatpush1.bf16.msra.mxu0 %v466
    %599 = vmatprep.subr.bf16.mxu0 0
    %600 = vmatpush1.bf16.msra.mxu0 %v467
    %601 = vmatprep.subr.bf16.mxu0 0
    %602 = vmatpush1.bf16.msra.mxu0 %v468
    %603 = vmatprep.subr.bf16.mxu0 0
    %604 = vmatpush1.bf16.msra.mxu0 %v469
    %605 = vmatprep.subr.bf16.mxu0 0
    %606 = vmatpush1.bf16.msra.mxu0 %v470
    %607 = vmatprep.subr.bf16.mxu0 0
    %608 = vmatpush1.bf16.msra.mxu0 %v471
    %609 = vmatprep.subr.bf16.mxu0 0
    %610 = vmatpush1.bf16.msra.mxu0 %v472
    %611 = vmatprep.subr.bf16.mxu0 0
    %612 = vmatpush1.bf16.msra.mxu0 %v473
    %613 = vmatprep.subr.bf16.mxu0 0
    %614 = vmatpush1.bf16.msra.mxu0 %v474
    %615 = vmatprep.subr.bf16.mxu0 0
    %616 = vmatpush1.bf16.msra.mxu0 %v475
    %617 = vmatprep.subr.bf16.mxu0 0
    %618 = vmatpush1.bf16.msra.mxu0 %v476
    %619 = vmatprep.subr.bf16.mxu0 0
    %620 = vmatpush1.bf16.msra.mxu0 %v477
    %621 = vmatprep.subr.bf16.mxu0 0
    %622 = vmatpush1.bf16.msra.mxu0 %v478
    %623 = vmatprep.mubr.bf16.mxu0 %v72
    %624 = vmatmul.mubr.bf16.gmra.mrb[0].mxu0 %v71
    %v625 = vpop.f32.mrb[0].mxu0
    %v626 = vadd.f32 0.0, %v625
    %v627 = vpop.f32.mrb[0].mxu0
    %v628 = vpop.f32.mrb[0].mxu0
    %v629 = vpop.f32.mrb[0].mxu0
    %630 = vdwg.mxu0
    %631 = vmatprep.subr.bf16.mxu0 0
    %632 = vmatpush1.bf16.msra.mxu0 %v479
    %633 = vmatprep.subr.bf16.mxu0 0
    %634 = vmatpush1.bf16.msra.mxu0 %v480
    %635 = vmatprep.subr.bf16.mxu0 0
    %636 = vmatpush1.bf16.msra.mxu0 %v481
    %637 = vmatprep.subr.bf16.mxu0 0
    %638 = vmatpush1.bf16.msra.mxu0 %v482
    %639 = vmatprep.subr.bf16.mxu0 0
    %640 = vmatpush1.bf16.msra.mxu0 %v483
    %641 = vmatprep.subr.bf16.mxu0 0
    %642 = vmatpush1.bf16.msra.mxu0 %v484
    %643 = vmatprep.subr.bf16.mxu0 0
    %644 = vmatpush1.bf16.msra.mxu0 %v485
    %645 = vmatprep.subr.bf16.mxu0 0
    %646 = vmatpush1.bf16.msra.mxu0 %v486
    %647 = vmatprep.subr.bf16.mxu0 0
    %648 = vmatpush1.bf16.msra.mxu0 %v487
    %649 = vmatprep.subr.bf16.mxu0 0
    %650 = vmatpush1.bf16.msra.mxu0 %v488
    %651 = vmatprep.subr.bf16.mxu0 0
    %652 = vmatpush1.bf16.msra.mxu0 %v489
    %653 = vmatprep.subr.bf16.mxu0 0
    %654 = vmatpush1.bf16.msra.mxu0 %v490
    %655 = vmatprep.subr.bf16.mxu0 0
    %656 = vmatpush1.bf16.msra.mxu0 %v491
    %657 = vmatprep.subr.bf16.mxu0 0
    %658 = vmatpush1.bf16.msra.mxu0 %v492
    %659 = vmatprep.subr.bf16.mxu0 0
    %660 = vmatpush1.bf16.msra.mxu0 %v493
    %661 = vmatprep.subr.bf16.mxu0 0
    %662 = vmatpush1.bf16.msra.mxu0 %v494
    %663 = vmatprep.mubr.bf16.mxu0 %v74
    %664 = vmatmul.mubr.bf16.gmra.mrb[0].mxu0 %v73
    %v665 = vpop.f32.mrb[0].mxu0
    %v666 = vadd.f32 %v626, %v665
    %v667 = vpop.f32.mrb[0].mxu0
    %v668 = vpop.f32.mrb[0].mxu0
    %v669 = vpop.f32.mrb[0].mxu0
    %670 = vdwg.mxu0
    %671 = vmatprep.subr.bf16.mxu0 0
    %672 = vmatpush1.bf16.msra.mxu0 %v495
    %673 = vmatprep.subr.bf16.mxu0 0
    %674 = vmatpush1.bf16.msra.mxu0 %v496
    %675 = vmatprep.subr.bf16.mxu0 0
    %676 = vmatpush1.bf16.msra.mxu0 %v497
    %677 = vmatprep.subr.bf16.mxu0 0
    %678 = vmatpush1.bf16.msra.mxu0 %v498
    %679 = vmatprep.subr.bf16.mxu0 0
    %680 = vmatpush1.bf16.msra.mxu0 %v499
    %681 = vmatprep.subr.bf16.mxu0 0
    %682 = vmatpush1.bf16.msra.mxu0 %v500
    %683 = vmatprep.subr.bf16.mxu0 0
    %684 = vmatpush1.bf16.msra.mxu0 %v501
    %685 = vmatprep.subr.bf16.mxu0 0
    %686 = vmatpush1.bf16.msra.mxu0 %v502
    %687 = vmatprep.subr.bf16.mxu0 0
    %688 = vmatpush1.bf16.msra.mxu0 %v503
    %689 = vmatprep.subr.bf16.mxu0 0
    %690 = vmatpush1.bf16.msra.mxu0 %v504
    %691 = vmatprep.subr.bf16.mxu0 0
    %692 = vmatpush1.bf16.msra.mxu0 %v505
    %693 = vmatprep.subr.bf16.mxu0 0
    %694 = vmatpush1.bf16.msra.mxu0 %v506
    %695 = vmatprep.subr.bf16.mxu0 0
    %696 = vmatpush1.bf16.msra.mxu0 %v507
    %697 = vmatprep.subr.bf16.mxu0 0
    %698 = vmatpush1.bf16.msra.mxu0 %v508
    %699 = vmatprep.subr.bf16.mxu0 0
    %700 = vmatpush1.bf16.msra.mxu0 %v509
    %701 = vmatprep.subr.bf16.mxu0 0
    %702 = vmatpush1.bf16.msra.mxu0 %v510
    %703 = vmatprep.mubr.bf16.mxu0 %v76
    %704 = vmatmul.mubr.bf16.gmra.mrb[0].mxu0 %v75
    %v705 = vpop.f32.mrb[0].mxu0
    %v706 = vadd.f32 %v666, %v705
    %v707 = vpop.f32.mrb[0].mxu0
    %v708 = vpop.f32.mrb[0].mxu0
    %v709 = vpop.f32.mrb[0].mxu0
    %710 = vdwg.mxu0
    %711 = vmatprep.subr.bf16.mxu0 0
    %712 = vmatpush1.bf16.msra.mxu0 %v511
    %713 = vmatprep.subr.bf16.mxu0 0
    %714 = vmatpush1.bf16.msra.mxu0 %v512
    %715 = vmatprep.subr.bf16.mxu0 0
    %716 = vmatpush1.bf16.msra.mxu0 %v513
    %717 = vmatprep.subr.bf16.mxu0 0
    %718 = vmatpush1.bf16.msra.mxu0 %v514
    %719 = vmatprep.subr.bf16.mxu0 0
    %720 = vmatpush1.bf16.msra.mxu0 %v515
    %721 = vmatprep.subr.bf16.mxu0 0
    %722 = vmatpush1.bf16.msra.mxu0 %v516
    %723 = vmatprep.subr.bf16.mxu0 0
    %724 = vmatpush1.bf16.msra.mxu0 %v517
    %725 = vmatprep.subr.bf16.mxu0 0
    %726 = vmatpush1.bf16.msra.mxu0 %v518
    %727 = vmatprep.subr.bf16.mxu0 0
    %728 = vmatpush1.bf16.msra.mxu0 %v519
    %729 = vmatprep.subr.bf16.mxu0 0
    %730 = vmatpush1.bf16.msra.mxu0 %v520
    %731 = vmatprep.subr.bf16.mxu0 0
    %732 = vmatpush1.bf16.msra.mxu0 %v521
    %733 = vmatprep.subr.bf16.mxu0 0
    %734 = vmatpush1.bf16.msra.mxu0 %v522
    %735 = vmatprep.subr.bf16.mxu0 0
    %736 = vmatpush1.bf16.msra.mxu0 %v523
    %737 = vmatprep.subr.bf16.mxu0 0
    %738 = vmatpush1.bf16.msra.mxu0 %v524
    %739 = vmatprep.subr.bf16.mxu0 0
    %740 = vmatpush1.bf16.msra.mxu0 %v525
    %741 = vmatprep.subr.bf16.mxu0 0
    %742 = vmatpush1.bf16.msra.mxu0 %v526
    %743 = vmatprep.mubr.bf16.mxu0 %v78
    %744 = vmatmul.mubr.bf16.gmra.mrb[0].mxu0 %v77
    %v745 = vpop.f32.mrb[0].mxu0
    %v746 = vadd.f32 %v706, %v745
    %v747 = vpop.f32.mrb[0].mxu0
    %v748 = vpop.f32.mrb[0].mxu0
    %v749 = vpop.f32.mrb[0].mxu0
    %750 = vdwg.mxu0
    %v751 = vld [vmem:[%s2] sm:$0x1]
    %v753 = vlaneseq
    %v754 = vshrl.u32 %v753, 7
    %v755 = vsub.s32 0, %v754
    %v756 = vrot.slane %v751, %v755
    %v758 = vmul.f32 %v746, %v756
    %v759 = vld [vmem:[%s3] sm:$0x1]
    %v761 = vlaneseq
    %v762 = vshrl.u32 %v761, 7
    %v763 = vsub.s32 0, %v762
    %v764 = vrot.slane %v759, %v763
    %v766 = vadd.f32 %v758, %v764
    %v767 = vmax.f32 %v766, 0.0
    %v768 = vpack.c.bf16 %v767, %v767
    %v769 = vld [vmem:[%s4] sm:$0xf]
    %v770 = vld [vmem:[%s4 + $0x4] sm:$0xf]
    %v771 = vld [vmem:[%s4 + $0x8] sm:$0xf]
    %v772 = vld [vmem:[%s4 + $0xc] sm:$0xf]
    %v773 = vld [vmem:[%s4 + $0x10] sm:$0xf]
    %v774 = vld [vmem:[%s4 + $0x14] sm:$0xf]
    %v775 = vld [vmem:[%s4 + $0x18] sm:$0xf]
    %v776 = vld [vmem:[%s4 + $0x1c] sm:$0xf]
    %v777 = vld [vmem:[%s4 + $0x20] sm:$0xf]
    %v778 = vld [vmem:[%s4 + $0x24] sm:$0xf]
    %v779 = vld [vmem:[%s4 + $0x28] sm:$0xf]
    %v780 = vld [vmem:[%s4 + $0x2c] sm:$0xf]
    %v781 = vld [vmem:[%s4 + $0x30] sm:$0xf]
    %v782 = vld [vmem:[%s4 + $0x34] sm:$0xf]
    %v783 = vld [vmem:[%s4 + $0x38] sm:$0xf]
    %v784 = vld [vmem:[%s4 + $0x3c] sm:$0xf]
    %v785 = vld [vmem:[%s5] sm:$0x1]
    %v787 = vlaneseq
    %v788 = vshrl.u32 %v787, 7
    %v789 = vsub.s32 0, %v788
    %v790 = vrot.slane %v785, %v789
    %v808 = vunpack.c.l.b16 %v769
    %v809 = vunpack.c.l.b16 %v770
    %v810 = vunpack.c.l.b16 %v771
    %v811 = vunpack.c.l.b16 %v772
    %v812 = vunpack.c.l.b16 %v773
    %v813 = vunpack.c.l.b16 %v774
    %v814 = vunpack.c.l.b16 %v775
    %v815 = vunpack.c.l.b16 %v776
    %v816 = vunpack.c.l.b16 %v777
    %v817 = vunpack.c.l.b16 %v778
    %v818 = vunpack.c.l.b16 %v779
    %v819 = vunpack.c.l.b16 %v780
    %v820 = vunpack.c.l.b16 %v781
    %v821 = vunpack.c.l.b16 %v782
    %v822 = vunpack.c.l.b16 %v783
    %v823 = vunpack.c.l.b16 %v784
    %v824 = vpack.c.b16 %v809, %v808
    %v825 = vpack.c.b16 %v811, %v810
    %v826 = vpack.c.b16 %v813, %v812
    %v827 = vpack.c.b16 %v815, %v814
    %v828 = vpack.c.b16 %v817, %v816
    %v829 = vpack.c.b16 %v819, %v818
    %v830 = vpack.c.b16 %v821, %v820
    %v831 = vpack.c.b16 %v823, %v822
    %840 = vmatprep.subr.bf16.mxu0 0
    %841 = vmatpush1.bf16.msra.mxu0 %v824
    %842 = vmatprep.subr.bf16.mxu0 0
    %843 = vmatpush1.bf16.msra.mxu0 %v825
    %844 = vmatprep.subr.bf16.mxu0 0
    %845 = vmatpush1.bf16.msra.mxu0 %v826
    %846 = vmatprep.subr.bf16.mxu0 0
    %847 = vmatpush1.bf16.msra.mxu0 %v827
    %848 = vmatprep.subr.bf16.mxu0 0
    %849 = vmatpush1.bf16.msra.mxu0 %v828
    %850 = vmatprep.subr.bf16.mxu0 0
    %851 = vmatpush1.bf16.msra.mxu0 %v829
    %852 = vmatprep.subr.bf16.mxu0 0
    %853 = vmatpush1.bf16.msra.mxu0 %v830
    %854 = vmatprep.subr.bf16.mxu0 0
    %855 = vmatpush1.bf16.msra.mxu0 %v831
    %856 = vmatprep.subr.bf16.mxu0 0
    %857 = vmatpush1.bf16.msra.mxu0 0
    %858 = vmatprep.subr.bf16.mxu0 0
    %859 = vmatpush1.bf16.msra.mxu0 0
    %860 = vmatprep.subr.bf16.mxu0 0
    %861 = vmatpush1.bf16.msra.mxu0 0
    %862 = vmatprep.subr.bf16.mxu0 0
    %863 = vmatpush1.bf16.msra.mxu0 0
    %864 = vmatprep.subr.bf16.mxu0 0
    %865 = vmatpush1.bf16.msra.mxu0 0
    %866 = vmatprep.subr.bf16.mxu0 0
    %867 = vmatpush1.bf16.msra.mxu0 0
    %868 = vmatprep.subr.bf16.mxu0 0
    %869 = vmatpush1.bf16.msra.mxu0 0
    %870 = vmatprep.subr.bf16.mxu0 0
    %871 = vmatpush1.bf16.msra.mxu0 0
    %872 = vmatprep.mubr.bf16.mxu0 0
    %873 = vmatmul.mubr.bf16.gmra.mrb[0].mxu0 %v768
    %v874 = vpop.f32.mrb[0].mxu0
    %v875 = vadd.f32 %v790, %v874
    %v876 = vpop.f32.mrb[0].mxu0
    %v877 = vpop.f32.mrb[0].mxu0
    %v878 = vpop.f32.mrb[0].mxu0
    %879 = vdwg.mxu0
    %880 = vst [vmem:[#allocation2] sm:$0x3] %v875
    // Predicated region
    $region26: #{collab_forward.10} parent=1 // pred_check
      _
    $region27: #{collab_forward.10} parent=1 // pred_check_branch
      %882 = sbr.rel (0) target = $region29
    $region28: #{collab_forward.10} parent=1 // pred_region
      %s884 = ssub.s32 32, 32
      %885 = vsyncadd [#allocation3], %s884
      %s887 = sshll.u32 [#allocation2], 4
      %s888 = int_to_ptr.vmem [resolvable:$true] %s887
      %890 = dma.vmem_to_hbm [thread:$0]  %s888, 32, %s6, [#allocation3]
    $region29: #{collab_forward.10} parent=1 // pred_fallthru
      _
    // Predicated region
    $region30: #{collab_forward.10} parent=1 // pred_check
      _
    $region31: #{collab_forward.10} parent=1 // pred_check_branch
      %892 = sbr.rel (0) target = $region33
    $region32: #{collab_forward.10} parent=1 // pred_region
      %893 = dma.done [#allocation3], 32
    $region33: #{collab_forward.10} parent=1 // pred_fallthru
      _
    %894 = vsyncpa [#allocation3], 1

// kernel: collab_forward.13
$region0: #{collab_forward.13}
  #allocation0 [shape = 'u32[]', space=smem, size = 0x4, offset = 0x4, fixed_abs, tag = 'smem constant byte address 0x4 - core index']
  #allocation1 [shape = 'u32[144,128]{1,0:T(1,128)}', space=vmem, size = 0x12000, scoped, tag = 'internal scratch']
  %s0 = inlined_call_operand.vmem [shape: f32[2,10,10,32], index: 0, kind: input, shape index: {}]
  %s1 = inlined_call_operand.vmem [shape: bf16[288,32], index: 1, kind: input, shape index: {}]
  %s2 = inlined_call_operand.vmem [shape: f32[1,32], index: 2, kind: input, shape index: {}]
  %s3 = inlined_call_operand.vmem [shape: f32[1,32], index: 3, kind: input, shape index: {}]
  %s4 = inlined_call_operand.hbm [shape: f32[2,8,8,32], index: 4, kind: output, shape index: {}]
  %s5 = sld [smem:[#allocation0]]
  $region49: #{collab_forward.13} parent=0
    _
  %s7 = ssub.s32 1, %s5
  %s8 = scalar_select 0, %s7, %s5
  $region1: #{collab_forward.13} parent=0
    #allocation2 [shape = 'u8[65536]{0}', space=vmem, size = 0x10000, scoped, tag = 'output window, operand 0']
    #allocation3 [shape = 's32[2]{0}', space=sflag, size = 0x8, scoped, tag = 'scoped memory for collab_forward.13']
    %9 = vsyncpa [#allocation3], 0
    %s10 = scalar_lea.sflag [#allocation3], 1
    %11 = vsyncpa %s10, 0
    loop: start=0, step=1, limit=4
    $region2: #{collab_forward.13} parent=1 // loop_pre_header
      _
    $region3: #{collab_forward.13} parent=1 // loop_header
      %s13 = sphi 0, %s17
      %p14 = scmp.ge.s32.totalorder %s13, 4
      %s23 = sphi 0, %s25
      %s26 = sphi 0, %s23
      %s27 = sphi 0, %s26
      %s43 = sphi 0, %s27
      %s47 = sphi 0, %s47
      %s49 = sphi 0, %s47
      %s50 = sphi 0, %s49
      %s64 = sphi 0, %s50
      %s68 = sphi 0, %s68
      %s70 = sphi 0, %s68
      %s71 = sphi 0, %s70
      %s85 = sphi 0, %s71
      %s89 = sphi 0, %s89
      %s91 = sphi 0, %s89
      %s92 = sphi 0, %s91
      %s106 = sphi 0, %s92
      %s112 = sphi 0, %s114
      %s115 = sphi 0, %s112
      %s116 = sphi 0, %s115
      %s132 = sphi 0, %s116
    $region4: #{collab_forward.13} parent=1 // loop_header_branch
      %16 = sbr.rel (%p14) target = $region8
    $region5: #{collab_forward.13} parent=1 // loop_body
      %s18 = ssub.s32 %s13, 1
      %s19 = ssub.s32 %s13, 2
      %s20 = sadd.s32 %s13, 1
      %s21 = ssub.s32 %s13, %s20
      %p22 = scmp.eq.s32.totalorder %s21, 0
      %s24 = sadd.s32 %s23, 1
      %s25 = scalar_select %p22, %s23, %s24
      %p28 = pneg %p22
      %p29 = scmp.eq.s32.totalorder %s13, 1
      %p30 = por %p28, %p29
      %p31 = scmp.ne.s32.totalorder %s23, %s26
      %p32 = scmp.eq.s32.totalorder %s13, 0
      %p33 = por %p31, %p32
      %p34 = scmp.ne.s32.totalorder %s23, %s26
      %p35 = scmp.eq.s32.totalorder %s18, 1
      %p36 = por %p34, %p35
      %p37 = scmp.ne.s32.totalorder %s26, %s27
      %p38 = scmp.eq.s32.totalorder %s18, 0
      %p39 = por %p37, %p38
      %p40 = scmp.ne.s32.totalorder %s26, %s27
      %p41 = scmp.eq.s32.totalorder %s19, 1
      %p42 = por %p40, %p41
      %p44 = scmp.ne.s32.totalorder %s27, %s43
      %p45 = scmp.eq.s32.totalorder %s19, 0
      %p46 = por %p44, %p45
      %s48 = sadd.s32 %s47, 1
      %p51 = scmp.eq.s32.totalorder %s13, 1
      %p52 = scmp.ne.s32.totalorder %s47, %s49
      %p53 = scmp.eq.s32.totalorder %s13, 0
      %p54 = por %p52, %p53
      %p55 = scmp.ne.s32.totalorder %s47, %s49
      %p56 = scmp.eq.s32.totalorder %s18, 1
      %p57 = por %p55, %p56
      %p58 = scmp.ne.s32.totalorder %s49, %s50
      %p59 = scmp.eq.s32.totalorder %s18, 0
      %p60 = por %p58, %p59
      %p61 = scmp.ne.s32.totalorder %s49, %s50
      %p62 = scmp.eq.s32.totalorder %s19, 1
      %p63 = por %p61, %p62
      %p65 = scmp.ne.s32.totalorder %s50, %s64
      %p66 = scmp.eq.s32.totalorder %s19, 0
      %p67 = por %p65, %p66
      %s69 = sadd.s32 %s68, 1
      %p72 = scmp.eq.s32.totalorder %s13, 1
      %p73 = scmp.ne.s32.totalorder %s68, %s70
      %p74 = scmp.eq.s32.totalorder %s13, 0
      %p75 = por %p73, %p74
      %p76 = scmp.ne.s32.totalorder %s68, %s70
      %p77 = scmp.eq.s32.totalorder %s18, 1
      %p78 = por %p76, %p77
      %p79 = scmp.ne.s32.totalorder %s70, %s71
      %p80 = scmp.eq.s32.totalorder %s18, 0
      %p81 = por %p79, %p80
      %p82 = scmp.ne.s32.totalorder %s70, %s71
      %p83 = scmp.eq.s32.totalorder %s19, 1
      %p84 = por %p82, %p83
      %p86 = scmp.ne.s32.totalorder %s71, %s85
      %p87 = scmp.eq.s32.totalorder %s19, 0
      %p88 = por %p86, %p87
      %s90 = sadd.s32 %s89, 1
      %p93 = scmp.eq.s32.totalorder %s13, 1
      %p94 = scmp.ne.s32.totalorder %s89, %s91
      %p95 = scmp.eq.s32.totalorder %s13, 0
      %p96 = por %p94, %p95
      %p97 = scmp.ne.s32.totalorder %s89, %s91
      %p98 = scmp.eq.s32.totalorder %s18, 1
      %p99 = por %p97, %p98
      %p100 = scmp.ne.s32.totalorder %s91, %s92
      %p101 = scmp.eq.s32.totalorder %s18, 0
      %p102 = por %p100, %p101
      %p103 = scmp.ne.s32.totalorder %s91, %s92
      %p104 = scmp.eq.s32.totalorder %s19, 1
      %p105 = por %p103, %p104
      %p107 = scmp.ne.s32.totalorder %s92, %s106
      %p108 = scmp.eq.s32.totalorder %s19, 0
      %p109 = por %p107, %p108
      %s110 = ssub.s32 %s13, %s20
      %p111 = scmp.eq.s32.totalorder %s110, 0
      %s113 = sadd.s32 %s112, 1
      %s114 = scalar_select %p111, %s112, %s113
      %p117 = pneg %p111
      %p118 = scmp.eq.s32.totalorder %s13, 1
      %p119 = por %p117, %p118
      %p120 = scmp.ne.s32.totalorder %s112, %s115
      %p121 = scmp.eq.s32.totalorder %s13, 0
      %p122 = por %p120, %p121
      %p123 = scmp.ne.s32.totalorder %s112, %s115
      %p124 = scmp.eq.s32.totalorder %s18, 1
      %p125 = por %p123, %p124
      %p126 = scmp.ne.s32.totalorder %s115, %s116
      %p127 = scmp.eq.s32.totalorder %s18, 0
      %p128 = por %p126, %p127
      %p129 = scmp.ne.s32.totalorder %s115, %s116
      %p130 = scmp.eq.s32.totalorder %s19, 1
      %p131 = por %p129, %p130
      %p133 = scmp.ne.s32.totalorder %s116, %s132
      %p134 = scmp.eq.s32.totalorder %s19, 0
      %p135 = por %p133, %p134
      %p136 = scmp.le.s32.totalorder 1, %s13
      %p137 = scmp.lt.s32.totalorder %s13, 3
      %p138 = pnand %p136, %p137
      %p139 = pneg %p138
      // Predicated region
      $region9: #{collab_forward.13} parent=5 // pred_check
        _
      $region10: #{collab_forward.13} parent=5 // pred_check_branch
        %141 = sbr.rel (%p138) target = $region12
      $region11: #{collab_forward.13} parent=5 // pred_region
        %s142 = ssub.s32 %s13, 1
        // Predicated region
        $region13: #{collab_forward.13} parent=11 // pred_check
          %p143 = pneg %p60
        $region14: #{collab_forward.13} parent=11 // pred_check_branch
          %145 = sbr.rel (%p143) target = $region16
        $region15: #{collab_forward.13} parent=11 // pred_region
          _
        $region16: #{collab_forward.13} parent=11 // pred_fallthru
          _
        // Predicated region
        $region17: #{collab_forward.13} parent=11 // pred_check
          %p146 = pneg %p81
        $region18: #{collab_forward.13} parent=11 // pred_check_branch
          %148 = sbr.rel (%p146) target = $region20
        $region19: #{collab_forward.13} parent=11 // pred_region
          _
        $region20: #{collab_forward.13} parent=11 // pred_fallthru
          _
        // Predicated region
        $region21: #{collab_forward.13} parent=11 // pred_check
          %p149 = pneg %p102
        $region22: #{collab_forward.13} parent=11 // pred_check_branch
          %151 = sbr.rel (%p149) target = $region24
        $region23: #{collab_forward.13} parent=11 // pred_region
          _
        $region24: #{collab_forward.13} parent=11 // pred_fallthru
          _
      $region12: #{collab_forward.13} parent=5 // pred_fallthru
        _
      %p152 = scmp.lt.s32.totalorder %s13, 2
      // Predicated region
      $region25: #{collab_forward.13} parent=5 // pred_check
        %p153 = pneg %p152
      $region26: #{collab_forward.13} parent=5 // pred_check_branch
        %155 = sbr.rel (%p153) target = $region28
      $region27: #{collab_forward.13} parent=5 // pred_region
        // Predicated region
        $region29: #{collab_forward.13} parent=27 // pred_check
          %p156 = pneg %p33
        $region30: #{collab_forward.13} parent=27 // pred_check_branch
          %158 = sbr.rel (%p156) target = $region32
        $region31: #{collab_forward.13} parent=27 // pred_region
          %p159 = scmp.lt.s32.totalorder %s13, 1
          %s160 = scalar_select %p159, %s13, 1
          %s161 = smul.addr %s160, 20
          %s162 = smul.addr %s161, 8
          %s163 = scalar_lea.vmem %s0, %s162
        $region32: #{collab_forward.13} parent=27 // pred_fallthru
          _
      $region28: #{collab_forward.13} parent=5 // pred_fallthru
        _
      %p164 = scmp.le.s32.totalorder 1, %s13
      %p165 = scmp.lt.s32.totalorder %s13, 3
      %p166 = pnand %p164, %p165
      %p167 = pneg %p166
      // Predicated region
      $region33: #{collab_forward.13} parent=5 // pred_check
        _
      $region34: #{collab_forward.13} parent=5 // pred_check_branch
        %169 = sbr.rel (%p166) target = $region36
      $region35: #{collab_forward.13} parent=5 // pred_region
        %s170 = ssub.s32 %s13, 1
        %p171 = scmp.lt.s32.totalorder %s18, 1
        %s172 = scalar_select %p171, %s18, 1
        %s173 = smul.addr %s172, 20
        %s174 = smul.addr %s173, 8
        %s175 = scalar_lea.vmem %s0, %s174
        %p176 = pneg %p39
        %p177 = pneg %p36
        %p178 = pneg %p60
        %p179 = pneg %p57
        %p180 = pneg %p81
        %p181 = pneg %p78
        %p182 = pneg %p102
        %p183 = pneg %p99
        %p184 = pneg %p128
        %p185 = pneg %p125
        %s186 = sand.u32 %s115, 1
        %s187 = scalar_lea.sflag [#allocation3], %s186
        %s188 = sand.u32 %s115, 1
        %s189 = smul.addr %s188, 64
        %s190 = scalar_lea.vmem [#allocation2], %s189
        %p191 = scmp.lt.s32.totalorder %s18, 1
        %s192 = scalar_select %p191, %s18, 1
        %s193 = smul.addr %s192, 20
        %s194 = smul.addr %s193, 8
        %s195 = scalar_lea.vmem %s0, %s194
        %v197 = vld [vmem:[%s195] sm:$0xff]
        %v198 = vld [vmem:[%s195 + $0x8] sm:$0x3]
        %v199 = vld [vmem:[%s195 + $0x10] sm:$0xff]
        %v200 = vld [vmem:[%s195 + $0x18] sm:$0x3]
        %v201 = vld [vmem:[%s195 + $0x20] sm:$0xff]
        %v202 = vld [vmem:[%s195 + $0x28] sm:$0x3]
        %v203 = vld [vmem:[%s195 + $0x30] sm:$0xff]
        %v204 = vld [vmem:[%s195 + $0x38] sm:$0x3]
        %v205 = vld [vmem:[%s195 + $0x40] sm:$0xff]
        %v206 = vld [vmem:[%s195 + $0x48] sm:$0x3]
        %v207 = vld [vmem:[%s195 + $0x50] sm:$0xff]
        %v208 = vld [vmem:[%s195 + $0x58] sm:$0x3]
        %v209 = vld [vmem:[%s195 + $0x60] sm:$0xff]
        %v210 = vld [vmem:[%s195 + $0x68] sm:$0x3]
        %v211 = vld [vmem:[%s195 + $0x70] sm:$0xff]
        %v212 = vld [vmem:[%s195 + $0x78] sm:$0x3]
        %v213 = vld [vmem:[%s195 + $0x80] sm:$0xff]
        %v214 = vld [vmem:[%s195 + $0x88] sm:$0x3]
        %v215 = vld [vmem:[%s195 + $0x90] sm:$0xff]
        %v216 = vld [vmem:[%s195 + $0x98] sm:$0x3]
        %233 = vrot.lane.b32.xlu0 %v199, 32
        %v234 = vpop.permute.xlu0 %233
        %235 = vrot.lane.b32.xlu0 %v200, 32
        %v236 = vpop.permute.xlu0 %235
        %237 = vrot.lane.b32.xlu0 %v201, 32
        %v238 = vpop.permute.xlu0 %237
        %239 = vrot.lane.b32.xlu0 %v202, 32
        %v240 = vpop.permute.xlu0 %239
        %241 = vrot.lane.b32.xlu0 %v203, 32
        %v242 = vpop.permute.xlu0 %241
        %243 = vrot.lane.b32.xlu0 %v204, 32
        %v244 = vpop.permute.xlu0 %243
        %245 = vrot.lane.b32.xlu0 %v205, 32
        %v246 = vpop.permute.xlu0 %245
        %247 = vrot.lane.b32.xlu0 %v206, 32
        %v248 = vpop.permute.xlu0 %247
        %249 = vrot.lane.b32.xlu0 %v207, 32
        %v250 = vpop.permute.xlu0 %249
        %251 = vrot.lane.b32.xlu0 %v208, 32
        %v252 = vpop.permute.xlu0 %251
        %253 = vrot.lane.b32.xlu0 %v209, 32
        %v254 = vpop.permute.xlu0 %253
        %255 = vrot.lane.b32.xlu0 %v210, 32
        %v256 = vpop.permute.xlu0 %255
        %257 = vrot.lane.b32.xlu0 %v211, 32
        %v258 = vpop.permute.xlu0 %257
        %259 = vrot.lane.b32.xlu0 %v212, 32
        %v260 = vpop.permute.xlu0 %259
        %261 = vrot.lane.b32.xlu0 %v213, 32
        %v262 = vpop.permute.xlu0 %261
        %263 = vrot.lane.b32.xlu0 %v214, 32
        %v264 = vpop.permute.xlu0 %263
        %283 = vrot.lane.b32.xlu0 %v201, 64
        %v284 = vpop.permute.xlu0 %283
        %285 = vrot.lane.b32.xlu0 %v202, 64
        %v286 = vpop.permute.xlu0 %285
        %287 = vrot.lane.b32.xlu0 %v203, 64
        %v288 = vpop.permute.xlu0 %287
        %289 = vrot.lane.b32.xlu0 %v204, 64
        %v290 = vpop.permute.xlu0 %289
        %291 = vrot.lane.b32.xlu0 %v205, 64
        %v292 = vpop.permute.xlu0 %291
        %293 = vrot.lane.b32.xlu0 %v206, 64
        %v294 = vpop.permute.xlu0 %293
        %295 = vrot.lane.b32.xlu0 %v207, 64
        %v296 = vpop.permute.xlu0 %295
        %297 = vrot.lane.b32.xlu0 %v208, 64
        %v298 = vpop.permute.xlu0 %297
        %299 = vrot.lane.b32.xlu0 %v209, 64
        %v300 = vpop.permute.xlu0 %299
        %301 = vrot.lane.b32.xlu0 %v210, 64
        %v302 = vpop.permute.xlu0 %301
        %303 = vrot.lane.b32.xlu0 %v211, 64
        %v304 = vpop.permute.xlu0 %303
        %305 = vrot.lane.b32.xlu0 %v212, 64
        %v306 = vpop.permute.xlu0 %305
        %307 = vrot.lane.b32.xlu0 %v213, 64
        %v308 = vpop.permute.xlu0 %307
        %309 = vrot.lane.b32.xlu0 %v214, 64
        %v310 = vpop.permute.xlu0 %309
        %311 = vrot.lane.b32.xlu0 %v215, 64
        %v312 = vpop.permute.xlu0 %311
        %313 = vrot.lane.b32.xlu0 %v216, 64
        %v314 = vpop.permute.xlu0 %313
        %vm331 = vcmask 261120
        %v332 = vsel %vm331, %v197, %v234
        %v333 = vsel %vm331, %v198, %v236
        %v334 = vsel %vm331, %v199, %v238
        %v335 = vsel %vm331, %v200, %v240
        %v336 = vsel %vm331, %v201, %v242
        %v337 = vsel %vm331, %v202, %v244
        %v338 = vsel %vm331, %v203, %v246
        %v339 = vsel %vm331, %v204, %v248
        %v340 = vsel %vm331, %v205, %v250
        %v341 = vsel %vm331, %v206, %v252
        %v342 = vsel %vm331, %v207, %v254
        %v343 = vsel %vm331, %v208, %v256
        %v344 = vsel %vm331, %v209, %v258
        %v345 = vsel %vm331, %v210, %v260
        %v346 = vsel %vm331, %v211, %v262
        %v347 = vsel %vm331, %v212, %v264
        %vm348 = vcmask 523264
        %v349 = vsel %vm348, %v332, %v284
        %v350 = vsel %vm348, %v333, %v286
        %v351 = vsel %vm348, %v334, %v288
        %v352 = vsel %vm348, %v335, %v290
        %v353 = vsel %vm348, %v336, %v292
        %v354 = vsel %vm348, %v337, %v294
        %v355 = vsel %vm348, %v338, %v296
        %v356 = vsel %vm348, %v339, %v298
        %v357 = vsel %vm348, %v340, %v300
        %v358 = vsel %vm348, %v341, %v302
        %v359 = vsel %vm348, %v342, %v304
        %v360 = vsel %vm348, %v343, %v306
        %v361 = vsel %vm348, %v344, %v308
        %v362 = vsel %vm348, %v345, %v310
        %v363 = vsel %vm348, %v346, %v312
        %v364 = vsel %vm348, %v347, %v314
        %vm381 = vcmask 1046528
        %v382 = vrot.slane %v349, 1
        %v383 = vrot.slane %v350, 1
        %v384 = vsel %vm381, %v382, %v383
        %v385 = vrot.slane %v351, 1
        %v386 = vrot.slane %v352, 1
        %v387 = vsel %vm381, %v385, %v386
        %v388 = vrot.slane %v353, 1
        %v389 = vrot.slane %v354, 1
        %v390 = vsel %vm381, %v388, %v389
        %v391 = vrot.slane %v355, 1
        %v392 = vrot.slane %v356, 1
        %v393 = vsel %vm381, %v391, %v392
        %v394 = vrot.slane %v357, 1
        %v395 = vrot.slane %v358, 1
        %v396 = vsel %vm381, %v394, %v395
        %v397 = vrot.slane %v359, 1
        %v398 = vrot.slane %v360, 1
        %v399 = vsel %vm381, %v397, %v398
        %v400 = vrot.slane %v361, 1
        %v401 = vrot.slane %v362, 1
        %v402 = vsel %vm381, %v400, %v401
        %v403 = vrot.slane %v363, 1
        %v404 = vrot.slane %v364, 1
        %v405 = vsel %vm381, %v403, %v404
        %406 = vrot.lane.b32.xlu0 %v384, 96
        %v407 = vpop.permute.xlu0 %406
        %408 = vrot.lane.b32.xlu0 %v387, 96
        %v409 = vpop.permute.xlu0 %408
        %410 = vrot.lane.b32.xlu0 %v390, 96
        %v411 = vpop.permute.xlu0 %410
        %412 = vrot.lane.b32.xlu0 %v393, 96
        %v413 = vpop.permute.xlu0 %412
        %414 = vrot.lane.b32.xlu0 %v396, 96
        %v415 = vpop.permute.xlu0 %414
        %416 = vrot.lane.b32.xlu0 %v399, 96
        %v417 = vpop.permute.xlu0 %416
        %418 = vrot.lane.b32.xlu0 %v402, 96
        %v419 = vpop.permute.xlu0 %418
        %420 = vrot.lane.b32.xlu0 %v405, 96
        %v421 = vpop.permute.xlu0 %420
        %vm430 = vcmask 1045504
        %v431 = vrot.slane %v349, 2
        %v432 = vrot.slane %v350, 2
        %v433 = vsel %vm430, %v431, %v432
        %v434 = vrot.slane %v351, 2
        %v435 = vrot.slane %v352, 2
        %v436 = vsel %vm430, %v434, %v435
        %v437 = vrot.slane %v353, 2
        %v438 = vrot.slane %v354, 2
        %v439 = vsel %vm430, %v437, %v438
        %v440 = vrot.slane %v355, 2
        %v441 = vrot.slane %v356, 2
        %v442 = vsel %vm430, %v440, %v441
        %v443 = vrot.slane %v357, 2
        %v444 = vrot.slane %v358, 2
        %v445 = vsel %vm430, %v443, %v444
        %v446 = vrot.slane %v359, 2
        %v447 = vrot.slane %v360, 2
        %v448 = vsel %vm430, %v446, %v447
        %v449 = vrot.slane %v361, 2
        %v450 = vrot.slane %v362, 2
        %v451 = vsel %vm430, %v449, %v450
        %v452 = vrot.slane %v363, 2
        %v453 = vrot.slane %v364, 2
        %v454 = vsel %vm430, %v452, %v453
        %455 = vrot.lane.b32.xlu0 %v433, 64
        %v456 = vpop.permute.xlu0 %455
        %457 = vrot.lane.b32.xlu0 %v436, 64
        %v458 = vpop.permute.xlu0 %457
        %459 = vrot.lane.b32.xlu0 %v439, 64
        %v460 = vpop.permute.xlu0 %459
        %461 = vrot.lane.b32.xlu0 %v442, 64
        %v462 = vpop.permute.xlu0 %461
        %463 = vrot.lane.b32.xlu0 %v445, 64
        %v464 = vpop.permute.xlu0 %463
        %465 = vrot.lane.b32.xlu0 %v448, 64
        %v466 = vpop.permute.xlu0 %465
        %467 = vrot.lane.b32.xlu0 %v451, 64
        %v468 = vpop.permute.xlu0 %467
        %469 = vrot.lane.b32.xlu0 %v454, 64
        %v470 = vpop.permute.xlu0 %469
        %vm479 = vcmask 785408
        %v480 = vsel %vm479, %v349, %v407
        %v481 = vsel %vm479, %v351, %v409
        %v482 = vsel %vm479, %v353, %v411
        %v483 = vsel %vm479, %v355, %v413
        %v484 = vsel %vm479, %v357, %v415
        %v485 = vsel %vm479, %v359, %v417
        %v486 = vsel %vm479, %v361, %v419
        %v487 = vsel %vm479, %v363, %v421
        %v488 = vsel %vm348, %v407, %v456
        %v489 = vsel %vm348, %v409, %v458
        %v490 = vsel %vm348, %v411, %v460
        %v491 = vsel %vm348, %v413, %v462
        %v492 = vsel %vm348, %v415, %v464
        %v493 = vsel %vm348, %v417, %v466
        %v494 = vsel %vm348, %v419, %v468
        %v495 = vsel %vm348, %v421, %v470
        %v496 = vpack.c.bf16 %v481, %v480
        %v497 = vpack.c.bf16 %v489, %v488
        %v498 = vpack.c.bf16 %v458, %v456
        %v499 = vpack.c.bf16 %v483, %v482
        %v500 = vpack.c.bf16 %v491, %v490
        %v501 = vpack.c.bf16 %v462, %v460
        %v502 = vpack.c.bf16 %v485, %v484
        %v503 = vpack.c.bf16 %v493, %v492
        %v504 = vpack.c.bf16 %v466, %v464
        %v505 = vpack.c.bf16 %v487, %v486
        %v506 = vpack.c.bf16 %v495, %v494
        %v507 = vpack.c.bf16 %v470, %v468
        %v508 = vld [vmem:[%s1] sm:$0xf]
        %v509 = vld [vmem:[%s1 + $0x4] sm:$0xf]
        %v510 = vld [vmem:[%s1 + $0x8] sm:$0xf]
        %v511 = vld [vmem:[%s1 + $0xc] sm:$0xf]
        %v512 = vld [vmem:[%s1 + $0x10] sm:$0xf]
        %v513 = vld [vmem:[%s1 + $0x14] sm:$0xf]
        %v514 = vld [vmem:[%s1 + $0x18] sm:$0xf]
        %v515 = vld [vmem:[%s1 + $0x1c] sm:$0xf]
        %v516 = vld [vmem:[%s1 + $0x20] sm:$0xf]
        %v517 = vld [vmem:[%s1 + $0x24] sm:$0xf]
        %v518 = vld [vmem:[%s1 + $0x28] sm:$0xf]
        %v519 = vld [vmem:[%s1 + $0x2c] sm:$0xf]
        %v520 = vld [vmem:[%s1 + $0x30] sm:$0xf]
        %v521 = vld [vmem:[%s1 + $0x34] sm:$0xf]
        %v522 = vld [vmem:[%s1 + $0x38] sm:$0xf]
        %v523 = vld [vmem:[%s1 + $0x3c] sm:$0xf]
        %v524 = vld [vmem:[%s1 + $0x40] sm:$0xf]
        %v525 = vld [vmem:[%s1 + $0x44] sm:$0xf]
        %v526 = vld [vmem:[%s1 + $0x48] sm:$0xf]
        %v527 = vld [vmem:[%s1 + $0x4c] sm:$0xf]
        %v528 = vld [vmem:[%s1 + $0x50] sm:$0xf]
        %v529 = vld [vmem:[%s1 + $0x54] sm:$0xf]
        %v530 = vld [vmem:[%s1 + $0x58] sm:$0xf]
        %v531 = vld [vmem:[%s1 + $0x5c] sm:$0xf]
        %v532 = vld [vmem:[%s1 + $0x60] sm:$0xf]
        %v533 = vld [vmem:[%s1 + $0x64] sm:$0xf]
        %v534 = vld [vmem:[%s1 + $0x68] sm:$0xf]
        %v535 = vld [vmem:[%s1 + $0x6c] sm:$0xf]
        %v536 = vld [vmem:[%s1 + $0x70] sm:$0xf]
        %v537 = vld [vmem:[%s1 + $0x74] sm:$0xf]
        %v538 = vld [vmem:[%s1 + $0x78] sm:$0xf]
        %v539 = vld [vmem:[%s1 + $0x7c] sm:$0xf]
        %v540 = vld [vmem:[%s1 + $0x80] sm:$0xf]
        %v541 = vld [vmem:[%s1 + $0x84] sm:$0xf]
        %v542 = vld [vmem:[%s1 + $0x88] sm:$0xf]
        %v543 = vld [vmem:[%s1 + $0x8c] sm:$0xf]
        %v580 = vunpack.c.l.b16 %v508
        %v581 = vunpack.c.l.b16 %v509
        %v582 = vunpack.c.l.b16 %v510
        %v583 = vunpack.c.l.b16 %v511
        %v584 = vunpack.c.l.b16 %v512
        %v585 = vunpack.c.l.b16 %v513
        %v586 = vunpack.c.l.b16 %v514
        %v587 = vunpack.c.l.b16 %v515
        %v588 = vunpack.c.l.b16 %v516
        %v589 = vunpack.c.l.b16 %v517
        %v590 = vunpack.c.l.b16 %v518
        %v591 = vunpack.c.l.b16 %v519
        %v592 = vunpack.c.l.b16 %v520
        %v593 = vunpack.c.l.b16 %v521
        %v594 = vunpack.c.l.b16 %v522
        %v595 = vunpack.c.l.b16 %v523
        %v596 = vunpack.c.l.b16 %v524
        %v597 = vunpack.c.l.b16 %v525
        %v598 = vunpack.c.l.b16 %v526
        %v599 = vunpack.c.l.b16 %v527
        %v600 = vunpack.c.l.b16 %v528
        %v601 = vunpack.c.l.b16 %v529
        %v602 = vunpack.c.l.b16 %v530
        %v603 = vunpack.c.l.b16 %v531
        %v604 = vunpack.c.l.b16 %v532
        %v605 = vunpack.c.l.b16 %v533
        %v606 = vunpack.c.l.b16 %v534
        %v607 = vunpack.c.l.b16 %v535
        %v608 = vunpack.c.l.b16 %v536
        %v609 = vunpack.c.l.b16 %v537
        %v610 = vunpack.c.l.b16 %v538
        %v611 = vunpack.c.l.b16 %v539
        %v612 = vunpack.c.l.b16 %v540
        %v613 = vunpack.c.l.b16 %v541
        %v614 = vunpack.c.l.b16 %v542
        %v615 = vunpack.c.l.b16 %v543
        %v616 = vpack.c.b16 %v581, %v580
        %v617 = vpack.c.b16 %v583, %v582
        %v618 = vpack.c.b16 %v585, %v584
        %v619 = vpack.c.b16 %v587, %v586
        %v620 = vpack.c.b16 %v589, %v588
        %v621 = vpack.c.b16 %v591, %v590
        %v622 = vpack.c.b16 %v593, %v592
        %v623 = vpack.c.b16 %v595, %v594
        %v624 = vpack.c.b16 %v597, %v596
        %v625 = vpack.c.b16 %v599, %v598
        %v626 = vpack.c.b16 %v601, %v600
        %v627 = vpack.c.b16 %v603, %v602
        %v628 = vpack.c.b16 %v605, %v604
        %v629 = vpack.c.b16 %v607, %v606
        %v630 = vpack.c.b16 %v609, %v608
        %v631 = vpack.c.b16 %v611, %v610
        %v632 = vpack.c.b16 %v613, %v612
        %v633 = vpack.c.b16 %v615, %v614
        %v653 = vsel %vm331, %v498, 0
        %v656 = vsel %vm331, %v501, 0
        %v659 = vsel %vm331, %v504, 0
        %v662 = vsel %vm331, %v507, 0
        %664 = vmatprep.subr.bf16.mxu0 0
        %665 = vmatpush1.bf16.msra.mxu0 %v616
        %666 = vmatprep.subr.bf16.mxu0 0
        %667 = vmatpush1.bf16.msra.mxu0 %v617
        %668 = vmatprep.subr.bf16.mxu0 0
        %669 = vmatpush1.bf16.msra.mxu0 %v618
        %670 = vmatprep.subr.bf16.mxu0 0
        %671 = vmatpush1.bf16.msra.mxu0 %v619
        %672 = vmatprep.subr.bf16.mxu0 0
        %673 = vmatpush1.bf16.msra.mxu0 %v620
        %674 = vmatprep.subr.bf16.mxu0 0
        %675 = vmatpush1.bf16.msra.mxu0 %v621
        %676 = vmatprep.subr.bf16.mxu0 0
        %677 = vmatpush1.bf16.msra.mxu0 %v622
        %678 = vmatprep.subr.bf16.mxu0 0
        %679 = vmatpush1.bf16.msra.mxu0 %v623
        %680 = vmatprep.subr.bf16.mxu0 0
        %681 = vmatpush1.bf16.msra.mxu0 %v624
        %682 = vmatprep.subr.bf16.mxu0 0
        %683 = vmatpush1.bf16.msra.mxu0 %v625
        %684 = vmatprep.subr.bf16.mxu0 0
        %685 = vmatpush1.bf16.msra.mxu0 %v626
        %686 = vmatprep.subr.bf16.mxu0 0
        %687 = vmatpush1.bf16.msra.mxu0 %v627
        %688 = vmatprep.subr.bf16.mxu0 0
        %689 = vmatpush1.bf16.msra.mxu0 %v628
        %690 = vmatprep.subr.bf16.mxu0 0
        %691 = vmatpush1.bf16.msra.mxu0 %v629
        %692 = vmatprep.subr.bf16.mxu0 0
        %693 = vmatpush1.bf16.msra.mxu0 %v630
        %694 = vmatprep.subr.bf16.mxu0 0
        %695 = vmatpush1.bf16.msra.mxu0 %v631
        %696 = vmatprep.mubr.bf16.mxu0 %v497
        %697 = vmatmul.mubr.bf16.gmra.mrb[0].mxu0 %v496
        %v698 = vpop.f32.mrb[0].mxu0
        %v699 = vadd.f32 0.0, %v698
        %v700 = vpop.f32.mrb[0].mxu0
        %v701 = vpop.f32.mrb[0].mxu0
        %v702 = vadd.f32 0.0, %v701
        %v703 = vpop.f32.mrb[0].mxu0
        %704 = vmatprep.mubr.bf16.mxu0 %v500
        %705 = vmatmul.mubr.bf16.gmra.mrb[0].mxu0 %v499
        %v706 = vpop.f32.mrb[0].mxu0
        %v707 = vadd.f32 0.0, %v706
        %v708 = vpop.f32.mrb[0].mxu0
        %v709 = vpop.f32.mrb[0].mxu0
        %v710 = vadd.f32 0.0, %v709
        %v711 = vpop.f32.mrb[0].mxu0
        %712 = vmatprep.mubr.bf16.mxu0 %v503
        %713 = vmatmul.mubr.bf16.gmra.mrb[0].mxu0 %v502
        %v714 = vpop.f32.mrb[0].mxu0
        %v715 = vadd.f32 0.0, %v714
        %v716 = vpop.f32.mrb[0].mxu0
        %v717 = vpop.f32.mrb[0].mxu0
        %v718 = vadd.f32 0.0, %v717
        %v719 = vpop.f32.mrb[0].mxu0
        %720 = vmatprep.mubr.bf16.mxu0 %v506
        %721 = vmatmul.mubr.bf16.gmra.mrb[0].mxu0 %v505
        %v722 = vpop.f32.mrb[0].mxu0
        %v723 = vadd.f32 0.0, %v722
        %v724 = vpop.f32.mrb[0].mxu0
        %v725 = vpop.f32.mrb[0].mxu0
        %v726 = vadd.f32 0.0, %v725
        %v727 = vpop.f32.mrb[0].mxu0
        %728 = vdwg.mxu0
        %729 = vmatprep.subr.bf16.mxu0 0
        %730 = vmatpush1.bf16.msra.mxu0 %v632
        %731 = vmatprep.subr.bf16.mxu0 0
        %732 = vmatpush1.bf16.msra.mxu0 %v633
        %733 = vmatprep.subr.bf16.mxu0 0
        %734 = vmatpush1.bf16.msra.mxu0 0
        %735 = vmatprep.subr.bf16.mxu0 0
        %736 = vmatpush1.bf16.msra.mxu0 0
        %737 = vmatprep.subr.bf16.mxu0 0
        %738 = vmatpush1.bf16.msra.mxu0 0
        %739 = vmatprep.subr.bf16.mxu0 0
        %740 = vmatpush1.bf16.msra.mxu0 0
        %741 = vmatprep.subr.bf16.mxu0 0
        %742 = vmatpush1.bf16.msra.mxu0 0
        %743 = vmatprep.subr.bf16.mxu0 0
        %744 = vmatpush1.bf16.msra.mxu0 0
        %745 = vmatprep.subr.bf16.mxu0 0
        %746 = vmatpush1.bf16.msra.mxu0 0
        %747 = vmatprep.subr.bf16.mxu0 0
        %748 = vmatpush1.bf16.msra.mxu0 0
        %749 = vmatprep.subr.bf16.mxu0 0
        %750 = vmatpush1.bf16.msra.mxu0 0
        %751 = vmatprep.subr.bf16.mxu0 0
        %752 = vmatpush1.bf16.msra.mxu0 0
        %753 = vmatprep.subr.bf16.mxu0 0
        %754 = vmatpush1.bf16.msra.mxu0 0
        %755 = vmatprep.subr.bf16.mxu0 0
        %756 = vmatpush1.bf16.msra.mxu0 0
        %757 = vmatprep.subr.bf16.mxu0 0
        %758 = vmatpush1.bf16.msra.mxu0 0
        %759 = vmatprep.subr.bf16.mxu0 0
        %760 = vmatpush1.bf16.msra.mxu0 0
        %761 = vmatprep.mubr.bf16.mxu0 0
        %762 = vmatmul.mubr.bf16.gmra.mrb[0].mxu0 %v653
        %v763 = vpop.f32.mrb[0].mxu0
        %v764 = vadd.f32 %v699, %v763
        %v765 = vpop.f32.mrb[0].mxu0
        %v766 = vpop.f32.mrb[0].mxu0
        %v767 = vadd.f32 %v702, %v766
        %v768 = vpop.f32.mrb[0].mxu0
        %769 = vmatprep.mubr.bf16.mxu0 0
        %770 = vmatmul.mubr.bf16.gmra.mrb[0].mxu0 %v656
        %v771 = vpop.f32.mrb[0].mxu0
        %v772 = vadd.f32 %v707, %v771
        %v773 = vpop.f32.mrb[0].mxu0
        %v774 = vpop.f32.mrb[0].mxu0
        %v775 = vadd.f32 %v710, %v774
        %v776 = vpop.f32.mrb[0].mxu0
        %777 = vmatprep.mubr.bf16.mxu0 0
        %778 = vmatmul.mubr.bf16.gmra.mrb[0].mxu0 %v659
        %v779 = vpop.f32.mrb[0].mxu0
        %v780 = vadd.f32 %v715, %v779
        %v781 = vpop.f32.mrb[0].mxu0
        %v782 = vpop.f32.mrb[0].mxu0
        %v783 = vadd.f32 %v718, %v782
        %v784 = vpop.f32.mrb[0].mxu0
        %785 = vmatprep.mubr.bf16.mxu0 0
        %786 = vmatmul.mubr.bf16.gmra.mrb[0].mxu0 %v662
        %v787 = vpop.f32.mrb[0].mxu0
        %v788 = vadd.f32 %v723, %v787
        %v789 = vpop.f32.mrb[0].mxu0
        %v790 = vpop.f32.mrb[0].mxu0
        %v791 = vadd.f32 %v726, %v790
        %v792 = vpop.f32.mrb[0].mxu0
        %793 = vdwg.mxu0
        %v794 = vld [vmem:[%s2] sm:$0x1]
        %v796 = vlaneseq
        %v797 = vshrl.u32 %v796, 7
        %v798 = vsub.s32 0, %v797
        %v799 = vrot.slane %v794, %v798
        %v801 = vmul.f32 %v764, %v799
        %v802 = vmul.f32 %v767, %v799
        %v803 = vmul.f32 %v772, %v799
        %v804 = vmul.f32 %v775, %v799
        %v805 = vmul.f32 %v780, %v799
        %v806 = vmul.f32 %v783, %v799
        %v807 = vmul.f32 %v788, %v799
        %v808 = vmul.f32 %v791, %v799
        %v809 = vld [vmem:[%s3] sm:$0x1]
        %v811 = vlaneseq
        %v812 = vshrl.u32 %v811, 7
        %v813 = vsub.s32 0, %v812
        %v814 = vrot.slane %v809, %v813
        %v816 = vadd.f32 %v801, %v814
        %v817 = vadd.f32 %v802, %v814
        %v818 = vadd.f32 %v803, %v814
        %v819 = vadd.f32 %v804, %v814
        %v820 = vadd.f32 %v805, %v814
        %v821 = vadd.f32 %v806, %v814
        %v822 = vadd.f32 %v807, %v814
        %v823 = vadd.f32 %v808, %v814
        %v824 = vmax.f32 %v816, 0.0
        %v825 = vmax.f32 %v817, 0.0
        %v826 = vmax.f32 %v818, 0.0
        %v827 = vmax.f32 %v819, 0.0
        %v828 = vmax.f32 %v820, 0.0
        %v829 = vmax.f32 %v821, 0.0
        %v830 = vmax.f32 %v822, 0.0
        %v831 = vmax.f32 %v823, 0.0
        %832 = vst.msk [vmem:[%s190] sm:$0xff] %vm331, %v824
        %833 = vst.msk [vmem:[%s190 + $0x8] sm:$0xff] %vm331, %v825
        %834 = vst.msk [vmem:[%s190 + $0x10] sm:$0xff] %vm331, %v826
        %835 = vst.msk [vmem:[%s190 + $0x18] sm:$0xff] %vm331, %v827
        %836 = vst.msk [vmem:[%s190 + $0x20] sm:$0xff] %vm331, %v828
        %837 = vst.msk [vmem:[%s190 + $0x28] sm:$0xff] %vm331, %v829
        %838 = vst.msk [vmem:[%s190 + $0x30] sm:$0xff] %vm331, %v830
        %839 = vst.msk [vmem:[%s190 + $0x38] sm:$0xff] %vm331, %v831
        %s840 = sand.u32 %s115, 1
        %s841 = scalar_lea.sflag [#allocation3], %s840
        %s842 = sand.u32 %s115, 1
        %s843 = smul.addr %s842, 64
        %s844 = scalar_lea.vmem [#allocation2], %s843
        // Predicated region
        $region37: #{collab_forward.13} parent=35 // pred_check
          %p845 = pneg %p125
        $region38: #{collab_forward.13} parent=35 // pred_check_branch
          %847 = sbr.rel (%p845) target = $region40
        $region39: #{collab_forward.13} parent=35 // pred_region
          %s849 = ssub.s32 1024, 1024
          %850 = vsyncadd %s841, %s849
          %s851 = smul.addr %s18, 8
          %s852 = smul.addr %s851, 128
          %s853 = scalar_lea.hbm %s4, %s852
          %s854 = sshll.u32 %s844, 4
          %s855 = int_to_ptr.vmem [resolvable:$true] %s854
          %860 = dma.vmem_to_hbm [thread:$0]  %s855, 1024, %s853, %s841, 128, 128, 8
        $region40: #{collab_forward.13} parent=35 // pred_fallthru
          _
      $region36: #{collab_forward.13} parent=5 // pred_fallthru
        _
      %p861 = scmp.le.s32.totalorder 2, %s13
      // Predicated region
      $region41: #{collab_forward.13} parent=5 // pred_check
        %p862 = pneg %p861
      $region42: #{collab_forward.13} parent=5 // pred_check_branch
        %864 = sbr.rel (%p862) target = $region44
      $region43: #{collab_forward.13} parent=5 // pred_region
        %s865 = ssub.s32 %s13, 2
        // Predicated region
        $region45: #{collab_forward.13} parent=43 // pred_check
          %p866 = pneg %p131
        $region46: #{collab_forward.13} parent=43 // pred_check_branch
          %868 = sbr.rel (%p866) target = $region48
        $region47: #{collab_forward.13} parent=43 // pred_region
          %s869 = sand.u32 %s116, 1
          %s870 = scalar_lea.sflag [#allocation3], %s869
          %s871 = sand.u32 %s116, 1
          %s872 = smul.addr %s871, 64
          %s873 = scalar_lea.vmem [#allocation2], %s872
          %874 = dma.done %s870, 1024
        $region48: #{collab_forward.13} parent=43 // pred_fallthru
          _
      $region44: #{collab_forward.13} parent=5 // pred_fallthru
        _
    $region6: #{collab_forward.13} parent=1 // loop_footer
      %s17 = sadd.s32 1, %s13
    $region7: #{collab_forward.13} parent=1 // loop_footer_branch
      %12 = sbr.rel target = $region3
    $region8: #{collab_forward.13} parent=1 // loop_exit
      _
    %875 = vsyncpa [#allocation3], 1
    %s876 = scalar_lea.sflag [#allocation3], 1
    %877 = vsyncpa %s876, 1

</llo_original>
